<compile_context>
chip_gen: v6e
topology: v6e:2x2x1
jax: 0.10.0
libtpu: 0.0.40
codegen_flags: <defaults>
</compile_context>

<pallas_src>
import math
from functools import partial

import jax
import jax.numpy as jnp
from jax.experimental import pallas as pl
from jax.experimental.pallas import tpu as pltpu

# ----------------------------- small config ---------------------------------
# (scaled-down version of vit_base_patch16_224 / TimeSformer joint_space_time)
IMG = 16            # img_size
PATCH = 4           # patch_size
IN_CH = 3           # in_chans
T_FRAMES = 2        # num_frames
B = 2               # batch
D = 32              # embed_dim          (768 in the full model)
HEADS = 4           # num_heads          (12  in the full model)
HEAD_DIM = D // HEADS
DEPTH = 2           # depth              (12  in the full model)
MLP_HIDDEN = D * 4  # mlp_ratio = 4
NUM_CLASSES = 10
N_PATCH = (IMG // PATCH) ** 2
SEQ = 1 + N_PATCH * T_FRAMES       # 1 cls + N*T joint space-time tokens = 33
LN_EPS = 1e-6                      # partial(nn.LayerNorm, eps=1e-6)
ATTN_SCALE = HEAD_DIM ** -0.5
_INV_SQRT2 = 1.0 / math.sqrt(2.0)
_NEG_BIG = -1e30                   # mask value for padded key columns


# ----------------------------- GELU selection --------------------------------
def _gelu_erf(x):
    # exact GELU (torch nn.GELU default)
    return 0.5 * x * (1.0 + jax.lax.erf(x * _INV_SQRT2))


def _gelu_tanh(x):
    c = math.sqrt(2.0 / math.pi)
    return 0.5 * x * (1.0 + jnp.tanh(c * (x + 0.044715 * (x * x * x))))


_GELU_IMPL = None


def _get_gelu():
    """Lazily probe whether this Mosaic build lowers erf; else tanh-approx GELU."""
    global _GELU_IMPL
    if _GELU_IMPL is not None:
        return _GELU_IMPL

    def _probe(x_ref, o_ref):
        o_ref[...] = _gelu_erf(x_ref[...])

    try:
        out = pl.pallas_call(
            _probe,
            out_shape=jax.ShapeDtypeStruct((8, 128), jnp.float32),
            grid=(1,),
            in_specs=[pl.BlockSpec((8, 128), lambda i: (0, 0))],
            out_specs=pl.BlockSpec((8, 128), lambda i: (0, 0)),
        )(jnp.zeros((8, 128), jnp.float32))
        jax.block_until_ready(out)
        _GELU_IMPL = _gelu_erf
    except Exception:
        # TODO(synk): exact erf GELU not lowered by this Mosaic build; tanh approx fallback.
        _GELU_IMPL = _gelu_tanh
    return _GELU_IMPL


# ----------------------------- kernel helpers --------------------------------
def _ln(x, g, b):
    """LayerNorm over the last dim, f32 statistics, biased variance (== torch)."""
    xf = x.astype(jnp.float32)
    mean = jnp.mean(xf, axis=-1, keepdims=True)
    xc = xf - mean
    var = jnp.mean(xc * xc, axis=-1, keepdims=True)
    inv = jax.lax.rsqrt(var + LN_EPS)
    return xc * inv * g + b


# ----------------------------- Pallas kernels --------------------------------
def _linear_kernel(x_ref, w_ref, b_ref, o_ref):
    # x:(M,K) f32 -> bf16, w:(K,N) bf16, f32 accumulation + f32 bias
    acc = jnp.dot(x_ref[...].astype(jnp.bfloat16), w_ref[...],
                  preferred_element_type=jnp.float32)
    o_ref[...] = (acc + b_ref[...]).astype(o_ref.dtype)


def linear_pallas(x, w_bf16, b):
    M, K = x.shape
    _, N = w_bf16.shape
    b2 = b.reshape(1, N)
    return pl.pallas_call(
        _linear_kernel,
        out_shape=jax.ShapeDtypeStruct((M, N), jnp.float32),
        grid=(1,),
        in_specs=[
            pl.BlockSpec((M, K), lambda i: (0, 0)),
            pl.BlockSpec((K, N), lambda i: (0, 0)),
            pl.BlockSpec((1, N), lambda i: (0, 0)),
        ],
        out_specs=pl.BlockSpec((M, N), lambda i: (0, 0)),
    )(x, w_bf16, b2)


def _transformer_kernel(x_ref,
                        ln1_g_ref, ln1_b_ref, qkv_w_ref, qkv_b_ref,
                        proj_w_ref, proj_b_ref,
                        ln2_g_ref, ln2_b_ref,
                        fc1_w_ref, fc1_b_ref, fc2_w_ref, fc2_b_ref,
                        norm_g_ref, norm_b_ref, head_w_ref, head_b_ref,
                        o_ref, *, gelu, seq_len):
    """All transformer blocks + final norm + head for one batch element."""
    s_pad = x_ref.shape[1]
    x = x_ref[0].astype(jnp.float32)                          # (s_pad, D)

    # padded key columns (>= seq_len) must never contribute to softmax
    # (loop-invariant: built once, hoisted outside the layer loop)
    kmask = jax.lax.broadcasted_iota(jnp.int32, (s_pad, s_pad), 1) < seq_len

    for l in range(DEPTH):
        # ---- attention branch: LN1 -> QKV -> MHSA -> proj -> residual ----
        h = _ln(x, ln1_g_ref[l], ln1_b_ref[l])
        qkv = jnp.dot(h.astype(jnp.bfloat16), qkv_w_ref[l],
                      preferred_element_type=jnp.float32) + qkv_b_ref[l]   # (s_pad, 3D)
        q = (qkv[:, 0 * D:1 * D] * ATTN_SCALE).astype(jnp.bfloat16)        # pre-scaled q
        k = qkv[:, 1 * D:2 * D].astype(jnp.bfloat16)
        v = qkv[:, 2 * D:3 * D].astype(jnp.bfloat16)

        heads_out = []
        for hh in range(HEADS):
            sl = slice(hh * HEAD_DIM, (hh + 1) * HEAD_DIM)
            s = jax.lax.dot_general(q[:, sl], k[:, sl],
                                    dimension_numbers=(((1,), (1,)), ((), ())),
                                    preferred_element_type=jnp.float32)    # (s_pad, s_pad)
            s = jnp.where(kmask, s, _NEG_BIG)
            s = s - jnp.max(s, axis=-1, keepdims=True)
            p = jnp.exp(s)
            p = p * pl.reciprocal(jnp.sum(p, axis=-1, keepdims=True), approx=True)
            heads_out.append(jnp.dot(p.astype(jnp.bfloat16), v[:, sl],
                                     preferred_element_type=jnp.float32))  # (s_pad, HEAD_DIM)
        o_cat = jnp.concatenate(heads_out, axis=-1).astype(jnp.bfloat16)   # (s_pad, D)
        attn = jnp.dot(o_cat, proj_w_ref[l],
                       preferred_element_type=jnp.float32) + proj_b_ref[l]
        x = x + attn                                          # drop_path: identity (eval)

        # ---- MLP branch: LN2 -> FC1 -> GELU -> FC2 -> residual ----
        h = _ln(x, ln2_g_ref[l], ln2_b_ref[l])
        h = jnp.dot(h.astype(jnp.bfloat16), fc1_w_ref[l],
                    preferred_element_type=jnp.float32) + fc1_b_ref[l]
        h = gelu(h)                                           # fused GELU epilogue
        h = jnp.dot(h.astype(jnp.bfloat16), fc2_w_ref[l],
                    preferred_element_type=jnp.float32) + fc2_b_ref[l]
        x = x + h

    # ---- final LayerNorm (per-row => applying to cls row only is exact) + head ----
    cls = x[0:1, :]                                            # (1, D)
    hcls = _ln(cls, norm_g_ref[...], norm_b_ref[...])
    logits = jnp.dot(hcls.astype(jnp.bfloat16), head_w_ref[...],
                     preferred_element_type=jnp.float32) + head_b_ref[...]
    o_ref[0] = logits.astype(o_ref.dtype)                      # (1, NUM_CLASSES)


def transformer_forward(x_pad, params, gelu, seq_len):
    # x_pad: (B, s_pad, D) f32 — one fused pallas_call for the whole transformer,
    # gridded over batch (parallel across cores); returns (B, NUM_CLASSES) logits.
    b, s_pad, d = x_pad.shape
    stk = params["blocks"]
    args = (
        stk["ln1_g"], stk["ln1_b"], stk["qkv_w"], stk["qkv_b"],
        stk["proj_w"], stk["proj_b"], stk["ln2_g"], stk["ln2_b"],
        stk["fc1_w"], stk["fc1_b"], stk["fc2_w"], stk["fc2_b"],
        params["norm_g"].reshape(1, D), params["norm_b"].reshape(1, D),
        params["head_w"], params["head_b"].reshape(1, NUM_CLASSES),
    )

    def full_spec(arr):
        nd = arr.ndim
        return pl.BlockSpec(arr.shape, lambda i, _nd=nd: (0,) * _nd)

    in_specs = [pl.BlockSpec((1, s_pad, d), lambda i: (i, 0, 0))]
    in_specs += [full_spec(a) for a in args]

    out = pl.pallas_call(
        partial(_transformer_kernel, gelu=gelu, seq_len=seq_len),
        out_shape=jax.ShapeDtypeStruct((b, 1, NUM_CLASSES), jnp.float32),
        grid=(b,),
        in_specs=in_specs,
        out_specs=pl.BlockSpec((1, 1, NUM_CLASSES), lambda i: (i, 0, 0)),
        compiler_params=pltpu.CompilerParams(dimension_semantics=("parallel",)),
    )(x_pad, *args)
    return out.reshape(b, NUM_CLASSES)


# ----------------------------- parameters -----------------------------------
def init_params(key):
    keys = iter(jax.random.split(key, 16))
    bf = jnp.bfloat16

    def nrm(shape, std=0.02, dtype=jnp.float32):
        return (std * jax.random.normal(next(keys), shape, dtype=jnp.float32)).astype(dtype)

    params = {
        # patch embed: Conv2d(C, D, k=PATCH, s=PATCH) == matmul over flattened patches
        "patch_w": nrm((IN_CH * PATCH * PATCH, D), dtype=bf),
        "patch_b": jnp.zeros((D,), jnp.float32),
        "cls_token": nrm((1, 1, D)),
        "pos_embed": nrm((1, N_PATCH + 1, D)),
        "time_embed": nrm((1, T_FRAMES, D)),
        "norm_g": jnp.ones((D,), jnp.float32),
        "norm_b": jnp.zeros((D,), jnp.float32),
        "head_w": nrm((D, NUM_CLASSES), dtype=bf),
        "head_b": jnp.zeros((NUM_CLASSES,), jnp.float32),
        # per-block weights stacked along a leading DEPTH axis (stay resident in VMEM)
        "blocks": {
            "ln1_g": jnp.ones((DEPTH, 1, D), jnp.float32),
            "ln1_b": jnp.zeros((DEPTH, 1, D), jnp.float32),
            "qkv_w": nrm((DEPTH, D, 3 * D), dtype=bf),
            "qkv_b": jnp.zeros((DEPTH, 1, 3 * D), jnp.float32),
            "proj_w": nrm((DEPTH, D, D), dtype=bf),
            "proj_b": jnp.zeros((DEPTH, 1, D), jnp.float32),
            "ln2_g": jnp.ones((DEPTH, 1, D), jnp.float32),
            "ln2_b": jnp.zeros((DEPTH, 1, D), jnp.float32),
            "fc1_w": nrm((DEPTH, D, MLP_HIDDEN), dtype=bf),
            "fc1_b": jnp.zeros((DEPTH, 1, MLP_HIDDEN), jnp.float32),
            "fc2_w": nrm((DEPTH, MLP_HIDDEN, D), dtype=bf),
            "fc2_b": jnp.zeros((DEPTH, 1, D), jnp.float32),
        },
    }
    return params


# ----------------------------- forward pass ----------------------------------
def make_forward():
    gelu = _get_gelu()   # probe once, outside jit

    def forward(x, params):
        # x: (B, C, T, H, W) float32
        b, c, t, h, w = x.shape
        p = PATCH
        hp, wp = h // p, w // p
        n = hp * wp

        # ---- PatchEmbed: 'b c t h w -> (b t) c h w', Conv2d(k=p, s=p) as a matmul ----
        xr = jnp.transpose(x, (0, 2, 1, 3, 4))                 # (B, T, C, H, W)
        xr = xr.reshape(b * t, c, hp, p, wp, p)
        xr = jnp.transpose(xr, (0, 2, 4, 1, 3, 5))             # (BT, H', W', C, p, p)
        patches = xr.reshape(b * t * n, c * p * p)
        emb = linear_pallas(patches, params["patch_w"], params["patch_b"])  # (BT*N, D)
        tok = emb.reshape(b * t, n, D)

        # ---- cls token + positional embedding ----
        cls = jnp.broadcast_to(params["cls_token"], (b * t, 1, D))
        tok = jnp.concatenate([cls, tok], axis=1) + params["pos_embed"]     # (BT, 1+N, D)

        # ---- time embedding (joint_space_time) ----
        cls_tok = tok[:b, 0, :][:, None, :]                                 # (B, 1, D)
        xs = tok[:, 1:, :]                                                  # (BT, N, D)
        xs = xs.reshape(b, t, n, D).transpose(0, 2, 1, 3).reshape(b * n, t, D)
        xs = xs + params["time_embed"]
        xs = xs.reshape(b, n * t, D)                                        # '(b n) t m -> b (n t) m'
        xseq = jnp.concatenate([cls_tok, xs], axis=1)                       # (B, 1+N*T, D)
        s = xseq.shape[1]

        # pad seq to a multiple of 8 sublanes; pad keys masked inside the kernel
        s_pad = ((s + 7) // 8) * 8
        xpad = jnp.pad(xseq, ((0, 0), (0, s_pad - s), (0, 0)))

        # ---- whole transformer + final norm + head: one fused pallas_call ----
        return transformer_forward(xpad, params, gelu, seq_len=s)           # (B, NUM_CLASSES)

    return forward


# ------------------------------------ main -----------------------------------
if __name__ == "__main__":
    key = jax.random.PRNGKey(0)
    pkey, xkey = jax.random.split(key)
    params = init_params(pkey)
    x = jax.random.normal(xkey, (B, IN_CH, T_FRAMES, IMG, IMG), dtype=jnp.float32)

    fwd = jax.jit(make_forward())
    out = fwd(x, params)
    jax.block_until_ready(out)
    assert out.shape == (B, NUM_CLASSES), out.shape
    assert bool(jnp.all(jnp.isfinite(out)))
    print("KERNEL_OK")
</pallas_src>

<mosaic_0001>
module attributes {stable_mosaic.version = 11 : i64} {
  func.func @_probe(%arg0: i32, %arg1: memref<8x128xf32, #tpu.memory_space<vmem>>, %arg2: memref<8x128xf32, #tpu.memory_space<vmem>>) attributes {dimension_semantics = [#tpu.dimension_semantics<arbitrary>], iteration_bounds = array<i64: 1>, scalar_prefetch = 0 : i64, scratch_operands = 0 : i64, tpu.core_type = #tpu.core_type<tc>, window_params = [{pipeline_mode = #tpu.pipeline_mode<synchronous>, transform_indices = @transform_0, window_bounds = array<i64: 8, 128>}, {pipeline_mode = #tpu.pipeline_mode<synchronous>, transform_indices = @transform_1, window_bounds = array<i64: 8, 128>}]} {
    %c0 = arith.constant 0 : index
    %c0_0 = arith.constant 0 : index
    %0 = vector.load %arg1[%c0, %c0_0] : memref<8x128xf32, #tpu.memory_space<vmem>>, vector<8x128xf32>
    %cst = arith.constant 5.000000e-01 : f32
    %1 = vector.broadcast %cst : f32 to vector<8x128xf32>
    %2 = arith.mulf %1, %0 : vector<8x128xf32>
    %cst_1 = arith.constant 0.707106769 : f32
    %3 = vector.broadcast %cst_1 : f32 to vector<8x128xf32>
    %4 = arith.mulf %0, %3 : vector<8x128xf32>
    %5 = math.erf %4 : vector<8x128xf32>
    %cst_2 = arith.constant 1.000000e+00 : f32
    %6 = vector.broadcast %cst_2 : f32 to vector<8x128xf32>
    %7 = arith.addf %6, %5 : vector<8x128xf32>
    %8 = arith.mulf %2, %7 : vector<8x128xf32>
    %c0_3 = arith.constant 0 : index
    %c0_4 = arith.constant 0 : index
    %9 = vector.load %arg2[%c0_3, %c0_4] : memref<8x128xf32, #tpu.memory_space<vmem>>, vector<8x128xf32>
    tpu.vector_store %arg2[%c0_3, %c0_4], %8 {strides = array<i32>} : memref<8x128xf32, #tpu.memory_space<vmem>>, vector<8x128xf32>,
    return
  }
  func.func @transform_0(%arg0: i32) -> (i32, i32) {
    %c0_i32 = arith.constant 0 : i32
    %c0_i32_0 = arith.constant 0 : i32
    %c0_i32_1 = arith.constant 0 : i32
    return %c0_i32, %c0_i32_0 : i32, i32
  }
  func.func @transform_1(%arg0: i32) -> (i32, i32) {
    %c0_i32 = arith.constant 0 : i32
    %c0_i32_0 = arith.constant 0 : i32
    %c0_i32_1 = arith.constant 0 : i32
    return %c0_i32, %c0_i32_0 : i32, i32
  }
}

module attributes {stable_mosaic.version = 11 : i64} {
  func.func @_linear_kernel(%arg0: i32, %arg1: memref<64x48xf32, #tpu.memory_space<vmem>>, %arg2: memref<48x32xbf16, #tpu.memory_space<vmem>>, %arg3: memref<1x32xf32, #tpu.memory_space<vmem>>, %arg4: memref<64x32xf32, #tpu.memory_space<vmem>>) attributes {dimension_semantics = [#tpu.dimension_semantics<arbitrary>], iteration_bounds = array<i64: 1>, scalar_prefetch = 0 : i64, scratch_operands = 0 : i64, tpu.core_type = #tpu.core_type<tc>, window_params = [{pipeline_mode = #tpu.pipeline_mode<synchronous>, transform_indices = @transform_0, window_bounds = array<i64: 64, 48>}, {pipeline_mode = #tpu.pipeline_mode<synchronous>, transform_indices = @transform_1, window_bounds = array<i64: 48, 32>}, {pipeline_mode = #tpu.pipeline_mode<synchronous>, transform_indices = @transform_2, window_bounds = array<i64: 1, 32>}, {pipeline_mode = #tpu.pipeline_mode<synchronous>, transform_indices = @transform_3, window_bounds = array<i64: 64, 32>}]} {
    %c0 = arith.constant 0 : index
    %c0_0 = arith.constant 0 : index
    %0 = vector.load %arg1[%c0, %c0_0] : memref<64x48xf32, #tpu.memory_space<vmem>>, vector<64x48xf32>
    %1 = arith.truncf %0 : vector<64x48xf32> to vector<64x48xbf16>
    %c0_1 = arith.constant 0 : index
    %c0_2 = arith.constant 0 : index
    %2 = vector.load %arg2[%c0_1, %c0_2] : memref<48x32xbf16, #tpu.memory_space<vmem>>, vector<48x32xbf16>
    %cst = arith.constant dense<0.000000e+00> : vector<64x32xf32>
    %3 = tpu.matmul %1, %2, %cst {dimension_numbers = #tpu.dot_dimension_numbers<[1], [0], [0], [1], [0, 0, 1, 1], [], []>} : vector<64x48xbf16>, vector<48x32xbf16>, vector<64x32xf32> -> vector<64x32xf32>
    %c0_3 = arith.constant 0 : index
    %c0_4 = arith.constant 0 : index
    %4 = vector.load %arg3[%c0_3, %c0_4] : memref<1x32xf32, #tpu.memory_space<vmem>>, vector<1x32xf32>
    %5 = vector.broadcast %4 : vector<1x32xf32> to vector<64x32xf32>
    %6 = arith.addf %3, %5 : vector<64x32xf32>
    %c0_5 = arith.constant 0 : index
    %c0_6 = arith.constant 0 : index
    %7 = vector.load %arg4[%c0_5, %c0_6] : memref<64x32xf32, #tpu.memory_space<vmem>>, vector<64x32xf32>
    tpu.vector_store %arg4[%c0_5, %c0_6], %6 {strides = array<i32>} : memref<64x32xf32, #tpu.memory_space<vmem>>, vector<64x32xf32>,
    return
  }
  func.func @transform_0(%arg0: i32) -> (i32, i32) {
    %c0_i32 = arith.constant 0 : i32
    %c0_i32_0 = arith.constant 0 : i32
    %c0_i32_1 = arith.constant 0 : i32
    return %c0_i32, %c0_i32_0 : i32, i32
  }
  func.func @transform_1(%arg0: i32) -> (i32, i32) {
    %c0_i32 = arith.constant 0 : i32
    %c0_i32_0 = arith.constant 0 : i32
    %c0_i32_1 = arith.constant 0 : i32
    return %c0_i32, %c0_i32_0 : i32, i32
  }
  func.func @transform_2(%arg0: i32) -> (i32, i32) {
    %c0_i32 = arith.constant 0 : i32
    %c0_i32_0 = arith.constant 0 : i32
    %c0_i32_1 = arith.constant 0 : i32
    return %c0_i32, %c0_i32_0 : i32, i32
  }
  func.func @transform_3(%arg0: i32) -> (i32, i32) {
    %c0_i32 = arith.constant 0 : i32
    %c0_i32_0 = arith.constant 0 : i32
    %c0_i32_1 = arith.constant 0 : i32
    return %c0_i32, %c0_i32_0 : i32, i32
  }
}

module attributes {stable_mosaic.version = 11 : i64} {
  func.func @_transformer_kernel(%arg0: i32, %arg1: memref<1x40x32xf32, #tpu.memory_space<vmem>>, %arg2: memref<2x1x32xf32, #tpu.memory_space<vmem>>, %arg3: memref<2x1x32xf32, #tpu.memory_space<vmem>>, %arg4: memref<2x32x96xbf16, #tpu.memory_space<vmem>>, %arg5: memref<2x1x96xf32, #tpu.memory_space<vmem>>, %arg6: memref<2x32x32xbf16, #tpu.memory_space<vmem>>, %arg7: memref<2x1x32xf32, #tpu.memory_space<vmem>>, %arg8: memref<2x1x32xf32, #tpu.memory_space<vmem>>, %arg9: memref<2x1x32xf32, #tpu.memory_space<vmem>>, %arg10: memref<2x32x128xbf16, #tpu.memory_space<vmem>>, %arg11: memref<2x1x128xf32, #tpu.memory_space<vmem>>, %arg12: memref<2x128x32xbf16, #tpu.memory_space<vmem>>, %arg13: memref<2x1x32xf32, #tpu.memory_space<vmem>>, %arg14: memref<1x32xf32, #tpu.memory_space<vmem>>, %arg15: memref<1x32xf32, #tpu.memory_space<vmem>>, %arg16: memref<32x10xbf16, #tpu.memory_space<vmem>>, %arg17: memref<1x10xf32, #tpu.memory_space<vmem>>, %arg18: memref<1x1x10xf32, #tpu.memory_space<vmem>>) attributes {dimension_semantics = [#tpu.dimension_semantics<parallel>], iteration_bounds = array<i64: 2>, scalar_prefetch = 0 : i64, scratch_operands = 0 : i64, tpu.core_type = #tpu.core_type<tc>, window_params = [{transform_indices = @transform_0, window_bounds = array<i64: 1, 40, 32>}, {pipeline_mode = #tpu.pipeline_mode<synchronous>, transform_indices = @transform_1, window_bounds = array<i64: 2, 1, 32>}, {pipeline_mode = #tpu.pipeline_mode<synchronous>, transform_indices = @transform_2, window_bounds = array<i64: 2, 1, 32>}, {pipeline_mode = #tpu.pipeline_mode<synchronous>, transform_indices = @transform_3, window_bounds = array<i64: 2, 32, 96>}, {pipeline_mode = #tpu.pipeline_mode<synchronous>, transform_indices = @transform_4, window_bounds = array<i64: 2, 1, 96>}, {pipeline_mode = #tpu.pipeline_mode<synchronous>, transform_indices = @transform_5, window_bounds = array<i64: 2, 32, 32>}, {pipeline_mode = #tpu.pipeline_mode<synchronous>, transform_indices = @transform_6, window_bounds = array<i64: 2, 1, 32>}, {pipeline_mode = #tpu.pipeline_mode<synchronous>, transform_indices = @transform_7, window_bounds = array<i64: 2, 1, 32>}, {pipeline_mode = #tpu.pipeline_mode<synchronous>, transform_indices = @transform_8, window_bounds = array<i64: 2, 1, 32>}, {pipeline_mode = #tpu.pipeline_mode<synchronous>, transform_indices = @transform_9, window_bounds = array<i64: 2, 32, 128>}, {pipeline_mode = #tpu.pipeline_mode<synchronous>, transform_indices = @transform_10, window_bounds = array<i64: 2, 1, 128>}, {pipeline_mode = #tpu.pipeline_mode<synchronous>, transform_indices = @transform_11, window_bounds = array<i64: 2, 128, 32>}, {pipeline_mode = #tpu.pipeline_mode<synchronous>, transform_indices = @transform_12, window_bounds = array<i64: 2, 1, 32>}, {pipeline_mode = #tpu.pipeline_mode<synchronous>, transform_indices = @transform_13, window_bounds = array<i64: 1, 32>}, {pipeline_mode = #tpu.pipeline_mode<synchronous>, transform_indices = @transform_14, window_bounds = array<i64: 1, 32>}, {pipeline_mode = #tpu.pipeline_mode<synchronous>, transform_indices = @transform_15, window_bounds = array<i64: 32, 10>}, {pipeline_mode = #tpu.pipeline_mode<synchronous>, transform_indices = @transform_16, window_bounds = array<i64: 1, 10>}, {transform_indices = @transform_17, window_bounds = array<i64: 1, 1, 10>}]} {
    %c0 = arith.constant 0 : index
    %c0_0 = arith.constant 0 : index
    %c0_1 = arith.constant 0 : index
    %0 = vector.load %arg1[%c0, %c0_0, %c0_1] : memref<1x40x32xf32, #tpu.memory_space<vmem>>, vector<1x40x32xf32>
    %1 = vector.shape_cast %0 : vector<1x40x32xf32> to vector<40x32xf32>
    %2 = tpu.iota {dimensions = array<i32: 1>} : vector<40x40xi32>
    %c33_i32 = arith.constant 33 : i32
    %3 = vector.broadcast %c33_i32 : i32 to vector<40x40xi32>
    %4 = arith.cmpi slt, %2, %3 : vector<40x40xi32>
    %c0_2 = arith.constant 0 : index
    %c0_3 = arith.constant 0 : index
    %c0_4 = arith.constant 0 : index
    %5 = vector.load %arg2[%c0_2, %c0_3, %c0_4] : memref<2x1x32xf32, #tpu.memory_space<vmem>>, vector<1x1x32xf32>
    %6 = vector.shape_cast %5 : vector<1x1x32xf32> to vector<1x32xf32>
    %c0_5 = arith.constant 0 : index
    %c0_6 = arith.constant 0 : index
    %c0_7 = arith.constant 0 : index
    %7 = vector.load %arg3[%c0_5, %c0_6, %c0_7] : memref<2x1x32xf32, #tpu.memory_space<vmem>>, vector<1x1x32xf32>
    %8 = vector.shape_cast %7 : vector<1x1x32xf32> to vector<1x32xf32>
    %cst = arith.constant dense<0.000000e+00> : vector<40xf32>
    %9 = vector.multi_reduction <add>, %1, %cst [1] : vector<40x32xf32> to vector<40xf32>
    %10 = vector.shape_cast %9 : vector<40xf32> to vector<40x1xf32>
    %cst_8 = arith.constant 3.200000e+01 : f32
    %11 = vector.broadcast %cst_8 : f32 to vector<40x1xf32>
    %12 = arith.divf %10, %11 : vector<40x1xf32>
    %13 = vector.broadcast %12 : vector<40x1xf32> to vector<40x32xf32>
    %14 = arith.subf %1, %13 : vector<40x32xf32>
    %15 = arith.mulf %14, %14 : vector<40x32xf32>
    %cst_9 = arith.constant dense<0.000000e+00> : vector<40xf32>
    %16 = vector.multi_reduction <add>, %15, %cst_9 [1] : vector<40x32xf32> to vector<40xf32>
    %17 = vector.shape_cast %16 : vector<40xf32> to vector<40x1xf32>
    %cst_10 = arith.constant 3.200000e+01 : f32
    %18 = vector.broadcast %cst_10 : f32 to vector<40x1xf32>
    %19 = arith.divf %17, %18 : vector<40x1xf32>
    %cst_11 = arith.constant 9.99999997E-7 : f32
    %20 = vector.broadcast %cst_11 : f32 to vector<40x1xf32>
    %21 = arith.addf %19, %20 : vector<40x1xf32>
    %22 = math.rsqrt %21 : vector<40x1xf32>
    %23 = vector.broadcast %22 : vector<40x1xf32> to vector<40x32xf32>
    %24 = arith.mulf %14, %23 : vector<40x32xf32>
    %25 = vector.broadcast %6 : vector<1x32xf32> to vector<40x32xf32>
    %26 = arith.mulf %24, %25 : vector<40x32xf32>
    %27 = vector.broadcast %8 : vector<1x32xf32> to vector<40x32xf32>
    %28 = arith.addf %26, %27 : vector<40x32xf32>
    %29 = arith.truncf %28 : vector<40x32xf32> to vector<40x32xbf16>
    %c0_12 = arith.constant 0 : index
    %c0_13 = arith.constant 0 : index
    %c0_14 = arith.constant 0 : index
    %30 = vector.load %arg4[%c0_12, %c0_13, %c0_14] : memref<2x32x96xbf16, #tpu.memory_space<vmem>>, vector<1x32x96xbf16>
    %31 = vector.shape_cast %30 : vector<1x32x96xbf16> to vector<32x96xbf16>
    %cst_15 = arith.constant dense<0.000000e+00> : vector<40x96xf32>
    %32 = tpu.matmul %29, %31, %cst_15 {dimension_numbers = #tpu.dot_dimension_numbers<[1], [0], [0], [1], [0, 0, 1, 1], [], []>} : vector<40x32xbf16>, vector<32x96xbf16>, vector<40x96xf32> -> vector<40x96xf32>
    %c0_16 = arith.constant 0 : index
    %c0_17 = arith.constant 0 : index
    %c0_18 = arith.constant 0 : index
    %33 = vector.load %arg5[%c0_16, %c0_17, %c0_18] : memref<2x1x96xf32, #tpu.memory_space<vmem>>, vector<1x1x96xf32>
    %34 = vector.shape_cast %33 : vector<1x1x96xf32> to vector<1x96xf32>
    %35 = vector.broadcast %34 : vector<1x96xf32> to vector<40x96xf32>
    %36 = arith.addf %32, %35 : vector<40x96xf32>
    %37 = vector.extract_strided_slice %36 {offsets = [0, 0], sizes = [40, 32], strides = [1, 1]} : vector<40x96xf32> to vector<40x32xf32>
    %cst_19 = arith.constant 0.353553385 : f32
    %38 = vector.broadcast %cst_19 : f32 to vector<40x32xf32>
    %39 = arith.mulf %37, %38 : vector<40x32xf32>
    %40 = arith.truncf %39 : vector<40x32xf32> to vector<40x32xbf16>
    %41 = vector.extract_strided_slice %36 {offsets = [0, 32], sizes = [40, 32], strides = [1, 1]} : vector<40x96xf32> to vector<40x32xf32>
    %42 = arith.truncf %41 : vector<40x32xf32> to vector<40x32xbf16>
    %43 = vector.extract_strided_slice %36 {offsets = [0, 64], sizes = [40, 32], strides = [1, 1]} : vector<40x96xf32> to vector<40x32xf32>
    %44 = arith.truncf %43 : vector<40x32xf32> to vector<40x32xbf16>
    %45 = vector.extract_strided_slice %40 {offsets = [0, 0], sizes = [40, 8], strides = [1, 1]} : vector<40x32xbf16> to vector<40x8xbf16>
    %46 = vector.extract_strided_slice %42 {offsets = [0, 0], sizes = [40, 8], strides = [1, 1]} : vector<40x32xbf16> to vector<40x8xbf16>
    %cst_20 = arith.constant dense<0.000000e+00> : vector<40x40xf32>
    %47 = tpu.matmul %45, %46, %cst_20 {dimension_numbers = #tpu.dot_dimension_numbers<[1], [1], [0], [0], [0, 0, 1, 0], [], []>} : vector<40x8xbf16>, vector<40x8xbf16>, vector<40x40xf32> -> vector<40x40xf32>
    %cst_21 = arith.constant -1.000000e+30 : f32
    %48 = vector.broadcast %cst_21 : f32 to vector<40x40xf32>
    %49 = arith.select %4, %47, %48 : vector<40x40xi1>, vector<40x40xf32>
    %cst_22 = arith.constant dense<0xFF800000> : vector<40xf32>
    %50 = vector.multi_reduction <maximumf>, %49, %cst_22 [1] : vector<40x40xf32> to vector<40xf32>
    %51 = vector.shape_cast %50 : vector<40xf32> to vector<40x1xf32>
    %52 = vector.broadcast %51 : vector<40x1xf32> to vector<40x40xf32>
    %53 = arith.subf %49, %52 : vector<40x40xf32>
    %54 = math.exp %53 : vector<40x40xf32>
    %cst_23 = arith.constant dense<0.000000e+00> : vector<40xf32>
    %55 = vector.multi_reduction <add>, %54, %cst_23 [1] : vector<40x40xf32> to vector<40xf32>
    %56 = vector.shape_cast %55 : vector<40xf32> to vector<40x1xf32>
    %57 = tpu.reciprocal %56 {approx = true} : vector<40x1xf32> -> vector<40x1xf32>
    %58 = vector.broadcast %57 : vector<40x1xf32> to vector<40x40xf32>
    %59 = arith.mulf %54, %58 : vector<40x40xf32>
    %60 = arith.truncf %59 : vector<40x40xf32> to vector<40x40xbf16>
    %61 = vector.extract_strided_slice %44 {offsets = [0, 0], sizes = [40, 8], strides = [1, 1]} : vector<40x32xbf16> to vector<40x8xbf16>
    %cst_24 = arith.constant dense<0.000000e+00> : vector<40x8xf32>
    %62 = tpu.matmul %60, %61, %cst_24 {dimension_numbers = #tpu.dot_dimension_numbers<[1], [0], [0], [1], [0, 0, 1, 1], [], []>} : vector<40x40xbf16>, vector<40x8xbf16>, vector<40x8xf32> -> vector<40x8xf32>
    %63 = vector.extract_strided_slice %40 {offsets = [0, 8], sizes = [40, 8], strides = [1, 1]} : vector<40x32xbf16> to vector<40x8xbf16>
    %64 = vector.extract_strided_slice %42 {offsets = [0, 8], sizes = [40, 8], strides = [1, 1]} : vector<40x32xbf16> to vector<40x8xbf16>
    %cst_25 = arith.constant dense<0.000000e+00> : vector<40x40xf32>
    %65 = tpu.matmul %63, %64, %cst_25 {dimension_numbers = #tpu.dot_dimension_numbers<[1], [1], [0], [0], [0, 0, 1, 0], [], []>} : vector<40x8xbf16>, vector<40x8xbf16>, vector<40x40xf32> -> vector<40x40xf32>
    %cst_26 = arith.constant -1.000000e+30 : f32
    %66 = vector.broadcast %cst_26 : f32 to vector<40x40xf32>
    %67 = arith.select %4, %65, %66 : vector<40x40xi1>, vector<40x40xf32>
    %cst_27 = arith.constant dense<0xFF800000> : vector<40xf32>
    %68 = vector.multi_reduction <maximumf>, %67, %cst_27 [1] : vector<40x40xf32> to vector<40xf32>
    %69 = vector.shape_cast %68 : vector<40xf32> to vector<40x1xf32>
    %70 = vector.broadcast %69 : vector<40x1xf32> to vector<40x40xf32>
    %71 = arith.subf %67, %70 : vector<40x40xf32>
    %72 = math.exp %71 : vector<40x40xf32>
    %cst_28 = arith.constant dense<0.000000e+00> : vector<40xf32>
    %73 = vector.multi_reduction <add>, %72, %cst_28 [1] : vector<40x40xf32> to vector<40xf32>
    %74 = vector.shape_cast %73 : vector<40xf32> to vector<40x1xf32>
    %75 = tpu.reciprocal %74 {approx = true} : vector<40x1xf32> -> vector<40x1xf32>
    %76 = vector.broadcast %75 : vector<40x1xf32> to vector<40x40xf32>
    %77 = arith.mulf %72, %76 : vector<40x40xf32>
    %78 = arith.truncf %77 : vector<40x40xf32> to vector<40x40xbf16>
    %79 = vector.extract_strided_slice %44 {offsets = [0, 8], sizes = [40, 8], strides = [1, 1]} : vector<40x32xbf16> to vector<40x8xbf16>
    %cst_29 = arith.constant dense<0.000000e+00> : vector<40x8xf32>
    %80 = tpu.matmul %78, %79, %cst_29 {dimension_numbers = #tpu.dot_dimension_numbers<[1], [0], [0], [1], [0, 0, 1, 1], [], []>} : vector<40x40xbf16>, vector<40x8xbf16>, vector<40x8xf32> -> vector<40x8xf32>
    %81 = vector.extract_strided_slice %40 {offsets = [0, 16], sizes = [40, 8], strides = [1, 1]} : vector<40x32xbf16> to vector<40x8xbf16>
    %82 = vector.extract_strided_slice %42 {offsets = [0, 16], sizes = [40, 8], strides = [1, 1]} : vector<40x32xbf16> to vector<40x8xbf16>
    %cst_30 = arith.constant dense<0.000000e+00> : vector<40x40xf32>
    %83 = tpu.matmul %81, %82, %cst_30 {dimension_numbers = #tpu.dot_dimension_numbers<[1], [1], [0], [0], [0, 0, 1, 0], [], []>} : vector<40x8xbf16>, vector<40x8xbf16>, vector<40x40xf32> -> vector<40x40xf32>
    %cst_31 = arith.constant -1.000000e+30 : f32
    %84 = vector.broadcast %cst_31 : f32 to vector<40x40xf32>
    %85 = arith.select %4, %83, %84 : vector<40x40xi1>, vector<40x40xf32>
    %cst_32 = arith.constant dense<0xFF800000> : vector<40xf32>
    %86 = vector.multi_reduction <maximumf>, %85, %cst_32 [1] : vector<40x40xf32> to vector<40xf32>
    %87 = vector.shape_cast %86 : vector<40xf32> to vector<40x1xf32>
    %88 = vector.broadcast %87 : vector<40x1xf32> to vector<40x40xf32>
    %89 = arith.subf %85, %88 : vector<40x40xf32>
    %90 = math.exp %89 : vector<40x40xf32>
    %cst_33 = arith.constant dense<0.000000e+00> : vector<40xf32>
    %91 = vector.multi_reduction <add>, %90, %cst_33 [1] : vector<40x40xf32> to vector<40xf32>
    %92 = vector.shape_cast %91 : vector<40xf32> to vector<40x1xf32>
    %93 = tpu.reciprocal %92 {approx = true} : vector<40x1xf32> -> vector<40x1xf32>
    %94 = vector.broadcast %93 : vector<40x1xf32> to vector<40x40xf32>
    %95 = arith.mulf %90, %94 : vector<40x40xf32>
    %96 = arith.truncf %95 : vector<40x40xf32> to vector<40x40xbf16>
    %97 = vector.extract_strided_slice %44 {offsets = [0, 16], sizes = [40, 8], strides = [1, 1]} : vector<40x32xbf16> to vector<40x8xbf16>
    %cst_34 = arith.constant dense<0.000000e+00> : vector<40x8xf32>
    %98 = tpu.matmul %96, %97, %cst_34 {dimension_numbers = #tpu.dot_dimension_numbers<[1], [0], [0], [1], [0, 0, 1, 1], [], []>} : vector<40x40xbf16>, vector<40x8xbf16>, vector<40x8xf32> -> vector<40x8xf32>
    %99 = vector.extract_strided_slice %40 {offsets = [0, 24], sizes = [40, 8], strides = [1, 1]} : vector<40x32xbf16> to vector<40x8xbf16>
    %100 = vector.extract_strided_slice %42 {offsets = [0, 24], sizes = [40, 8], strides = [1, 1]} : vector<40x32xbf16> to vector<40x8xbf16>
    %cst_35 = arith.constant dense<0.000000e+00> : vector<40x40xf32>
    %101 = tpu.matmul %99, %100, %cst_35 {dimension_numbers = #tpu.dot_dimension_numbers<[1], [1], [0], [0], [0, 0, 1, 0], [], []>} : vector<40x8xbf16>, vector<40x8xbf16>, vector<40x40xf32> -> vector<40x40xf32>
    %cst_36 = arith.constant -1.000000e+30 : f32
    %102 = vector.broadcast %cst_36 : f32 to vector<40x40xf32>
    %103 = arith.select %4, %101, %102 : vector<40x40xi1>, vector<40x40xf32>
    %cst_37 = arith.constant dense<0xFF800000> : vector<40xf32>
    %104 = vector.multi_reduction <maximumf>, %103, %cst_37 [1] : vector<40x40xf32> to vector<40xf32>
    %105 = vector.shape_cast %104 : vector<40xf32> to vector<40x1xf32>
    %106 = vector.broadcast %105 : vector<40x1xf32> to vector<40x40xf32>
    %107 = arith.subf %103, %106 : vector<40x40xf32>
    %108 = math.exp %107 : vector<40x40xf32>
    %cst_38 = arith.constant dense<0.000000e+00> : vector<40xf32>
    %109 = vector.multi_reduction <add>, %108, %cst_38 [1] : vector<40x40xf32> to vector<40xf32>
    %110 = vector.shape_cast %109 : vector<40xf32> to vector<40x1xf32>
    %111 = tpu.reciprocal %110 {approx = true} : vector<40x1xf32> -> vector<40x1xf32>
    %112 = vector.broadcast %111 : vector<40x1xf32> to vector<40x40xf32>
    %113 = arith.mulf %108, %112 : vector<40x40xf32>
    %114 = arith.truncf %113 : vector<40x40xf32> to vector<40x40xbf16>
    %115 = vector.extract_strided_slice %44 {offsets = [0, 24], sizes = [40, 8], strides = [1, 1]} : vector<40x32xbf16> to vector<40x8xbf16>
    %cst_39 = arith.constant dense<0.000000e+00> : vector<40x8xf32>
    %116 = tpu.matmul %114, %115, %cst_39 {dimension_numbers = #tpu.dot_dimension_numbers<[1], [0], [0], [1], [0, 0, 1, 1], [], []>} : vector<40x40xbf16>, vector<40x8xbf16>, vector<40x8xf32> -> vector<40x8xf32>
    %117 = tpu.concatenate %62, %80, %98, %116 in 1 : vector<40x8xf32>, vector<40x8xf32>, vector<40x8xf32>, vector<40x8xf32> -> vector<40x32xf32>
    %118 = arith.truncf %117 : vector<40x32xf32> to vector<40x32xbf16>
    %c0_40 = arith.constant 0 : index
    %c0_41 = arith.constant 0 : index
    %c0_42 = arith.constant 0 : index
    %119 = vector.load %arg6[%c0_40, %c0_41, %c0_42] : memref<2x32x32xbf16, #tpu.memory_space<vmem>>, vector<1x32x32xbf16>
    %120 = vector.shape_cast %119 : vector<1x32x32xbf16> to vector<32x32xbf16>
    %cst_43 = arith.constant dense<0.000000e+00> : vector<40x32xf32>
    %121 = tpu.matmul %118, %120, %cst_43 {dimension_numbers = #tpu.dot_dimension_numbers<[1], [0], [0], [1], [0, 0, 1, 1], [], []>} : vector<40x32xbf16>, vector<32x32xbf16>, vector<40x32xf32> -> vector<40x32xf32>
    %c0_44 = arith.constant 0 : index
    %c0_45 = arith.constant 0 : index
    %c0_46 = arith.constant 0 : index
    %122 = vector.load %arg7[%c0_44, %c0_45, %c0_46] : memref<2x1x32xf32, #tpu.memory_space<vmem>>, vector<1x1x32xf32>
    %123 = vector.shape_cast %122 : vector<1x1x32xf32> to vector<1x32xf32>
    %124 = vector.broadcast %123 : vector<1x32xf32> to vector<40x32xf32>
    %125 = arith.addf %121, %124 : vector<40x32xf32>
    %126 = arith.addf %1, %125 : vector<40x32xf32>
    %c0_47 = arith.constant 0 : index
    %c0_48 = arith.constant 0 : index
    %c0_49 = arith.constant 0 : index
    %127 = vector.load %arg8[%c0_47, %c0_48, %c0_49] : memref<2x1x32xf32, #tpu.memory_space<vmem>>, vector<1x1x32xf32>
    %128 = vector.shape_cast %127 : vector<1x1x32xf32> to vector<1x32xf32>
    %c0_50 = arith.constant 0 : index
    %c0_51 = arith.constant 0 : index
    %c0_52 = arith.constant 0 : index
    %129 = vector.load %arg9[%c0_50, %c0_51, %c0_52] : memref<2x1x32xf32, #tpu.memory_space<vmem>>, vector<1x1x32xf32>
    %130 = vector.shape_cast %129 : vector<1x1x32xf32> to vector<1x32xf32>
    %cst_53 = arith.constant dense<0.000000e+00> : vector<40xf32>
    %131 = vector.multi_reduction <add>, %126, %cst_53 [1] : vector<40x32xf32> to vector<40xf32>
    %132 = vector.shape_cast %131 : vector<40xf32> to vector<40x1xf32>
    %cst_54 = arith.constant 3.200000e+01 : f32
    %133 = vector.broadcast %cst_54 : f32 to vector<40x1xf32>
    %134 = arith.divf %132, %133 : vector<40x1xf32>
    %135 = vector.broadcast %134 : vector<40x1xf32> to vector<40x32xf32>
    %136 = arith.subf %126, %135 : vector<40x32xf32>
    %137 = arith.mulf %136, %136 : vector<40x32xf32>
    %cst_55 = arith.constant dense<0.000000e+00> : vector<40xf32>
    %138 = vector.multi_reduction <add>, %137, %cst_55 [1] : vector<40x32xf32> to vector<40xf32>
    %139 = vector.shape_cast %138 : vector<40xf32> to vector<40x1xf32>
    %cst_56 = arith.constant 3.200000e+01 : f32
    %140 = vector.broadcast %cst_56 : f32 to vector<40x1xf32>
    %141 = arith.divf %139, %140 : vector<40x1xf32>
    %cst_57 = arith.constant 9.99999997E-7 : f32
    %142 = vector.broadcast %cst_57 : f32 to vector<40x1xf32>
    %143 = arith.addf %141, %142 : vector<40x1xf32>
    %144 = math.rsqrt %143 : vector<40x1xf32>
    %145 = vector.broadcast %144 : vector<40x1xf32> to vector<40x32xf32>
    %146 = arith.mulf %136, %145 : vector<40x32xf32>
    %147 = vector.broadcast %128 : vector<1x32xf32> to vector<40x32xf32>
    %148 = arith.mulf %146, %147 : vector<40x32xf32>
    %149 = vector.broadcast %130 : vector<1x32xf32> to vector<40x32xf32>
    %150 = arith.addf %148, %149 : vector<40x32xf32>
    %151 = arith.truncf %150 : vector<40x32xf32> to vector<40x32xbf16>
    %c0_58 = arith.constant 0 : index
    %c0_59 = arith.constant 0 : index
    %c0_60 = arith.constant 0 : index
    %152 = vector.load %arg10[%c0_58, %c0_59, %c0_60] : memref<2x32x128xbf16, #tpu.memory_space<vmem>>, vector<1x32x128xbf16>
    %153 = vector.shape_cast %152 : vector<1x32x128xbf16> to vector<32x128xbf16>
    %cst_61 = arith.constant dense<0.000000e+00> : vector<40x128xf32>
    %154 = tpu.matmul %151, %153, %cst_61 {dimension_numbers = #tpu.dot_dimension_numbers<[1], [0], [0], [1], [0, 0, 1, 1], [], []>} : vector<40x32xbf16>, vector<32x128xbf16>, vector<40x128xf32> -> vector<40x128xf32>
    %c0_62 = arith.constant 0 : index
    %c0_63 = arith.constant 0 : index
    %c0_64 = arith.constant 0 : index
    %155 = vector.load %arg11[%c0_62, %c0_63, %c0_64] : memref<2x1x128xf32, #tpu.memory_space<vmem>>, vector<1x1x128xf32>
    %156 = vector.shape_cast %155 : vector<1x1x128xf32> to vector<1x128xf32>
    %157 = vector.broadcast %156 : vector<1x128xf32> to vector<40x128xf32>
    %158 = arith.addf %154, %157 : vector<40x128xf32>
    %cst_65 = arith.constant 5.000000e-01 : f32
    %159 = vector.broadcast %cst_65 : f32 to vector<40x128xf32>
    %160 = arith.mulf %159, %158 : vector<40x128xf32>
    %161 = arith.mulf %158, %158 : vector<40x128xf32>
    %162 = arith.mulf %161, %158 : vector<40x128xf32>
    %cst_66 = arith.constant 4.471500e-02 : f32
    %163 = vector.broadcast %cst_66 : f32 to vector<40x128xf32>
    %164 = arith.mulf %163, %162 : vector<40x128xf32>
    %165 = arith.addf %158, %164 : vector<40x128xf32>
    %cst_67 = arith.constant 0.797884583 : f32
    %166 = vector.broadcast %cst_67 : f32 to vector<40x128xf32>
    %167 = arith.mulf %166, %165 : vector<40x128xf32>
    %168 = math.tanh %167 : vector<40x128xf32>
    %cst_68 = arith.constant 1.000000e+00 : f32
    %169 = vector.broadcast %cst_68 : f32 to vector<40x128xf32>
    %170 = arith.addf %169, %168 : vector<40x128xf32>
    %171 = arith.mulf %160, %170 : vector<40x128xf32>
    %172 = arith.truncf %171 : vector<40x128xf32> to vector<40x128xbf16>
    %c0_69 = arith.constant 0 : index
    %c0_70 = arith.constant 0 : index
    %c0_71 = arith.constant 0 : index
    %173 = vector.load %arg12[%c0_69, %c0_70, %c0_71] : memref<2x128x32xbf16, #tpu.memory_space<vmem>>, vector<1x128x32xbf16>
    %174 = vector.shape_cast %173 : vector<1x128x32xbf16> to vector<128x32xbf16>
    %cst_72 = arith.constant dense<0.000000e+00> : vector<40x32xf32>
    %175 = tpu.matmul %172, %174, %cst_72 {dimension_numbers = #tpu.dot_dimension_numbers<[1], [0], [0], [1], [0, 0, 1, 1], [], []>} : vector<40x128xbf16>, vector<128x32xbf16>, vector<40x32xf32> -> vector<40x32xf32>
    %c0_73 = arith.constant 0 : index
    %c0_74 = arith.constant 0 : index
    %c0_75 = arith.constant 0 : index
    %176 = vector.load %arg13[%c0_73, %c0_74, %c0_75] : memref<2x1x32xf32, #tpu.memory_space<vmem>>, vector<1x1x32xf32>
    %177 = vector.shape_cast %176 : vector<1x1x32xf32> to vector<1x32xf32>
    %178 = vector.broadcast %177 : vector<1x32xf32> to vector<40x32xf32>
    %179 = arith.addf %175, %178 : vector<40x32xf32>
    %180 = arith.addf %126, %179 : vector<40x32xf32>
    %c1 = arith.constant 1 : index
    %c0_76 = arith.constant 0 : index
    %c0_77 = arith.constant 0 : index
    %181 = vector.load %arg2[%c1, %c0_76, %c0_77] : memref<2x1x32xf32, #tpu.memory_space<vmem>>, vector<1x1x32xf32>
    %182 = vector.shape_cast %181 : vector<1x1x32xf32> to vector<1x32xf32>
    %c1_78 = arith.constant 1 : index
    %c0_79 = arith.constant 0 : index
    %c0_80 = arith.constant 0 : index
    %183 = vector.load %arg3[%c1_78, %c0_79, %c0_80] : memref<2x1x32xf32, #tpu.memory_space<vmem>>, vector<1x1x32xf32>
    %184 = vector.shape_cast %183 : vector<1x1x32xf32> to vector<1x32xf32>
    %cst_81 = arith.constant dense<0.000000e+00> : vector<40xf32>
    %185 = vector.multi_reduction <add>, %180, %cst_81 [1] : vector<40x32xf32> to vector<40xf32>
    %186 = vector.shape_cast %185 : vector<40xf32> to vector<40x1xf32>
    %cst_82 = arith.constant 3.200000e+01 : f32
    %187 = vector.broadcast %cst_82 : f32 to vector<40x1xf32>
    %188 = arith.divf %186, %187 : vector<40x1xf32>
    %189 = vector.broadcast %188 : vector<40x1xf32> to vector<40x32xf32>
    %190 = arith.subf %180, %189 : vector<40x32xf32>
    %191 = arith.mulf %190, %190 : vector<40x32xf32>
    %cst_83 = arith.constant dense<0.000000e+00> : vector<40xf32>
    %192 = vector.multi_reduction <add>, %191, %cst_83 [1] : vector<40x32xf32> to vector<40xf32>
    %193 = vector.shape_cast %192 : vector<40xf32> to vector<40x1xf32>
    %cst_84 = arith.constant 3.200000e+01 : f32
    %194 = vector.broadcast %cst_84 : f32 to vector<40x1xf32>
    %195 = arith.divf %193, %194 : vector<40x1xf32>
    %cst_85 = arith.constant 9.99999997E-7 : f32
    %196 = vector.broadcast %cst_85 : f32 to vector<40x1xf32>
    %197 = arith.addf %195, %196 : vector<40x1xf32>
    %198 = math.rsqrt %197 : vector<40x1xf32>
    %199 = vector.broadcast %198 : vector<40x1xf32> to vector<40x32xf32>
    %200 = arith.mulf %190, %199 : vector<40x32xf32>
    %201 = vector.broadcast %182 : vector<1x32xf32> to vector<40x32xf32>
    %202 = arith.mulf %200, %201 : vector<40x32xf32>
    %203 = vector.broadcast %184 : vector<1x32xf32> to vector<40x32xf32>
    %204 = arith.addf %202, %203 : vector<40x32xf32>
    %205 = arith.truncf %204 : vector<40x32xf32> to vector<40x32xbf16>
    %c1_86 = arith.constant 1 : index
    %c0_87 = arith.constant 0 : index
    %c0_88 = arith.constant 0 : index
    %206 = vector.load %arg4[%c1_86, %c0_87, %c0_88] : memref<2x32x96xbf16, #tpu.memory_space<vmem>>, vector<1x32x96xbf16>
    %207 = vector.shape_cast %206 : vector<1x32x96xbf16> to vector<32x96xbf16>
    %cst_89 = arith.constant dense<0.000000e+00> : vector<40x96xf32>
    %208 = tpu.matmul %205, %207, %cst_89 {dimension_numbers = #tpu.dot_dimension_numbers<[1], [0], [0], [1], [0, 0, 1, 1], [], []>} : vector<40x32xbf16>, vector<32x96xbf16>, vector<40x96xf32> -> vector<40x96xf32>
    %c1_90 = arith.constant 1 : index
    %c0_91 = arith.constant 0 : index
    %c0_92 = arith.constant 0 : index
    %209 = vector.load %arg5[%c1_90, %c0_91, %c0_92] : memref<2x1x96xf32, #tpu.memory_space<vmem>>, vector<1x1x96xf32>
    %210 = vector.shape_cast %209 : vector<1x1x96xf32> to vector<1x96xf32>
    %211 = vector.broadcast %210 : vector<1x96xf32> to vector<40x96xf32>
    %212 = arith.addf %208, %211 : vector<40x96xf32>
    %213 = vector.extract_strided_slice %212 {offsets = [0, 0], sizes = [40, 32], strides = [1, 1]} : vector<40x96xf32> to vector<40x32xf32>
    %cst_93 = arith.constant 0.353553385 : f32
    %214 = vector.broadcast %cst_93 : f32 to vector<40x32xf32>
    %215 = arith.mulf %213, %214 : vector<40x32xf32>
    %216 = arith.truncf %215 : vector<40x32xf32> to vector<40x32xbf16>
    %217 = vector.extract_strided_slice %212 {offsets = [0, 32], sizes = [40, 32], strides = [1, 1]} : vector<40x96xf32> to vector<40x32xf32>
    %218 = arith.truncf %217 : vector<40x32xf32> to vector<40x32xbf16>
    %219 = vector.extract_strided_slice %212 {offsets = [0, 64], sizes = [40, 32], strides = [1, 1]} : vector<40x96xf32> to vector<40x32xf32>
    %220 = arith.truncf %219 : vector<40x32xf32> to vector<40x32xbf16>
    %221 = vector.extract_strided_slice %216 {offsets = [0, 0], sizes = [40, 8], strides = [1, 1]} : vector<40x32xbf16> to vector<40x8xbf16>
    %222 = vector.extract_strided_slice %218 {offsets = [0, 0], sizes = [40, 8], strides = [1, 1]} : vector<40x32xbf16> to vector<40x8xbf16>
    %cst_94 = arith.constant dense<0.000000e+00> : vector<40x40xf32>
    %223 = tpu.matmul %221, %222, %cst_94 {dimension_numbers = #tpu.dot_dimension_numbers<[1], [1], [0], [0], [0, 0, 1, 0], [], []>} : vector<40x8xbf16>, vector<40x8xbf16>, vector<40x40xf32> -> vector<40x40xf32>
    %cst_95 = arith.constant -1.000000e+30 : f32
    %224 = vector.broadcast %cst_95 : f32 to vector<40x40xf32>
    %225 = arith.select %4, %223, %224 : vector<40x40xi1>, vector<40x40xf32>
    %cst_96 = arith.constant dense<0xFF800000> : vector<40xf32>
    %226 = vector.multi_reduction <maximumf>, %225, %cst_96 [1] : vector<40x40xf32> to vector<40xf32>
    %227 = vector.shape_cast %226 : vector<40xf32> to vector<40x1xf32>
    %228 = vector.broadcast %227 : vector<40x1xf32> to vector<40x40xf32>
    %229 = arith.subf %225, %228 : vector<40x40xf32>
    %230 = math.exp %229 : vector<40x40xf32>
    %cst_97 = arith.constant dense<0.000000e+00> : vector<40xf32>
    %231 = vector.multi_reduction <add>, %230, %cst_97 [1] : vector<40x40xf32> to vector<40xf32>
    %232 = vector.shape_cast %231 : vector<40xf32> to vector<40x1xf32>
    %233 = tpu.reciprocal %232 {approx = true} : vector<40x1xf32> -> vector<40x1xf32>
    %234 = vector.broadcast %233 : vector<40x1xf32> to vector<40x40xf32>
    %235 = arith.mulf %230, %234 : vector<40x40xf32>
    %236 = arith.truncf %235 : vector<40x40xf32> to vector<40x40xbf16>
    %237 = vector.extract_strided_slice %220 {offsets = [0, 0], sizes = [40, 8], strides = [1, 1]} : vector<40x32xbf16> to vector<40x8xbf16>
    %cst_98 = arith.constant dense<0.000000e+00> : vector<40x8xf32>
    %238 = tpu.matmul %236, %237, %cst_98 {dimension_numbers = #tpu.dot_dimension_numbers<[1], [0], [0], [1], [0, 0, 1, 1], [], []>} : vector<40x40xbf16>, vector<40x8xbf16>, vector<40x8xf32> -> vector<40x8xf32>
    %239 = vector.extract_strided_slice %216 {offsets = [0, 8], sizes = [40, 8], strides = [1, 1]} : vector<40x32xbf16> to vector<40x8xbf16>
    %240 = vector.extract_strided_slice %218 {offsets = [0, 8], sizes = [40, 8], strides = [1, 1]} : vector<40x32xbf16> to vector<40x8xbf16>
    %cst_99 = arith.constant dense<0.000000e+00> : vector<40x40xf32>
    %241 = tpu.matmul %239, %240, %cst_99 {dimension_numbers = #tpu.dot_dimension_numbers<[1], [1], [0], [0], [0, 0, 1, 0], [], []>} : vector<40x8xbf16>, vector<40x8xbf16>, vector<40x40xf32> -> vector<40x40xf32>
    %cst_100 = arith.constant -1.000000e+30 : f32
    %242 = vector.broadcast %cst_100 : f32 to vector<40x40xf32>
    %243 = arith.select %4, %241, %242 : vector<40x40xi1>, vector<40x40xf32>
    %cst_101 = arith.constant dense<0xFF800000> : vector<40xf32>
    %244 = vector.multi_reduction <maximumf>, %243, %cst_101 [1] : vector<40x40xf32> to vector<40xf32>
    %245 = vector.shape_cast %244 : vector<40xf32> to vector<40x1xf32>
    %246 = vector.broadcast %245 : vector<40x1xf32> to vector<40x40xf32>
    %247 = arith.subf %243, %246 : vector<40x40xf32>
    %248 = math.exp %247 : vector<40x40xf32>
    %cst_102 = arith.constant dense<0.000000e+00> : vector<40xf32>
    %249 = vector.multi_reduction <add>, %248, %cst_102 [1] : vector<40x40xf32> to vector<40xf32>
    %250 = vector.shape_cast %249 : vector<40xf32> to vector<40x1xf32>
    %251 = tpu.reciprocal %250 {approx = true} : vector<40x1xf32> -> vector<40x1xf32>
    %252 = vector.broadcast %251 : vector<40x1xf32> to vector<40x40xf32>
    %253 = arith.mulf %248, %252 : vector<40x40xf32>
    %254 = arith.truncf %253 : vector<40x40xf32> to vector<40x40xbf16>
    %255 = vector.extract_strided_slice %220 {offsets = [0, 8], sizes = [40, 8], strides = [1, 1]} : vector<40x32xbf16> to vector<40x8xbf16>
    %cst_103 = arith.constant dense<0.000000e+00> : vector<40x8xf32>
    %256 = tpu.matmul %254, %255, %cst_103 {dimension_numbers = #tpu.dot_dimension_numbers<[1], [0], [0], [1], [0, 0, 1, 1], [], []>} : vector<40x40xbf16>, vector<40x8xbf16>, vector<40x8xf32> -> vector<40x8xf32>
    %257 = vector.extract_strided_slice %216 {offsets = [0, 16], sizes = [40, 8], strides = [1, 1]} : vector<40x32xbf16> to vector<40x8xbf16>
    %258 = vector.extract_strided_slice %218 {offsets = [0, 16], sizes = [40, 8], strides = [1, 1]} : vector<40x32xbf16> to vector<40x8xbf16>
    %cst_104 = arith.constant dense<0.000000e+00> : vector<40x40xf32>
    %259 = tpu.matmul %257, %258, %cst_104 {dimension_numbers = #tpu.dot_dimension_numbers<[1], [1], [0], [0], [0, 0, 1, 0], [], []>} : vector<40x8xbf16>, vector<40x8xbf16>, vector<40x40xf32> -> vector<40x40xf32>
    %cst_105 = arith.constant -1.000000e+30 : f32
    %260 = vector.broadcast %cst_105 : f32 to vector<40x40xf32>
    %261 = arith.select %4, %259, %260 : vector<40x40xi1>, vector<40x40xf32>
    %cst_106 = arith.constant dense<0xFF800000> : vector<40xf32>
    %262 = vector.multi_reduction <maximumf>, %261, %cst_106 [1] : vector<40x40xf32> to vector<40xf32>
    %263 = vector.shape_cast %262 : vector<40xf32> to vector<40x1xf32>
    %264 = vector.broadcast %263 : vector<40x1xf32> to vector<40x40xf32>
    %265 = arith.subf %261, %264 : vector<40x40xf32>
    %266 = math.exp %265 : vector<40x40xf32>
    %cst_107 = arith.constant dense<0.000000e+00> : vector<40xf32>
    %267 = vector.multi_reduction <add>, %266, %cst_107 [1] : vector<40x40xf32> to vector<40xf32>
    %268 = vector.shape_cast %267 : vector<40xf32> to vector<40x1xf32>
    %269 = tpu.reciprocal %268 {approx = true} : vector<40x1xf32> -> vector<40x1xf32>
    %270 = vector.broadcast %269 : vector<40x1xf32> to vector<40x40xf32>
    %271 = arith.mulf %266, %270 : vector<40x40xf32>
    %272 = arith.truncf %271 : vector<40x40xf32> to vector<40x40xbf16>
    %273 = vector.extract_strided_slice %220 {offsets = [0, 16], sizes = [40, 8], strides = [1, 1]} : vector<40x32xbf16> to vector<40x8xbf16>
    %cst_108 = arith.constant dense<0.000000e+00> : vector<40x8xf32>
    %274 = tpu.matmul %272, %273, %cst_108 {dimension_numbers = #tpu.dot_dimension_numbers<[1], [0], [0], [1], [0, 0, 1, 1], [], []>} : vector<40x40xbf16>, vector<40x8xbf16>, vector<40x8xf32> -> vector<40x8xf32>
    %275 = vector.extract_strided_slice %216 {offsets = [0, 24], sizes = [40, 8], strides = [1, 1]} : vector<40x32xbf16> to vector<40x8xbf16>
    %276 = vector.extract_strided_slice %218 {offsets = [0, 24], sizes = [40, 8], strides = [1, 1]} : vector<40x32xbf16> to vector<40x8xbf16>
    %cst_109 = arith.constant dense<0.000000e+00> : vector<40x40xf32>
    %277 = tpu.matmul %275, %276, %cst_109 {dimension_numbers = #tpu.dot_dimension_numbers<[1], [1], [0], [0], [0, 0, 1, 0], [], []>} : vector<40x8xbf16>, vector<40x8xbf16>, vector<40x40xf32> -> vector<40x40xf32>
    %cst_110 = arith.constant -1.000000e+30 : f32
    %278 = vector.broadcast %cst_110 : f32 to vector<40x40xf32>
    %279 = arith.select %4, %277, %278 : vector<40x40xi1>, vector<40x40xf32>
    %cst_111 = arith.constant dense<0xFF800000> : vector<40xf32>
    %280 = vector.multi_reduction <maximumf>, %279, %cst_111 [1] : vector<40x40xf32> to vector<40xf32>
    %281 = vector.shape_cast %280 : vector<40xf32> to vector<40x1xf32>
    %282 = vector.broadcast %281 : vector<40x1xf32> to vector<40x40xf32>
    %283 = arith.subf %279, %282 : vector<40x40xf32>
    %284 = math.exp %283 : vector<40x40xf32>
    %cst_112 = arith.constant dense<0.000000e+00> : vector<40xf32>
    %285 = vector.multi_reduction <add>, %284, %cst_112 [1] : vector<40x40xf32> to vector<40xf32>
    %286 = vector.shape_cast %285 : vector<40xf32> to vector<40x1xf32>
    %287 = tpu.reciprocal %286 {approx = true} : vector<40x1xf32> -> vector<40x1xf32>
    %288 = vector.broadcast %287 : vector<40x1xf32> to vector<40x40xf32>
    %289 = arith.mulf %284, %288 : vector<40x40xf32>
    %290 = arith.truncf %289 : vector<40x40xf32> to vector<40x40xbf16>
    %291 = vector.extract_strided_slice %220 {offsets = [0, 24], sizes = [40, 8], strides = [1, 1]} : vector<40x32xbf16> to vector<40x8xbf16>
    %cst_113 = arith.constant dense<0.000000e+00> : vector<40x8xf32>
    %292 = tpu.matmul %290, %291, %cst_113 {dimension_numbers = #tpu.dot_dimension_numbers<[1], [0], [0], [1], [0, 0, 1, 1], [], []>} : vector<40x40xbf16>, vector<40x8xbf16>, vector<40x8xf32> -> vector<40x8xf32>
    %293 = tpu.concatenate %238, %256, %274, %292 in 1 : vector<40x8xf32>, vector<40x8xf32>, vector<40x8xf32>, vector<40x8xf32> -> vector<40x32xf32>
    %294 = arith.truncf %293 : vector<40x32xf32> to vector<40x32xbf16>
    %c1_114 = arith.constant 1 : index
    %c0_115 = arith.constant 0 : index
    %c0_116 = arith.constant 0 : index
    %295 = vector.load %arg6[%c1_114, %c0_115, %c0_116] : memref<2x32x32xbf16, #tpu.memory_space<vmem>>, vector<1x32x32xbf16>
    %296 = vector.shape_cast %295 : vector<1x32x32xbf16> to vector<32x32xbf16>
    %cst_117 = arith.constant dense<0.000000e+00> : vector<40x32xf32>
    %297 = tpu.matmul %294, %296, %cst_117 {dimension_numbers = #tpu.dot_dimension_numbers<[1], [0], [0], [1], [0, 0, 1, 1], [], []>} : vector<40x32xbf16>, vector<32x32xbf16>, vector<40x32xf32> -> vector<40x32xf32>
    %c1_118 = arith.constant 1 : index
    %c0_119 = arith.constant 0 : index
    %c0_120 = arith.constant 0 : index
    %298 = vector.load %arg7[%c1_118, %c0_119, %c0_120] : memref<2x1x32xf32, #tpu.memory_space<vmem>>, vector<1x1x32xf32>
    %299 = vector.shape_cast %298 : vector<1x1x32xf32> to vector<1x32xf32>
    %300 = vector.broadcast %299 : vector<1x32xf32> to vector<40x32xf32>
    %301 = arith.addf %297, %300 : vector<40x32xf32>
    %302 = arith.addf %180, %301 : vector<40x32xf32>
    %c1_121 = arith.constant 1 : index
    %c0_122 = arith.constant 0 : index
    %c0_123 = arith.constant 0 : index
    %303 = vector.load %arg8[%c1_121, %c0_122, %c0_123] : memref<2x1x32xf32, #tpu.memory_space<vmem>>, vector<1x1x32xf32>
    %304 = vector.shape_cast %303 : vector<1x1x32xf32> to vector<1x32xf32>
    %c1_124 = arith.constant 1 : index
    %c0_125 = arith.constant 0 : index
    %c0_126 = arith.constant 0 : index
    %305 = vector.load %arg9[%c1_124, %c0_125, %c0_126] : memref<2x1x32xf32, #tpu.memory_space<vmem>>, vector<1x1x32xf32>
    %306 = vector.shape_cast %305 : vector<1x1x32xf32> to vector<1x32xf32>
    %cst_127 = arith.constant dense<0.000000e+00> : vector<40xf32>
    %307 = vector.multi_reduction <add>, %302, %cst_127 [1] : vector<40x32xf32> to vector<40xf32>
    %308 = vector.shape_cast %307 : vector<40xf32> to vector<40x1xf32>
    %cst_128 = arith.constant 3.200000e+01 : f32
    %309 = vector.broadcast %cst_128 : f32 to vector<40x1xf32>
    %310 = arith.divf %308, %309 : vector<40x1xf32>
    %311 = vector.broadcast %310 : vector<40x1xf32> to vector<40x32xf32>
    %312 = arith.subf %302, %311 : vector<40x32xf32>
    %313 = arith.mulf %312, %312 : vector<40x32xf32>
    %cst_129 = arith.constant dense<0.000000e+00> : vector<40xf32>
    %314 = vector.multi_reduction <add>, %313, %cst_129 [1] : vector<40x32xf32> to vector<40xf32>
    %315 = vector.shape_cast %314 : vector<40xf32> to vector<40x1xf32>
    %cst_130 = arith.constant 3.200000e+01 : f32
    %316 = vector.broadcast %cst_130 : f32 to vector<40x1xf32>
    %317 = arith.divf %315, %316 : vector<40x1xf32>
    %cst_131 = arith.constant 9.99999997E-7 : f32
    %318 = vector.broadcast %cst_131 : f32 to vector<40x1xf32>
    %319 = arith.addf %317, %318 : vector<40x1xf32>
    %320 = math.rsqrt %319 : vector<40x1xf32>
    %321 = vector.broadcast %320 : vector<40x1xf32> to vector<40x32xf32>
    %322 = arith.mulf %312, %321 : vector<40x32xf32>
    %323 = vector.broadcast %304 : vector<1x32xf32> to vector<40x32xf32>
    %324 = arith.mulf %322, %323 : vector<40x32xf32>
    %325 = vector.broadcast %306 : vector<1x32xf32> to vector<40x32xf32>
    %326 = arith.addf %324, %325 : vector<40x32xf32>
    %327 = arith.truncf %326 : vector<40x32xf32> to vector<40x32xbf16>
    %c1_132 = arith.constant 1 : index
    %c0_133 = arith.constant 0 : index
    %c0_134 = arith.constant 0 : index
    %328 = vector.load %arg10[%c1_132, %c0_133, %c0_134] : memref<2x32x128xbf16, #tpu.memory_space<vmem>>, vector<1x32x128xbf16>
    %329 = vector.shape_cast %328 : vector<1x32x128xbf16> to vector<32x128xbf16>
    %cst_135 = arith.constant dense<0.000000e+00> : vector<40x128xf32>
    %330 = tpu.matmul %327, %329, %cst_135 {dimension_numbers = #tpu.dot_dimension_numbers<[1], [0], [0], [1], [0, 0, 1, 1], [], []>} : vector<40x32xbf16>, vector<32x128xbf16>, vector<40x128xf32> -> vector<40x128xf32>
    %c1_136 = arith.constant 1 : index
    %c0_137 = arith.constant 0 : index
    %c0_138 = arith.constant 0 : index
    %331 = vector.load %arg11[%c1_136, %c0_137, %c0_138] : memref<2x1x128xf32, #tpu.memory_space<vmem>>, vector<1x1x128xf32>
    %332 = vector.shape_cast %331 : vector<1x1x128xf32> to vector<1x128xf32>
    %333 = vector.broadcast %332 : vector<1x128xf32> to vector<40x128xf32>
    %334 = arith.addf %330, %333 : vector<40x128xf32>
    %cst_139 = arith.constant 5.000000e-01 : f32
    %335 = vector.broadcast %cst_139 : f32 to vector<40x128xf32>
    %336 = arith.mulf %335, %334 : vector<40x128xf32>
    %337 = arith.mulf %334, %334 : vector<40x128xf32>
    %338 = arith.mulf %337, %334 : vector<40x128xf32>
    %cst_140 = arith.constant 4.471500e-02 : f32
    %339 = vector.broadcast %cst_140 : f32 to vector<40x128xf32>
    %340 = arith.mulf %339, %338 : vector<40x128xf32>
    %341 = arith.addf %334, %340 : vector<40x128xf32>
    %cst_141 = arith.constant 0.797884583 : f32
    %342 = vector.broadcast %cst_141 : f32 to vector<40x128xf32>
    %343 = arith.mulf %342, %341 : vector<40x128xf32>
    %344 = math.tanh %343 : vector<40x128xf32>
    %cst_142 = arith.constant 1.000000e+00 : f32
    %345 = vector.broadcast %cst_142 : f32 to vector<40x128xf32>
    %346 = arith.addf %345, %344 : vector<40x128xf32>
    %347 = arith.mulf %336, %346 : vector<40x128xf32>
    %348 = arith.truncf %347 : vector<40x128xf32> to vector<40x128xbf16>
    %c1_143 = arith.constant 1 : index
    %c0_144 = arith.constant 0 : index
    %c0_145 = arith.constant 0 : index
    %349 = vector.load %arg12[%c1_143, %c0_144, %c0_145] : memref<2x128x32xbf16, #tpu.memory_space<vmem>>, vector<1x128x32xbf16>
    %350 = vector.shape_cast %349 : vector<1x128x32xbf16> to vector<128x32xbf16>
    %cst_146 = arith.constant dense<0.000000e+00> : vector<40x32xf32>
    %351 = tpu.matmul %348, %350, %cst_146 {dimension_numbers = #tpu.dot_dimension_numbers<[1], [0], [0], [1], [0, 0, 1, 1], [], []>} : vector<40x128xbf16>, vector<128x32xbf16>, vector<40x32xf32> -> vector<40x32xf32>
    %c1_147 = arith.constant 1 : index
    %c0_148 = arith.constant 0 : index
    %c0_149 = arith.constant 0 : index
    %352 = vector.load %arg13[%c1_147, %c0_148, %c0_149] : memref<2x1x32xf32, #tpu.memory_space<vmem>>, vector<1x1x32xf32>
    %353 = vector.shape_cast %352 : vector<1x1x32xf32> to vector<1x32xf32>
    %354 = vector.broadcast %353 : vector<1x32xf32> to vector<40x32xf32>
    %355 = arith.addf %351, %354 : vector<40x32xf32>
    %356 = arith.addf %302, %355 : vector<40x32xf32>
    %357 = vector.extract_strided_slice %356 {offsets = [0, 0], sizes = [1, 32], strides = [1, 1]} : vector<40x32xf32> to vector<1x32xf32>
    %c0_150 = arith.constant 0 : index
    %c0_151 = arith.constant 0 : index
    %358 = vector.load %arg14[%c0_150, %c0_151] : memref<1x32xf32, #tpu.memory_space<vmem>>, vector<1x32xf32>
    %c0_152 = arith.constant 0 : index
    %c0_153 = arith.constant 0 : index
    %359 = vector.load %arg15[%c0_152, %c0_153] : memref<1x32xf32, #tpu.memory_space<vmem>>, vector<1x32xf32>
    %cst_154 = arith.constant dense<0.000000e+00> : vector<1xf32>
    %360 = vector.multi_reduction <add>, %357, %cst_154 [1] : vector<1x32xf32> to vector<1xf32>
    %361 = vector.shape_cast %360 : vector<1xf32> to vector<1x1xf32>
    %cst_155 = arith.constant 3.200000e+01 : f32
    %362 = vector.broadcast %cst_155 : f32 to vector<1x1xf32>
    %363 = arith.divf %361, %362 : vector<1x1xf32>
    %364 = vector.broadcast %363 : vector<1x1xf32> to vector<1x32xf32>
    %365 = arith.subf %357, %364 : vector<1x32xf32>
    %366 = arith.mulf %365, %365 : vector<1x32xf32>
    %cst_156 = arith.constant dense<0.000000e+00> : vector<1xf32>
    %367 = vector.multi_reduction <add>, %366, %cst_156 [1] : vector<1x32xf32> to vector<1xf32>
    %368 = vector.shape_cast %367 : vector<1xf32> to vector<1x1xf32>
    %cst_157 = arith.constant 3.200000e+01 : f32
    %369 = vector.broadcast %cst_157 : f32 to vector<1x1xf32>
    %370 = arith.divf %368, %369 : vector<1x1xf32>
    %cst_158 = arith.constant 9.99999997E-7 : f32
    %371 = vector.broadcast %cst_158 : f32 to vector<1x1xf32>
    %372 = arith.addf %370, %371 : vector<1x1xf32>
    %373 = math.rsqrt %372 : vector<1x1xf32>
    %374 = vector.broadcast %373 : vector<1x1xf32> to vector<1x32xf32>
    %375 = arith.mulf %365, %374 : vector<1x32xf32>
    %376 = arith.mulf %375, %358 : vector<1x32xf32>
    %377 = arith.addf %376, %359 : vector<1x32xf32>
    %378 = arith.truncf %377 : vector<1x32xf32> to vector<1x32xbf16>
    %c0_159 = arith.constant 0 : index
    %c0_160 = arith.constant 0 : index
    %379 = vector.load %arg16[%c0_159, %c0_160] : memref<32x10xbf16, #tpu.memory_space<vmem>>, vector<32x10xbf16>
    %cst_161 = arith.constant dense<0.000000e+00> : vector<1x10xf32>
    %380 = tpu.matmul %378, %379, %cst_161 {dimension_numbers = #tpu.dot_dimension_numbers<[1], [0], [0], [1], [0, 0, 1, 1], [], []>} : vector<1x32xbf16>, vector<32x10xbf16>, vector<1x10xf32> -> vector<1x10xf32>
    %c0_162 = arith.constant 0 : index
    %c0_163 = arith.constant 0 : index
    %381 = vector.load %arg17[%c0_162, %c0_163] : memref<1x10xf32, #tpu.memory_space<vmem>>, vector<1x10xf32>
    %382 = arith.addf %380, %381 : vector<1x10xf32>
    %c0_164 = arith.constant 0 : index
    %c0_165 = arith.constant 0 : index
    %c0_166 = arith.constant 0 : index
    %383 = vector.load %arg18[%c0_164, %c0_165, %c0_166] : memref<1x1x10xf32, #tpu.memory_space<vmem>>, vector<1x1x10xf32>
    %384 = vector.shape_cast %383 : vector<1x1x10xf32> to vector<1x10xf32>
    %385 = vector.shape_cast %382 : vector<1x10xf32> to vector<1x1x10xf32>
    tpu.vector_store %arg18[%c0_164, %c0_165, %c0_166], %385 {strides = array<i32>} : memref<1x1x10xf32, #tpu.memory_space<vmem>>, vector<1x1x10xf32>,
    return
  }
  func.func @transform_0(%arg0: i32) -> (i32, i32, i32) {
    %c0_i32 = arith.constant 0 : i32
    %c0_i32_0 = arith.constant 0 : i32
    %c0_i32_1 = arith.constant 0 : i32
    return %arg0, %c0_i32, %c0_i32_0 : i32, i32, i32
  }
  func.func @transform_1(%arg0: i32) -> (i32, i32, i32) {
    %c0_i32 = arith.constant 0 : i32
    %c0_i32_0 = arith.constant 0 : i32
    %c0_i32_1 = arith.constant 0 : i32
    %c0_i32_2 = arith.constant 0 : i32
    return %c0_i32, %c0_i32_0, %c0_i32_1 : i32, i32, i32
  }
  func.func @transform_2(%arg0: i32) -> (i32, i32, i32) {
    %c0_i32 = arith.constant 0 : i32
    %c0_i32_0 = arith.constant 0 : i32
    %c0_i32_1 = arith.constant 0 : i32
    %c0_i32_2 = arith.constant 0 : i32
    return %c0_i32, %c0_i32_0, %c0_i32_1 : i32, i32, i32
  }
  func.func @transform_3(%arg0: i32) -> (i32, i32, i32) {
    %c0_i32 = arith.constant 0 : i32
    %c0_i32_0 = arith.constant 0 : i32
    %c0_i32_1 = arith.constant 0 : i32
    %c0_i32_2 = arith.constant 0 : i32
    return %c0_i32, %c0_i32_0, %c0_i32_1 : i32, i32, i32
  }
  func.func @transform_4(%arg0: i32) -> (i32, i32, i32) {
    %c0_i32 = arith.constant 0 : i32
    %c0_i32_0 = arith.constant 0 : i32
    %c0_i32_1 = arith.constant 0 : i32
    %c0_i32_2 = arith.constant 0 : i32
    return %c0_i32, %c0_i32_0, %c0_i32_1 : i32, i32, i32
  }
  func.func @transform_5(%arg0: i32) -> (i32, i32, i32) {
    %c0_i32 = arith.constant 0 : i32
    %c0_i32_0 = arith.constant 0 : i32
    %c0_i32_1 = arith.constant 0 : i32
    %c0_i32_2 = arith.constant 0 : i32
    return %c0_i32, %c0_i32_0, %c0_i32_1 : i32, i32, i32
  }
  func.func @transform_6(%arg0: i32) -> (i32, i32, i32) {
    %c0_i32 = arith.constant 0 : i32
    %c0_i32_0 = arith.constant 0 : i32
    %c0_i32_1 = arith.constant 0 : i32
    %c0_i32_2 = arith.constant 0 : i32
    return %c0_i32, %c0_i32_0, %c0_i32_1 : i32, i32, i32
  }
  func.func @transform_7(%arg0: i32) -> (i32, i32, i32) {
    %c0_i32 = arith.constant 0 : i32
    %c0_i32_0 = arith.constant 0 : i32
    %c0_i32_1 = arith.constant 0 : i32
    %c0_i32_2 = arith.constant 0 : i32
    return %c0_i32, %c0_i32_0, %c0_i32_1 : i32, i32, i32
  }
  func.func @transform_8(%arg0: i32) -> (i32, i32, i32) {
    %c0_i32 = arith.constant 0 : i32
    %c0_i32_0 = arith.constant 0 : i32
    %c0_i32_1 = arith.constant 0 : i32
    %c0_i32_2 = arith.constant 0 : i32
    return %c0_i32, %c0_i32_0, %c0_i32_1 : i32, i32, i32
  }
  func.func @transform_9(%arg0: i32) -> (i32, i32, i32) {
    %c0_i32 = arith.constant 0 : i32
    %c0_i32_0 = arith.constant 0 : i32
    %c0_i32_1 = arith.constant 0 : i32
    %c0_i32_2 = arith.constant 0 : i32
    return %c0_i32, %c0_i32_0, %c0_i32_1 : i32, i32, i32
  }
  func.func @transform_10(%arg0: i32) -> (i32, i32, i32) {
    %c0_i32 = arith.constant 0 : i32
    %c0_i32_0 = arith.constant 0 : i32
    %c0_i32_1 = arith.constant 0 : i32
    %c0_i32_2 = arith.constant 0 : i32
    return %c0_i32, %c0_i32_0, %c0_i32_1 : i32, i32, i32
  }
  func.func @transform_11(%arg0: i32) -> (i32, i32, i32) {
    %c0_i32 = arith.constant 0 : i32
    %c0_i32_0 = arith.constant 0 : i32
    %c0_i32_1 = arith.constant 0 : i32
    %c0_i32_2 = arith.constant 0 : i32
    return %c0_i32, %c0_i32_0, %c0_i32_1 : i32, i32, i32
  }
  func.func @transform_12(%arg0: i32) -> (i32, i32, i32) {
    %c0_i32 = arith.constant 0 : i32
    %c0_i32_0 = arith.constant 0 : i32
    %c0_i32_1 = arith.constant 0 : i32
    %c0_i32_2 = arith.constant 0 : i32
    return %c0_i32, %c0_i32_0, %c0_i32_1 : i32, i32, i32
  }
  func.func @transform_13(%arg0: i32) -> (i32, i32) {
    %c0_i32 = arith.constant 0 : i32
    %c0_i32_0 = arith.constant 0 : i32
    %c0_i32_1 = arith.constant 0 : i32
    return %c0_i32, %c0_i32_0 : i32, i32
  }
  func.func @transform_14(%arg0: i32) -> (i32, i32) {
    %c0_i32 = arith.constant 0 : i32
    %c0_i32_0 = arith.constant 0 : i32
    %c0_i32_1 = arith.constant 0 : i32
    return %c0_i32, %c0_i32_0 : i32, i32
  }
  func.func @transform_15(%arg0: i32) -> (i32, i32) {
    %c0_i32 = arith.constant 0 : i32
    %c0_i32_0 = arith.constant 0 : i32
    %c0_i32_1 = arith.constant 0 : i32
    return %c0_i32, %c0_i32_0 : i32, i32
  }
  func.func @transform_16(%arg0: i32) -> (i32, i32) {
    %c0_i32 = arith.constant 0 : i32
    %c0_i32_0 = arith.constant 0 : i32
    %c0_i32_1 = arith.constant 0 : i32
    return %c0_i32, %c0_i32_0 : i32, i32
  }
  func.func @transform_17(%arg0: i32) -> (i32, i32, i32) {
    %c0_i32 = arith.constant 0 : i32
    %c0_i32_0 = arith.constant 0 : i32
    %c0_i32_1 = arith.constant 0 : i32
    return %arg0, %c0_i32, %c0_i32_0 : i32, i32, i32
  }
}

</mosaic_0001>

<llo_original>
// kernel: tpu_custom_call.1
$region0: #{tpu_custom_call.1}
  #allocation0 [shape = 'u32[]', space=smem, size = 0x4, offset = 0x4, fixed_abs, tag = 'smem constant byte address 0x4 - core index']
  #allocation1 [shape = 'u32[144,128]{1,0:T(1,128)}', space=vmem, size = 0x12000, scoped, tag = 'internal scratch']
  %s0 = inlined_call_operand.hbm [shape: f32[8,128], index: 0, kind: input, shape index: {}]
  %s1 = inlined_call_operand.hbm [shape: f32[8,128], index: 1, kind: output, shape index: {}]
  %s2 = sld [smem:[#allocation0]]
  $region18: #{tpu_custom_call.1} parent=0
    _
  %s4 = ssub.s32 1, %s2
  %s5 = scalar_select 0, %s4, %s2
  $region1: #{tpu_custom_call.1} parent=0
    #allocation2 [shape = 'u8[4096]{0}', space=vmem, size = 0x1000, scoped, tag = 'input window, operand 0, single buffered']
    #allocation3 [shape = 's32[1]{0}', space=sflag, size = 0x4, scoped, tag = 'scoped memory for tpu_custom_call.1']
    #allocation4 [shape = 's32[1]{0}', space=sflag, size = 0x4, scoped, tag = 'scoped memory for tpu_custom_call.1']
    #allocation5 [shape = 'u8[4096]{0}', space=vmem, size = 0x1000, scoped, tag = 'output window, operand 0, single buffered']
    %6 = vsyncpa [#allocation3], 0
    %7 = vsyncpa [#allocation4], 0
    // Predicated region
    $region2: #{tpu_custom_call.1} parent=1 // pred_check
      _
    $region3: #{tpu_custom_call.1} parent=1 // pred_check_branch
      %9 = sbr.rel (0) target = $region5
    $region4: #{tpu_custom_call.1} parent=1 // pred_region
      %s11 = ssub.s32 128, 128
      %12 = vsyncadd [#allocation3], %s11
      %s14 = sshll.u32 [#allocation2], 4
      %s15 = int_to_ptr.vmem [resolvable:$true] %s14
      %17 = dma.hbm_to_vmem [thread:$0]  %s0, 128, %s15, [#allocation3]
    $region5: #{tpu_custom_call.1} parent=1 // pred_fallthru
      _
    // Predicated region
    $region6: #{tpu_custom_call.1} parent=1 // pred_check
      _
    $region7: #{tpu_custom_call.1} parent=1 // pred_check_branch
      %19 = sbr.rel (0) target = $region9
    $region8: #{tpu_custom_call.1} parent=1 // pred_region
      %20 = dma.done [#allocation3], 128
    $region9: #{tpu_custom_call.1} parent=1 // pred_fallthru
      _
    %v21 = vld [vmem:[#allocation2] sm:$0xff]
    %v22 = vmul.f32 %v21, 0.5
    %v23 = vmul.f32 %v21, 0.70710677
    %v24 = verf.f32.pop %v23
    %v25 = vadd.f32 %v24, 1.0
    %v26 = vmul.f32 %v22, %v25
    %27 = vst [vmem:[#allocation5] sm:$0xff] %v26
    // Predicated region
    $region10: #{tpu_custom_call.1} parent=1 // pred_check
      _
    $region11: #{tpu_custom_call.1} parent=1 // pred_check_branch
      %29 = sbr.rel (0) target = $region13
    $region12: #{tpu_custom_call.1} parent=1 // pred_region
      %s31 = ssub.s32 128, 128
      %32 = vsyncadd [#allocation4], %s31
      %s34 = sshll.u32 [#allocation5], 4
      %s35 = int_to_ptr.vmem [resolvable:$true] %s34
      %37 = dma.vmem_to_hbm [thread:$0]  %s35, 128, %s1, [#allocation4]
    $region13: #{tpu_custom_call.1} parent=1 // pred_fallthru
      _
    // Predicated region
    $region14: #{tpu_custom_call.1} parent=1 // pred_check
      _
    $region15: #{tpu_custom_call.1} parent=1 // pred_check_branch
      %39 = sbr.rel (0) target = $region17
    $region16: #{tpu_custom_call.1} parent=1 // pred_region
      %40 = dma.done [#allocation4], 128
    $region17: #{tpu_custom_call.1} parent=1 // pred_fallthru
      _
    %41 = vsyncpa [#allocation3], 1
    %42 = vsyncpa [#allocation4], 1

// kernel: forward.2
$region0: #{forward.2}
  #allocation0 [shape = 'u32[]', space=smem, size = 0x4, offset = 0x4, fixed_abs, tag = 'smem constant byte address 0x4 - core index']
  #allocation1 [shape = 'u32[144,128]{1,0:T(1,128)}', space=vmem, size = 0x12000, scoped, tag = 'internal scratch']
  %s0 = inlined_call_operand.vmem [shape: f32[64,48], index: 0, kind: input, shape index: {}]
  %s1 = inlined_call_operand.vmem [shape: bf16[48,32], index: 1, kind: input, shape index: {}]
  %s2 = inlined_call_operand.vmem [shape: f32[1,32], index: 2, kind: input, shape index: {}]
  %s3 = inlined_call_operand.vmem [shape: f32[64,32], index: 3, kind: output, shape index: {}]
  %s4 = sld [smem:[#allocation0]]
  $region22: #{forward.2} parent=0
    _
  %s6 = ssub.s32 1, %s4
  %s7 = scalar_select 0, %s6, %s4
  // Predicated region
  $region2: #{forward.2} parent=0 // pred_check
    _
  $region3: #{forward.2} parent=0 // pred_check_branch
    %9 = sbr.rel (0) target = $region5
  $region4: #{forward.2} parent=0 // pred_region
    _
  $region5: #{forward.2} parent=0 // pred_fallthru
    _
  // Predicated region
  $region6: #{forward.2} parent=0 // pred_check
    _
  $region7: #{forward.2} parent=0 // pred_check_branch
    %11 = sbr.rel (0) target = $region9
  $region8: #{forward.2} parent=0 // pred_region
    _
  $region9: #{forward.2} parent=0 // pred_fallthru
    _
  // Predicated region
  $region10: #{forward.2} parent=0 // pred_check
    _
  $region11: #{forward.2} parent=0 // pred_check_branch
    %13 = sbr.rel (0) target = $region13
  $region12: #{forward.2} parent=0 // pred_region
    _
  $region13: #{forward.2} parent=0 // pred_fallthru
    _
  %v15 = vld [vmem:[%s0] sm:$0xff]
  %v16 = vld [vmem:[%s0 + $0x8] sm:$0xff]
  %v17 = vld [vmem:[%s0 + $0x10] sm:$0xff]
  %v18 = vld [vmem:[%s0 + $0x18] sm:$0xff]
  %v19 = vld [vmem:[%s0 + $0x20] sm:$0xff]
  %v20 = vld [vmem:[%s0 + $0x28] sm:$0xff]
  %v21 = vld [vmem:[%s0 + $0x30] sm:$0xff]
  %v22 = vld [vmem:[%s0 + $0x38] sm:$0xff]
  %v23 = vpack.c.bf16 %v16, %v15
  %v24 = vpack.c.bf16 %v18, %v17
  %v25 = vpack.c.bf16 %v20, %v19
  %v26 = vpack.c.bf16 %v22, %v21
  %v27 = vld [vmem:[%s1] sm:$0xf]
  %v28 = vld [vmem:[%s1 + $0x4] sm:$0xf]
  %v29 = vld [vmem:[%s1 + $0x8] sm:$0xf]
  %v30 = vld [vmem:[%s1 + $0xc] sm:$0xf]
  %v31 = vld [vmem:[%s1 + $0x10] sm:$0xf]
  %v32 = vld [vmem:[%s1 + $0x14] sm:$0xf]
  %v33 = vld [vmem:[%s2] sm:$0x1]
  %v35 = vlaneseq
  %v36 = vshrl.u32 %v35, 7
  %v37 = vsub.s32 0, %v36
  %v38 = vrot.slane %v33, %v37
  %v46 = vunpack.c.l.b16 %v27
  %v47 = vunpack.c.l.b16 %v28
  %v48 = vunpack.c.l.b16 %v29
  %v49 = vunpack.c.l.b16 %v30
  %v50 = vunpack.c.l.b16 %v31
  %v51 = vunpack.c.l.b16 %v32
  %v52 = vpack.c.b16 %v47, %v46
  %v53 = vpack.c.b16 %v49, %v48
  %v54 = vpack.c.b16 %v51, %v50
  %vm58 = vcmask 392192
  %v60 = vsel %vm58, %v23, 0
  %v63 = vsel %vm58, %v24, 0
  %v66 = vsel %vm58, %v25, 0
  %v69 = vsel %vm58, %v26, 0
  %71 = vmatprep.subr.bf16.mxu0 0
  %72 = vmatpush1.bf16.msra.mxu0 0
  %73 = vmatprep.subr.bf16.mxu0 0
  %74 = vmatpush1.bf16.msra.mxu0 0
  %75 = vmatprep.subr.bf16.mxu0 0
  %76 = vmatpush1.bf16.msra.mxu0 0
  %77 = vmatprep.subr.bf16.mxu0 0
  %78 = vmatpush1.bf16.msra.mxu0 0
  %79 = vmatprep.subr.bf16.mxu0 0
  %80 = vmatpush1.bf16.msra.mxu0 0
  %81 = vmatprep.subr.bf16.mxu0 0
  %82 = vmatpush1.bf16.msra.mxu0 %v54
  %83 = vmatprep.subr.bf16.mxu0 0
  %84 = vmatpush1.bf16.msra.mxu0 %v53
  %85 = vmatprep.subr.bf16.mxu0 0
  %86 = vmatpush1.bf16.msra.mxu0 %v52
  %87 = vmatprep.subr.bf16.mxu0 0
  %88 = vmatpush2.bf16.msra.mxu0 0
  %89 = vmatprep.subr.bf16.mxu0 0
  %90 = vmatpush2.bf16.msra.mxu0 0
  %91 = vmatprep.subr.bf16.mxu0 0
  %92 = vmatpush2.bf16.msra.mxu0 0
  %93 = vmatprep.subr.bf16.mxu0 0
  %94 = vmatpush2.bf16.msra.mxu0 0
  %95 = vmatprep.subr.bf16.mxu0 0
  %96 = vmatpush2.bf16.msra.mxu0 0
  %97 = vmatprep.subr.bf16.mxu0 0
  %98 = vmatpush2.bf16.msra.mxu0 0
  %99 = vmatprep.subr.bf16.mxu0 0
  %100 = vmatpush2.bf16.msra.mxu0 0
  %101 = vmatprep.subr.bf16.mxu0 0
  %102 = vmatpush2.bf16.msra.mxu0 0
  %103 = vmatprep.mubr.bf16.mxu0 0
  %104 = vmatmul.mubr.bf16.gmra.mxu0 %v60
  %v105 = vpop.f32.mrf.mxu0
  %v106 = vadd.f32 %v38, %v105
  %v107 = vpop.f32.mrf.mxu0
  %v108 = vpop.f32.mrf.mxu0
  %v109 = vadd.f32 %v38, %v108
  %v110 = vpop.f32.mrf.mxu0
  %111 = vmatprep.mubr.bf16.mxu0 0
  %112 = vmatmul.mubr.bf16.gmra.mxu0 %v63
  %v113 = vpop.f32.mrf.mxu0
  %v114 = vadd.f32 %v38, %v113
  %v115 = vpop.f32.mrf.mxu0
  %v116 = vpop.f32.mrf.mxu0
  %v117 = vadd.f32 %v38, %v116
  %v118 = vpop.f32.mrf.mxu0
  %119 = vmatprep.mubr.bf16.mxu0 0
  %120 = vmatmul.mubr.bf16.gmra.mxu0 %v66
  %v121 = vpop.f32.mrf.mxu0
  %v122 = vadd.f32 %v38, %v121
  %v123 = vpop.f32.mrf.mxu0
  %v124 = vpop.f32.mrf.mxu0
  %v125 = vadd.f32 %v38, %v124
  %v126 = vpop.f32.mrf.mxu0
  %127 = vmatprep.mubr.bf16.mxu0 0
  %128 = vmatmul.mubr.bf16.gmra.mxu0 %v69
  %v129 = vpop.f32.mrf.mxu0
  %v130 = vadd.f32 %v38, %v129
  %v131 = vpop.f32.mrf.mxu0
  %v132 = vpop.f32.mrf.mxu0
  %v133 = vadd.f32 %v38, %v132
  %v134 = vpop.f32.mrf.mxu0
  %135 = vdwg.mxu0
  %vm136 = vcmask 261120
  %137 = vst.msk [vmem:[%s3] sm:$0xff] %vm136, %v106
  %138 = vst.msk [vmem:[%s3 + $0x8] sm:$0xff] %vm136, %v109
  %139 = vst.msk [vmem:[%s3 + $0x10] sm:$0xff] %vm136, %v114
  %140 = vst.msk [vmem:[%s3 + $0x18] sm:$0xff] %vm136, %v117
  %141 = vst.msk [vmem:[%s3 + $0x20] sm:$0xff] %vm136, %v122
  %142 = vst.msk [vmem:[%s3 + $0x28] sm:$0xff] %vm136, %v125
  %143 = vst.msk [vmem:[%s3 + $0x30] sm:$0xff] %vm136, %v130
  %144 = vst.msk [vmem:[%s3 + $0x38] sm:$0xff] %vm136, %v133
  // Predicated region
  $region14: #{forward.2} parent=0 // pred_check
    _
  $region15: #{forward.2} parent=0 // pred_check_branch
    %146 = sbr.rel (0) target = $region17
  $region16: #{forward.2} parent=0 // pred_region
    _
  $region17: #{forward.2} parent=0 // pred_fallthru
    _
  // Predicated region
  $region18: #{forward.2} parent=0 // pred_check
    _
  $region19: #{forward.2} parent=0 // pred_check_branch
    %148 = sbr.rel (0) target = $region21
  $region20: #{forward.2} parent=0 // pred_region
    _
  $region21: #{forward.2} parent=0 // pred_fallthru
    _

// kernel: forward.3
$region0: #{forward.3}
  #allocation0 [shape = 'u32[]', space=smem, size = 0x4, offset = 0x4, fixed_abs, tag = 'smem constant byte address 0x4 - core index']
  #allocation1 [shape = 'u32[144,128]{1,0:T(1,128)}', space=vmem, size = 0x12000, scoped, tag = 'internal scratch']
  %s0 = inlined_call_operand.vmem [shape: f32[2,40,32], index: 0, kind: input, shape index: {}]
  %s1 = inlined_call_operand.vmem [shape: f32[2,1,32], index: 1, kind: input, shape index: {}]
  %s2 = inlined_call_operand.vmem [shape: f32[2,1,32], index: 2, kind: input, shape index: {}]
  %s3 = inlined_call_operand.vmem [shape: bf16[2,32,96], index: 3, kind: input, shape index: {}]
  %s4 = inlined_call_operand.vmem [shape: f32[2,1,96], index: 4, kind: input, shape index: {}]
  %s5 = inlined_call_operand.vmem [shape: bf16[2,32,32], index: 5, kind: input, shape index: {}]
  %s6 = inlined_call_operand.vmem [shape: f32[2,1,32], index: 6, kind: input, shape index: {}]
  %s7 = inlined_call_operand.vmem [shape: f32[2,1,32], index: 7, kind: input, shape index: {}]
  %s8 = inlined_call_operand.vmem [shape: f32[2,1,32], index: 8, kind: input, shape index: {}]
  %s9 = inlined_call_operand.vmem [shape: bf16[2,32,128], index: 9, kind: input, shape index: {}]
  %s10 = inlined_call_operand.vmem [shape: f32[2,1,128], index: 10, kind: input, shape index: {}]
  %s11 = inlined_call_operand.vmem [shape: bf16[2,128,32], index: 11, kind: input, shape index: {}]
  %s12 = inlined_call_operand.vmem [shape: f32[2,1,32], index: 12, kind: input, shape index: {}]
  %s13 = inlined_call_operand.vmem [shape: f32[1,32], index: 13, kind: input, shape index: {}]
  %s14 = inlined_call_operand.vmem [shape: f32[1,32], index: 14, kind: input, shape index: {}]
  %s15 = inlined_call_operand.vmem [shape: bf16[32,10], index: 15, kind: input, shape index: {}]
  %s16 = inlined_call_operand.vmem [shape: f32[1,10], index: 16, kind: input, shape index: {}]
  %s17 = inlined_call_operand.hbm [shape: f32[2,1,10], index: 17, kind: output, shape index: {}]
  %s18 = sld [smem:[#allocation0]]
  $region101: #{forward.3} parent=0
    _
  %s20 = ssub.s32 1, %s18
  %s21 = scalar_select 0, %s20, %s18
  $region1: #{forward.3} parent=0
    #allocation2 [shape = 'u8[1024]{0}', space=vmem, size = 0x400, scoped, tag = 'output window, operand 0']
    #allocation3 [shape = 's32[2]{0}', space=sflag, size = 0x8, scoped, tag = 'scoped memory for forward.3']
    %22 = vsyncpa [#allocation3], 0
    %s23 = scalar_lea.sflag [#allocation3], 1
    %24 = vsyncpa %s23, 0
    loop: start=0, step=1, limit=4
    $region2: #{forward.3} parent=1 // loop_pre_header
      _
    $region3: #{forward.3} parent=1 // loop_header
      %s26 = sphi 0, %s30
      %p27 = scmp.ge.s32.totalorder %s26, 4
      %s36 = sphi 0, %s38
      %s39 = sphi 0, %s36
      %s40 = sphi 0, %s39
      %s56 = sphi 0, %s40
      %s60 = sphi 0, %s60
      %s62 = sphi 0, %s60
      %s63 = sphi 0, %s62
      %s77 = sphi 0, %s63
      %s81 = sphi 0, %s81
      %s83 = sphi 0, %s81
      %s84 = sphi 0, %s83
      %s98 = sphi 0, %s84
      %s102 = sphi 0, %s102
      %s104 = sphi 0, %s102
      %s105 = sphi 0, %s104
      %s119 = sphi 0, %s105
      %s123 = sphi 0, %s123
      %s125 = sphi 0, %s123
      %s126 = sphi 0, %s125
      %s140 = sphi 0, %s126
      %s144 = sphi 0, %s144
      %s146 = sphi 0, %s144
      %s147 = sphi 0, %s146
      %s161 = sphi 0, %s147
      %s165 = sphi 0, %s165
      %s167 = sphi 0, %s165
      %s168 = sphi 0, %s167
      %s182 = sphi 0, %s168
      %s186 = sphi 0, %s186
      %s188 = sphi 0, %s186
      %s189 = sphi 0, %s188
      %s203 = sphi 0, %s189
      %s207 = sphi 0, %s207
      %s209 = sphi 0, %s207
      %s210 = sphi 0, %s209
      %s224 = sphi 0, %s210
      %s228 = sphi 0, %s228
      %s230 = sphi 0, %s228
      %s231 = sphi 0, %s230
      %s245 = sphi 0, %s231
      %s249 = sphi 0, %s249
      %s251 = sphi 0, %s249
      %s252 = sphi 0, %s251
      %s266 = sphi 0, %s252
      %s270 = sphi 0, %s270
      %s272 = sphi 0, %s270
      %s273 = sphi 0, %s272
      %s287 = sphi 0, %s273
      %s291 = sphi 0, %s291
      %s293 = sphi 0, %s291
      %s294 = sphi 0, %s293
      %s308 = sphi 0, %s294
      %s312 = sphi 0, %s312
      %s314 = sphi 0, %s312
      %s315 = sphi 0, %s314
      %s329 = sphi 0, %s315
      %s333 = sphi 0, %s333
      %s335 = sphi 0, %s333
      %s336 = sphi 0, %s335
      %s350 = sphi 0, %s336
      %s354 = sphi 0, %s354
      %s356 = sphi 0, %s354
      %s357 = sphi 0, %s356
      %s371 = sphi 0, %s357
      %s375 = sphi 0, %s375
      %s377 = sphi 0, %s375
      %s378 = sphi 0, %s377
      %s392 = sphi 0, %s378
      %s398 = sphi 0, %s400
      %s401 = sphi 0, %s398
      %s402 = sphi 0, %s401
      %s418 = sphi 0, %s402
    $region4: #{forward.3} parent=1 // loop_header_branch
      %29 = sbr.rel (%p27) target = $region8
    $region5: #{forward.3} parent=1 // loop_body
      %s31 = ssub.s32 %s26, 1
      %s32 = ssub.s32 %s26, 2
      %s33 = sadd.s32 %s26, 1
      %s34 = ssub.s32 %s26, %s33
      %p35 = scmp.eq.s32.totalorder %s34, 0
      %s37 = sadd.s32 %s36, 1
      %s38 = scalar_select %p35, %s36, %s37
      %p41 = pneg %p35
      %p42 = scmp.eq.s32.totalorder %s26, 1
      %p43 = por %p41, %p42
      %p44 = scmp.ne.s32.totalorder %s36, %s39
      %p45 = scmp.eq.s32.totalorder %s26, 0
      %p46 = por %p44, %p45
      %p47 = scmp.ne.s32.totalorder %s36, %s39
      %p48 = scmp.eq.s32.totalorder %s31, 1
      %p49 = por %p47, %p48
      %p50 = scmp.ne.s32.totalorder %s39, %s40
      %p51 = scmp.eq.s32.totalorder %s31, 0
      %p52 = por %p50, %p51
      %p53 = scmp.ne.s32.totalorder %s39, %s40
      %p54 = scmp.eq.s32.totalorder %s32, 1
      %p55 = por %p53, %p54
      %p57 = scmp.ne.s32.totalorder %s40, %s56
      %p58 = scmp.eq.s32.totalorder %s32, 0
      %p59 = por %p57, %p58
      %s61 = sadd.s32 %s60, 1
      %p64 = scmp.eq.s32.totalorder %s26, 1
      %p65 = scmp.ne.s32.totalorder %s60, %s62
      %p66 = scmp.eq.s32.totalorder %s26, 0
      %p67 = por %p65, %p66
      %p68 = scmp.ne.s32.totalorder %s60, %s62
      %p69 = scmp.eq.s32.totalorder %s31, 1
      %p70 = por %p68, %p69
      %p71 = scmp.ne.s32.totalorder %s62, %s63
      %p72 = scmp.eq.s32.totalorder %s31, 0
      %p73 = por %p71, %p72
      %p74 = scmp.ne.s32.totalorder %s62, %s63
      %p75 = scmp.eq.s32.totalorder %s32, 1
      %p76 = por %p74, %p75
      %p78 = scmp.ne.s32.totalorder %s63, %s77
      %p79 = scmp.eq.s32.totalorder %s32, 0
      %p80 = por %p78, %p79
      %s82 = sadd.s32 %s81, 1
      %p85 = scmp.eq.s32.totalorder %s26, 1
      %p86 = scmp.ne.s32.totalorder %s81, %s83
      %p87 = scmp.eq.s32.totalorder %s26, 0
      %p88 = por %p86, %p87
      %p89 = scmp.ne.s32.totalorder %s81, %s83
      %p90 = scmp.eq.s32.totalorder %s31, 1
      %p91 = por %p89, %p90
      %p92 = scmp.ne.s32.totalorder %s83, %s84
      %p93 = scmp.eq.s32.totalorder %s31, 0
      %p94 = por %p92, %p93
      %p95 = scmp.ne.s32.totalorder %s83, %s84
      %p96 = scmp.eq.s32.totalorder %s32, 1
      %p97 = por %p95, %p96
      %p99 = scmp.ne.s32.totalorder %s84, %s98
      %p100 = scmp.eq.s32.totalorder %s32, 0
      %p101 = por %p99, %p100
      %s103 = sadd.s32 %s102, 1
      %p106 = scmp.eq.s32.totalorder %s26, 1
      %p107 = scmp.ne.s32.totalorder %s102, %s104
      %p108 = scmp.eq.s32.totalorder %s26, 0
      %p109 = por %p107, %p108
      %p110 = scmp.ne.s32.totalorder %s102, %s104
      %p111 = scmp.eq.s32.totalorder %s31, 1
      %p112 = por %p110, %p111
      %p113 = scmp.ne.s32.totalorder %s104, %s105
      %p114 = scmp.eq.s32.totalorder %s31, 0
      %p115 = por %p113, %p114
      %p116 = scmp.ne.s32.totalorder %s104, %s105
      %p117 = scmp.eq.s32.totalorder %s32, 1
      %p118 = por %p116, %p117
      %p120 = scmp.ne.s32.totalorder %s105, %s119
      %p121 = scmp.eq.s32.totalorder %s32, 0
      %p122 = por %p120, %p121
      %s124 = sadd.s32 %s123, 1
      %p127 = scmp.eq.s32.totalorder %s26, 1
      %p128 = scmp.ne.s32.totalorder %s123, %s125
      %p129 = scmp.eq.s32.totalorder %s26, 0
      %p130 = por %p128, %p129
      %p131 = scmp.ne.s32.totalorder %s123, %s125
      %p132 = scmp.eq.s32.totalorder %s31, 1
      %p133 = por %p131, %p132
      %p134 = scmp.ne.s32.totalorder %s125, %s126
      %p135 = scmp.eq.s32.totalorder %s31, 0
      %p136 = por %p134, %p135
      %p137 = scmp.ne.s32.totalorder %s125, %s126
      %p138 = scmp.eq.s32.totalorder %s32, 1
      %p139 = por %p137, %p138
      %p141 = scmp.ne.s32.totalorder %s126, %s140
      %p142 = scmp.eq.s32.totalorder %s32, 0
      %p143 = por %p141, %p142
      %s145 = sadd.s32 %s144, 1
      %p148 = scmp.eq.s32.totalorder %s26, 1
      %p149 = scmp.ne.s32.totalorder %s144, %s146
      %p150 = scmp.eq.s32.totalorder %s26, 0
      %p151 = por %p149, %p150
      %p152 = scmp.ne.s32.totalorder %s144, %s146
      %p153 = scmp.eq.s32.totalorder %s31, 1
      %p154 = por %p152, %p153
      %p155 = scmp.ne.s32.totalorder %s146, %s147
      %p156 = scmp.eq.s32.totalorder %s31, 0
      %p157 = por %p155, %p156
      %p158 = scmp.ne.s32.totalorder %s146, %s147
      %p159 = scmp.eq.s32.totalorder %s32, 1
      %p160 = por %p158, %p159
      %p162 = scmp.ne.s32.totalorder %s147, %s161
      %p163 = scmp.eq.s32.totalorder %s32, 0
      %p164 = por %p162, %p163
      %s166 = sadd.s32 %s165, 1
      %p169 = scmp.eq.s32.totalorder %s26, 1
      %p170 = scmp.ne.s32.totalorder %s165, %s167
      %p171 = scmp.eq.s32.totalorder %s26, 0
      %p172 = por %p170, %p171
      %p173 = scmp.ne.s32.totalorder %s165, %s167
      %p174 = scmp.eq.s32.totalorder %s31, 1
      %p175 = por %p173, %p174
      %p176 = scmp.ne.s32.totalorder %s167, %s168
      %p177 = scmp.eq.s32.totalorder %s31, 0
      %p178 = por %p176, %p177
      %p179 = scmp.ne.s32.totalorder %s167, %s168
      %p180 = scmp.eq.s32.totalorder %s32, 1
      %p181 = por %p179, %p180
      %p183 = scmp.ne.s32.totalorder %s168, %s182
      %p184 = scmp.eq.s32.totalorder %s32, 0
      %p185 = por %p183, %p184
      %s187 = sadd.s32 %s186, 1
      %p190 = scmp.eq.s32.totalorder %s26, 1
      %p191 = scmp.ne.s32.totalorder %s186, %s188
      %p192 = scmp.eq.s32.totalorder %s26, 0
      %p193 = por %p191, %p192
      %p194 = scmp.ne.s32.totalorder %s186, %s188
      %p195 = scmp.eq.s32.totalorder %s31, 1
      %p196 = por %p194, %p195
      %p197 = scmp.ne.s32.totalorder %s188, %s189
      %p198 = scmp.eq.s32.totalorder %s31, 0
      %p199 = por %p197, %p198
      %p200 = scmp.ne.s32.totalorder %s188, %s189
      %p201 = scmp.eq.s32.totalorder %s32, 1
      %p202 = por %p200, %p201
      %p204 = scmp.ne.s32.totalorder %s189, %s203
      %p205 = scmp.eq.s32.totalorder %s32, 0
      %p206 = por %p204, %p205
      %s208 = sadd.s32 %s207, 1
      %p211 = scmp.eq.s32.totalorder %s26, 1
      %p212 = scmp.ne.s32.totalorder %s207, %s209
      %p213 = scmp.eq.s32.totalorder %s26, 0
      %p214 = por %p212, %p213
      %p215 = scmp.ne.s32.totalorder %s207, %s209
      %p216 = scmp.eq.s32.totalorder %s31, 1
      %p217 = por %p215, %p216
      %p218 = scmp.ne.s32.totalorder %s209, %s210
      %p219 = scmp.eq.s32.totalorder %s31, 0
      %p220 = por %p218, %p219
      %p221 = scmp.ne.s32.totalorder %s209, %s210
      %p222 = scmp.eq.s32.totalorder %s32, 1
      %p223 = por %p221, %p222
      %p225 = scmp.ne.s32.totalorder %s210, %s224
      %p226 = scmp.eq.s32.totalorder %s32, 0
      %p227 = por %p225, %p226
      %s229 = sadd.s32 %s228, 1
      %p232 = scmp.eq.s32.totalorder %s26, 1
      %p233 = scmp.ne.s32.totalorder %s228, %s230
      %p234 = scmp.eq.s32.totalorder %s26, 0
      %p235 = por %p233, %p234
      %p236 = scmp.ne.s32.totalorder %s228, %s230
      %p237 = scmp.eq.s32.totalorder %s31, 1
      %p238 = por %p236, %p237
      %p239 = scmp.ne.s32.totalorder %s230, %s231
      %p240 = scmp.eq.s32.totalorder %s31, 0
      %p241 = por %p239, %p240
      %p242 = scmp.ne.s32.totalorder %s230, %s231
      %p243 = scmp.eq.s32.totalorder %s32, 1
      %p244 = por %p242, %p243
      %p246 = scmp.ne.s32.totalorder %s231, %s245
      %p247 = scmp.eq.s32.totalorder %s32, 0
      %p248 = por %p246, %p247
      %s250 = sadd.s32 %s249, 1
      %p253 = scmp.eq.s32.totalorder %s26, 1
      %p254 = scmp.ne.s32.totalorder %s249, %s251
      %p255 = scmp.eq.s32.totalorder %s26, 0
      %p256 = por %p254, %p255
      %p257 = scmp.ne.s32.totalorder %s249, %s251
      %p258 = scmp.eq.s32.totalorder %s31, 1
      %p259 = por %p257, %p258
      %p260 = scmp.ne.s32.totalorder %s251, %s252
      %p261 = scmp.eq.s32.totalorder %s31, 0
      %p262 = por %p260, %p261
      %p263 = scmp.ne.s32.totalorder %s251, %s252
      %p264 = scmp.eq.s32.totalorder %s32, 1
      %p265 = por %p263, %p264
      %p267 = scmp.ne.s32.totalorder %s252, %s266
      %p268 = scmp.eq.s32.totalorder %s32, 0
      %p269 = por %p267, %p268
      %s271 = sadd.s32 %s270, 1
      %p274 = scmp.eq.s32.totalorder %s26, 1
      %p275 = scmp.ne.s32.totalorder %s270, %s272
      %p276 = scmp.eq.s32.totalorder %s26, 0
      %p277 = por %p275, %p276
      %p278 = scmp.ne.s32.totalorder %s270, %s272
      %p279 = scmp.eq.s32.totalorder %s31, 1
      %p280 = por %p278, %p279
      %p281 = scmp.ne.s32.totalorder %s272, %s273
      %p282 = scmp.eq.s32.totalorder %s31, 0
      %p283 = por %p281, %p282
      %p284 = scmp.ne.s32.totalorder %s272, %s273
      %p285 = scmp.eq.s32.totalorder %s32, 1
      %p286 = por %p284, %p285
      %p288 = scmp.ne.s32.totalorder %s273, %s287
      %p289 = scmp.eq.s32.totalorder %s32, 0
      %p290 = por %p288, %p289
      %s292 = sadd.s32 %s291, 1
      %p295 = scmp.eq.s32.totalorder %s26, 1
      %p296 = scmp.ne.s32.totalorder %s291, %s293
      %p297 = scmp.eq.s32.totalorder %s26, 0
      %p298 = por %p296, %p297
      %p299 = scmp.ne.s32.totalorder %s291, %s293
      %p300 = scmp.eq.s32.totalorder %s31, 1
      %p301 = por %p299, %p300
      %p302 = scmp.ne.s32.totalorder %s293, %s294
      %p303 = scmp.eq.s32.totalorder %s31, 0
      %p304 = por %p302, %p303
      %p305 = scmp.ne.s32.totalorder %s293, %s294
      %p306 = scmp.eq.s32.totalorder %s32, 1
      %p307 = por %p305, %p306
      %p309 = scmp.ne.s32.totalorder %s294, %s308
      %p310 = scmp.eq.s32.totalorder %s32, 0
      %p311 = por %p309, %p310
      %s313 = sadd.s32 %s312, 1
      %p316 = scmp.eq.s32.totalorder %s26, 1
      %p317 = scmp.ne.s32.totalorder %s312, %s314
      %p318 = scmp.eq.s32.totalorder %s26, 0
      %p319 = por %p317, %p318
      %p320 = scmp.ne.s32.totalorder %s312, %s314
      %p321 = scmp.eq.s32.totalorder %s31, 1
      %p322 = por %p320, %p321
      %p323 = scmp.ne.s32.totalorder %s314, %s315
      %p324 = scmp.eq.s32.totalorder %s31, 0
      %p325 = por %p323, %p324
      %p326 = scmp.ne.s32.totalorder %s314, %s315
      %p327 = scmp.eq.s32.totalorder %s32, 1
      %p328 = por %p326, %p327
      %p330 = scmp.ne.s32.totalorder %s315, %s329
      %p331 = scmp.eq.s32.totalorder %s32, 0
      %p332 = por %p330, %p331
      %s334 = sadd.s32 %s333, 1
      %p337 = scmp.eq.s32.totalorder %s26, 1
      %p338 = scmp.ne.s32.totalorder %s333, %s335
      %p339 = scmp.eq.s32.totalorder %s26, 0
      %p340 = por %p338, %p339
      %p341 = scmp.ne.s32.totalorder %s333, %s335
      %p342 = scmp.eq.s32.totalorder %s31, 1
      %p343 = por %p341, %p342
      %p344 = scmp.ne.s32.totalorder %s335, %s336
      %p345 = scmp.eq.s32.totalorder %s31, 0
      %p346 = por %p344, %p345
      %p347 = scmp.ne.s32.totalorder %s335, %s336
      %p348 = scmp.eq.s32.totalorder %s32, 1
      %p349 = por %p347, %p348
      %p351 = scmp.ne.s32.totalorder %s336, %s350
      %p352 = scmp.eq.s32.totalorder %s32, 0
      %p353 = por %p351, %p352
      %s355 = sadd.s32 %s354, 1
      %p358 = scmp.eq.s32.totalorder %s26, 1
      %p359 = scmp.ne.s32.totalorder %s354, %s356
      %p360 = scmp.eq.s32.totalorder %s26, 0
      %p361 = por %p359, %p360
      %p362 = scmp.ne.s32.totalorder %s354, %s356
      %p363 = scmp.eq.s32.totalorder %s31, 1
      %p364 = por %p362, %p363
      %p365 = scmp.ne.s32.totalorder %s356, %s357
      %p366 = scmp.eq.s32.totalorder %s31, 0
      %p367 = por %p365, %p366
      %p368 = scmp.ne.s32.totalorder %s356, %s357
      %p369 = scmp.eq.s32.totalorder %s32, 1
      %p370 = por %p368, %p369
      %p372 = scmp.ne.s32.totalorder %s357, %s371
      %p373 = scmp.eq.s32.totalorder %s32, 0
      %p374 = por %p372, %p373
      %s376 = sadd.s32 %s375, 1
      %p379 = scmp.eq.s32.totalorder %s26, 1
      %p380 = scmp.ne.s32.totalorder %s375, %s377
      %p381 = scmp.eq.s32.totalorder %s26, 0
      %p382 = por %p380, %p381
      %p383 = scmp.ne.s32.totalorder %s375, %s377
      %p384 = scmp.eq.s32.totalorder %s31, 1
      %p385 = por %p383, %p384
      %p386 = scmp.ne.s32.totalorder %s377, %s378
      %p387 = scmp.eq.s32.totalorder %s31, 0
      %p388 = por %p386, %p387
      %p389 = scmp.ne.s32.totalorder %s377, %s378
      %p390 = scmp.eq.s32.totalorder %s32, 1
      %p391 = por %p389, %p390
      %p393 = scmp.ne.s32.totalorder %s378, %s392
      %p394 = scmp.eq.s32.totalorder %s32, 0
      %p395 = por %p393, %p394
      %s396 = ssub.s32 %s26, %s33
      %p397 = scmp.eq.s32.totalorder %s396, 0
      %s399 = sadd.s32 %s398, 1
      %s400 = scalar_select %p397, %s398, %s399
      %p403 = pneg %p397
      %p404 = scmp.eq.s32.totalorder %s26, 1
      %p405 = por %p403, %p404
      %p406 = scmp.ne.s32.totalorder %s398, %s401
      %p407 = scmp.eq.s32.totalorder %s26, 0
      %p408 = por %p406, %p407
      %p409 = scmp.ne.s32.totalorder %s398, %s401
      %p410 = scmp.eq.s32.totalorder %s31, 1
      %p411 = por %p409, %p410
      %p412 = scmp.ne.s32.totalorder %s401, %s402
      %p413 = scmp.eq.s32.totalorder %s31, 0
      %p414 = por %p412, %p413
      %p415 = scmp.ne.s32.totalorder %s401, %s402
      %p416 = scmp.eq.s32.totalorder %s32, 1
      %p417 = por %p415, %p416
      %p419 = scmp.ne.s32.totalorder %s402, %s418
      %p420 = scmp.eq.s32.totalorder %s32, 0
      %p421 = por %p419, %p420
      %p422 = scmp.le.s32.totalorder 1, %s26
      %p423 = scmp.lt.s32.totalorder %s26, 3
      %p424 = pnand %p422, %p423
      %p425 = pneg %p424
      // Predicated region
      $region9: #{forward.3} parent=5 // pred_check
        _
      $region10: #{forward.3} parent=5 // pred_check_branch
        %427 = sbr.rel (%p424) target = $region12
      $region11: #{forward.3} parent=5 // pred_region
        %s428 = ssub.s32 %s26, 1
        // Predicated region
        $region13: #{forward.3} parent=11 // pred_check
          %p429 = pneg %p73
        $region14: #{forward.3} parent=11 // pred_check_branch
          %431 = sbr.rel (%p429) target = $region16
        $region15: #{forward.3} parent=11 // pred_region
          _
        $region16: #{forward.3} parent=11 // pred_fallthru
          _
        // Predicated region
        $region17: #{forward.3} parent=11 // pred_check
          %p432 = pneg %p94
        $region18: #{forward.3} parent=11 // pred_check_branch
          %434 = sbr.rel (%p432) target = $region20
        $region19: #{forward.3} parent=11 // pred_region
          _
        $region20: #{forward.3} parent=11 // pred_fallthru
          _
        // Predicated region
        $region21: #{forward.3} parent=11 // pred_check
          %p435 = pneg %p115
        $region22: #{forward.3} parent=11 // pred_check_branch
          %437 = sbr.rel (%p435) target = $region24
        $region23: #{forward.3} parent=11 // pred_region
          _
        $region24: #{forward.3} parent=11 // pred_fallthru
          _
        // Predicated region
        $region25: #{forward.3} parent=11 // pred_check
          %p438 = pneg %p136
        $region26: #{forward.3} parent=11 // pred_check_branch
          %440 = sbr.rel (%p438) target = $region28
        $region27: #{forward.3} parent=11 // pred_region
          _
        $region28: #{forward.3} parent=11 // pred_fallthru
          _
        // Predicated region
        $region29: #{forward.3} parent=11 // pred_check
          %p441 = pneg %p157
        $region30: #{forward.3} parent=11 // pred_check_branch
          %443 = sbr.rel (%p441) target = $region32
        $region31: #{forward.3} parent=11 // pred_region
          _
        $region32: #{forward.3} parent=11 // pred_fallthru
          _
        // Predicated region
        $region33: #{forward.3} parent=11 // pred_check
          %p444 = pneg %p178
        $region34: #{forward.3} parent=11 // pred_check_branch
          %446 = sbr.rel (%p444) target = $region36
        $region35: #{forward.3} parent=11 // pred_region
          _
        $region36: #{forward.3} parent=11 // pred_fallthru
          _
        // Predicated region
        $region37: #{forward.3} parent=11 // pred_check
          %p447 = pneg %p199
        $region38: #{forward.3} parent=11 // pred_check_branch
          %449 = sbr.rel (%p447) target = $region40
        $region39: #{forward.3} parent=11 // pred_region
          _
        $region40: #{forward.3} parent=11 // pred_fallthru
          _
        // Predicated region
        $region41: #{forward.3} parent=11 // pred_check
          %p450 = pneg %p220
        $region42: #{forward.3} parent=11 // pred_check_branch
          %452 = sbr.rel (%p450) target = $region44
        $region43: #{forward.3} parent=11 // pred_region
          _
        $region44: #{forward.3} parent=11 // pred_fallthru
          _
        // Predicated region
        $region45: #{forward.3} parent=11 // pred_check
          %p453 = pneg %p241
        $region46: #{forward.3} parent=11 // pred_check_branch
          %455 = sbr.rel (%p453) target = $region48
        $region47: #{forward.3} parent=11 // pred_region
          _
        $region48: #{forward.3} parent=11 // pred_fallthru
          _
        // Predicated region
        $region49: #{forward.3} parent=11 // pred_check
          %p456 = pneg %p262
        $region50: #{forward.3} parent=11 // pred_check_branch
          %458 = sbr.rel (%p456) target = $region52
        $region51: #{forward.3} parent=11 // pred_region
          _
        $region52: #{forward.3} parent=11 // pred_fallthru
          _
        // Predicated region
        $region53: #{forward.3} parent=11 // pred_check
          %p459 = pneg %p283
        $region54: #{forward.3} parent=11 // pred_check_branch
          %461 = sbr.rel (%p459) target = $region56
        $region55: #{forward.3} parent=11 // pred_region
          _
        $region56: #{forward.3} parent=11 // pred_fallthru
          _
        // Predicated region
        $region57: #{forward.3} parent=11 // pred_check
          %p462 = pneg %p304
        $region58: #{forward.3} parent=11 // pred_check_branch
          %464 = sbr.rel (%p462) target = $region60
        $region59: #{forward.3} parent=11 // pred_region
          _
        $region60: #{forward.3} parent=11 // pred_fallthru
          _
        // Predicated region
        $region61: #{forward.3} parent=11 // pred_check
          %p465 = pneg %p325
        $region62: #{forward.3} parent=11 // pred_check_branch
          %467 = sbr.rel (%p465) target = $region64
        $region63: #{forward.3} parent=11 // pred_region
          _
        $region64: #{forward.3} parent=11 // pred_fallthru
          _
        // Predicated region
        $region65: #{forward.3} parent=11 // pred_check
          %p468 = pneg %p346
        $region66: #{forward.3} parent=11 // pred_check_branch
          %470 = sbr.rel (%p468) target = $region68
        $region67: #{forward.3} parent=11 // pred_region
          _
        $region68: #{forward.3} parent=11 // pred_fallthru
          _
        // Predicated region
        $region69: #{forward.3} parent=11 // pred_check
          %p471 = pneg %p367
        $region70: #{forward.3} parent=11 // pred_check_branch
          %473 = sbr.rel (%p471) target = $region72
        $region71: #{forward.3} parent=11 // pred_region
          _
        $region72: #{forward.3} parent=11 // pred_fallthru
          _
        // Predicated region
        $region73: #{forward.3} parent=11 // pred_check
          %p474 = pneg %p388
        $region74: #{forward.3} parent=11 // pred_check_branch
          %476 = sbr.rel (%p474) target = $region76
        $region75: #{forward.3} parent=11 // pred_region
          _
        $region76: #{forward.3} parent=11 // pred_fallthru
          _
      $region12: #{forward.3} parent=5 // pred_fallthru
        _
      %p477 = scmp.lt.s32.totalorder %s26, 2
      // Predicated region
      $region77: #{forward.3} parent=5 // pred_check
        %p478 = pneg %p477
      $region78: #{forward.3} parent=5 // pred_check_branch
        %480 = sbr.rel (%p478) target = $region80
      $region79: #{forward.3} parent=5 // pred_region
        // Predicated region
        $region81: #{forward.3} parent=79 // pred_check
          %p481 = pneg %p46
        $region82: #{forward.3} parent=79 // pred_check_branch
          %483 = sbr.rel (%p481) target = $region84
        $region83: #{forward.3} parent=79 // pred_region
          %p484 = scmp.lt.s32.totalorder %s26, 1
          %s485 = scalar_select %p484, %s26, 1
          %s486 = smul.addr %s485, 5
          %s487 = smul.addr %s486, 8
          %s488 = scalar_lea.vmem %s0, %s487
        $region84: #{forward.3} parent=79 // pred_fallthru
          _
      $region80: #{forward.3} parent=5 // pred_fallthru
        _
      %p489 = scmp.le.s32.totalorder 1, %s26
      %p490 = scmp.lt.s32.totalorder %s26, 3
      %p491 = pnand %p489, %p490
      %p492 = pneg %p491
      // Predicated region
      $region85: #{forward.3} parent=5 // pred_check
        _
      $region86: #{forward.3} parent=5 // pred_check_branch
        %494 = sbr.rel (%p491) target = $region88
      $region87: #{forward.3} parent=5 // pred_region
        %s495 = ssub.s32 %s26, 1
        %p496 = scmp.lt.s32.totalorder %s31, 1
        %s497 = scalar_select %p496, %s31, 1
        %s498 = smul.addr %s497, 5
        %s499 = smul.addr %s498, 8
        %s500 = scalar_lea.vmem %s0, %s499
        %p501 = pneg %p52
        %p502 = pneg %p49
        %p503 = pneg %p73
        %p504 = pneg %p70
        %p505 = pneg %p94
        %p506 = pneg %p91
        %p507 = pneg %p115
        %p508 = pneg %p112
        %p509 = pneg %p136
        %p510 = pneg %p133
        %p511 = pneg %p157
        %p512 = pneg %p154
        %p513 = pneg %p178
        %p514 = pneg %p175
        %p515 = pneg %p199
        %p516 = pneg %p196
        %p517 = pneg %p220
        %p518 = pneg %p217
        %p519 = pneg %p241
        %p520 = pneg %p238
        %p521 = pneg %p262
        %p522 = pneg %p259
        %p523 = pneg %p283
        %p524 = pneg %p280
        %p525 = pneg %p304
        %p526 = pneg %p301
        %p527 = pneg %p325
        %p528 = pneg %p322
        %p529 = pneg %p346
        %p530 = pneg %p343
        %p531 = pneg %p367
        %p532 = pneg %p364
        %p533 = pneg %p388
        %p534 = pneg %p385
        %p535 = pneg %p414
        %p536 = pneg %p411
        %s537 = sand.u32 %s401, 1
        %s538 = scalar_lea.sflag [#allocation3], %s537
        %s539 = sand.u32 %s401, 1
        %s540 = scalar_lea.vmem [#allocation2], %s539
        %p541 = scmp.lt.s32.totalorder %s31, 1
        %s542 = scalar_select %p541, %s31, 1
        %s543 = smul.addr %s542, 5
        %s544 = smul.addr %s543, 8
        %s545 = scalar_lea.vmem %s0, %s544
        %v547 = vld [vmem:[%s545] sm:$0xff]
        %v548 = vld [vmem:[%s545 + $0x8] sm:$0xff]
        %v549 = vld [vmem:[%s545 + $0x10] sm:$0xff]
        %v550 = vld [vmem:[%s545 + $0x18] sm:$0xff]
        %v551 = vld [vmem:[%s545 + $0x20] sm:$0xff]
        %v552 = vlaneseq
        %v553 = vand.u32 %v552, 127
        %vm554 = vcmp.lt.s32.totalorder %v553, 33
        %v555 = vld [vmem:[%s1] sm:$0x1]
        %v556 = vld [vmem:[%s2] sm:$0x1]
        %vm557 = vcmask 261120
        %v558 = vsel %vm557, %v547, 0.0
        %559 = vadd.xlane.f32.xlu0 %v558
        %v560 = vpop.xlane.xlu0 %559
        %v561 = vsel %vm557, %v548, 0.0
        %562 = vadd.xlane.f32.xlu0 %v561
        %v563 = vpop.xlane.xlu0 %562
        %v564 = vsel %vm557, %v549, 0.0
        %565 = vadd.xlane.f32.xlu0 %v564
        %v566 = vpop.xlane.xlu0 %565
        %v567 = vsel %vm557, %v550, 0.0
        %568 = vadd.xlane.f32.xlu0 %v567
        %v569 = vpop.xlane.xlu0 %568
        %v570 = vsel %vm557, %v551, 0.0
        %571 = vadd.xlane.f32.xlu0 %v570
        %v572 = vpop.xlane.xlu0 %571
        %v573 = vrcp.pop 32.0
        %v574 = vmul.f32 %v560, %v573
        %v575 = vmul.f32 %v563, %v573
        %v576 = vmul.f32 %v566, %v573
        %v577 = vmul.f32 %v569, %v573
        %v578 = vmul.f32 %v572, %v573
        %v579 = vsub.f32 %v547, %v574
        %v580 = vsub.f32 %v548, %v575
        %v581 = vsub.f32 %v549, %v576
        %v582 = vsub.f32 %v550, %v577
        %v583 = vsub.f32 %v551, %v578
        %v584 = vmul.f32 %v579, %v579
        %v585 = vmul.f32 %v580, %v580
        %v586 = vmul.f32 %v581, %v581
        %v587 = vmul.f32 %v582, %v582
        %v588 = vmul.f32 %v583, %v583
        %v589 = vsel %vm557, %v584, 0.0
        %590 = vadd.xlane.f32.xlu0 %v589
        %v591 = vpop.xlane.xlu0 %590
        %v592 = vsel %vm557, %v585, 0.0
        %593 = vadd.xlane.f32.xlu0 %v592
        %v594 = vpop.xlane.xlu0 %593
        %v595 = vsel %vm557, %v586, 0.0
        %596 = vadd.xlane.f32.xlu0 %v595
        %v597 = vpop.xlane.xlu0 %596
        %v598 = vsel %vm557, %v587, 0.0
        %599 = vadd.xlane.f32.xlu0 %v598
        %v600 = vpop.xlane.xlu0 %599
        %v601 = vsel %vm557, %v588, 0.0
        %602 = vadd.xlane.f32.xlu0 %v601
        %v603 = vpop.xlane.xlu0 %602
        %v604 = vmul.f32 %v591, %v573
        %v605 = vmul.f32 %v594, %v573
        %v606 = vmul.f32 %v597, %v573
        %v607 = vmul.f32 %v600, %v573
        %v608 = vmul.f32 %v603, %v573
        %v609 = vadd.f32 %v604, 1e-06
        %v610 = vadd.f32 %v605, 1e-06
        %v611 = vadd.f32 %v606, 1e-06
        %v612 = vadd.f32 %v607, 1e-06
        %v613 = vadd.f32 %v608, 1e-06
        %v614 = vrsqrt.pop %v609
        %v615 = vrsqrt.pop %v610
        %v616 = vrsqrt.pop %v611
        %v617 = vrsqrt.pop %v612
        %v618 = vrsqrt.pop %v613
        %v619 = vmul.f32 %v579, %v614
        %v620 = vmul.f32 %v580, %v615
        %v621 = vmul.f32 %v581, %v616
        %v622 = vmul.f32 %v582, %v617
        %v623 = vmul.f32 %v583, %v618
        %v625 = vlaneseq
        %v626 = vshrl.u32 %v625, 7
        %v627 = vsub.s32 0, %v626
        %v628 = vrot.slane %v555, %v627
        %v630 = vmul.f32 %v619, %v628
        %v631 = vmul.f32 %v620, %v628
        %v632 = vmul.f32 %v621, %v628
        %v633 = vmul.f32 %v622, %v628
        %v634 = vmul.f32 %v623, %v628
        %v636 = vlaneseq
        %v637 = vshrl.u32 %v636, 7
        %v638 = vsub.s32 0, %v637
        %v639 = vrot.slane %v556, %v638
        %v641 = vadd.f32 %v630, %v639
        %v642 = vadd.f32 %v631, %v639
        %v643 = vadd.f32 %v632, %v639
        %v644 = vadd.f32 %v633, %v639
        %v645 = vadd.f32 %v634, %v639
        %v646 = vpack.c.bf16 %v642, %v641
        %v647 = vpack.c.bf16 %v644, %v643
        %v648 = vpack.c.bf16 %v645, %v645
        %v649 = vld [vmem:[%s3] sm:$0xf]
        %v650 = vld [vmem:[%s3 + $0x4] sm:$0xf]
        %v651 = vld [vmem:[%s3 + $0x8] sm:$0xf]
        %v652 = vld [vmem:[%s3 + $0xc] sm:$0xf]
        %v653 = vld [vmem:[%s4] sm:$0x1]
        %v655 = vlaneseq
        %v656 = vshrl.u32 %v655, 7
        %v657 = vsub.s32 0, %v656
        %v658 = vrot.slane %v653, %v657
        %v664 = vunpack.c.l.b16 %v649
        %v665 = vunpack.c.l.b16 %v650
        %v666 = vunpack.c.l.b16 %v651
        %v667 = vunpack.c.l.b16 %v652
        %v668 = vpack.c.b16 %v665, %v664
        %v669 = vpack.c.b16 %v667, %v666
        %v673 = vsel %vm557, %v646, 0
        %v676 = vsel %vm557, %v647, 0
        %v679 = vsel %vm557, %v648, 0
        %681 = vmatprep.subr.bf16.mxu0 0
        %682 = vmatpush1.bf16.msra.mxu0 0
        %683 = vmatprep.subr.bf16.mxu0 0
        %684 = vmatpush1.bf16.msra.mxu0 0
        %685 = vmatprep.subr.bf16.mxu0 0
        %686 = vmatpush1.bf16.msra.mxu0 0
        %687 = vmatprep.subr.bf16.mxu0 0
        %688 = vmatpush1.bf16.msra.mxu0 0
        %689 = vmatprep.subr.bf16.mxu0 0
        %690 = vmatpush1.bf16.msra.mxu0 0
        %691 = vmatprep.subr.bf16.mxu0 0
        %692 = vmatpush1.bf16.msra.mxu0 0
        %693 = vmatprep.subr.bf16.mxu0 0
        %694 = vmatpush1.bf16.msra.mxu0 %v669
        %695 = vmatprep.subr.bf16.mxu0 0
        %696 = vmatpush1.bf16.msra.mxu0 %v668
        %697 = vmatprep.subr.bf16.mxu0 0
        %698 = vmatpush2.bf16.msra.mxu0 0
        %699 = vmatprep.subr.bf16.mxu0 0
        %700 = vmatpush2.bf16.msra.mxu0 0
        %701 = vmatprep.subr.bf16.mxu0 0
        %702 = vmatpush2.bf16.msra.mxu0 0
        %703 = vmatprep.subr.bf16.mxu0 0
        %704 = vmatpush2.bf16.msra.mxu0 0
        %705 = vmatprep.subr.bf16.mxu0 0
        %706 = vmatpush2.bf16.msra.mxu0 0
        %707 = vmatprep.subr.bf16.mxu0 0
        %708 = vmatpush2.bf16.msra.mxu0 0
        %709 = vmatprep.subr.bf16.mxu0 0
        %710 = vmatpush2.bf16.msra.mxu0 0
        %711 = vmatprep.subr.bf16.mxu0 0
        %712 = vmatpush2.bf16.msra.mxu0 0
        %713 = vmatprep.mubr.bf16.mxu0 0
        %714 = vmatmul.mubr.bf16.gmra.mxu0 %v673
        %v715 = vpop.f32.mrf.mxu0
        %v716 = vadd.f32 %v658, %v715
        %v717 = vpop.f32.mrf.mxu0
        %v718 = vpop.f32.mrf.mxu0
        %v719 = vadd.f32 %v658, %v718
        %v720 = vpop.f32.mrf.mxu0
        %721 = vmatprep.mubr.bf16.mxu0 0
        %722 = vmatmul.mubr.bf16.gmra.mxu0 %v676
        %v723 = vpop.f32.mrf.mxu0
        %v724 = vadd.f32 %v658, %v723
        %v725 = vpop.f32.mrf.mxu0
        %v726 = vpop.f32.mrf.mxu0
        %v727 = vadd.f32 %v658, %v726
        %v728 = vpop.f32.mrf.mxu0
        %729 = vmatprep.mubr.bf16.mxu0 0
        %730 = vmatmul.mubr.bf16.gmra.mxu0 %v679
        %v731 = vpop.f32.mrf.mxu0
        %v732 = vadd.f32 %v658, %v731
        %v733 = vpop.f32.mrf.mxu0
        %v734 = vpop.f32.mrf.mxu0
        %v735 = vpop.f32.mrf.mxu0
        %736 = vdwg.mxu0
        %v737 = vmul.f32 %v716, 0.35355338
        %v738 = vmul.f32 %v719, 0.35355338
        %v739 = vmul.f32 %v724, 0.35355338
        %v740 = vmul.f32 %v727, 0.35355338
        %v741 = vmul.f32 %v732, 0.35355338
        %v742 = vpack.c.bf16 %v738, %v737
        %v743 = vpack.c.bf16 %v740, %v739
        %v744 = vpack.c.bf16 %v741, %v741
        %v745 = vpack.c.bf16 %v719, %v716
        %v746 = vpack.c.bf16 %v727, %v724
        %v747 = vpack.c.bf16 %v732, %v732
        %751 = vrot.lane.b32.xlu0 %v745, 96
        %v752 = vpop.permute.xlu0 %751
        %753 = vrot.lane.b32.xlu0 %v746, 96
        %v754 = vpop.permute.xlu0 %753
        %755 = vrot.lane.b32.xlu0 %v747, 96
        %v756 = vpop.permute.xlu0 %755
        %vm757 = vcmask 64512
        %v759 = vsel %vm757, %v742, 0
        %v762 = vsel %vm757, %v743, 0
        %v765 = vsel %vm757, %v744, 0
        %v768 = vsel %vm757, %v752, 0
        %v771 = vsel %vm757, %v754, 0
        %v774 = vsel %vm757, %v756, 0
        %776 = vmatprep.subr.bf16.mxu0 0
        %777 = vmatpush1.bf16.xpose.msra.mxu0 0
        %778 = vmatprep.subr.bf16.mxu0 0
        %779 = vmatpush1.bf16.xpose.msra.mxu0 0
        %780 = vmatprep.subr.bf16.mxu0 0
        %781 = vmatpush1.bf16.xpose.msra.mxu0 0
        %782 = vmatprep.subr.bf16.mxu0 0
        %783 = vmatpush1.bf16.xpose.msra.mxu0 0
        %784 = vmatprep.subr.bf16.mxu0 0
        %785 = vmatpush1.bf16.xpose.msra.mxu0 0
        %786 = vmatprep.subr.bf16.mxu0 0
        %787 = vmatpush1.bf16.xpose.msra.mxu0 %v774
        %788 = vmatprep.subr.bf16.mxu0 0
        %789 = vmatpush1.bf16.xpose.msra.mxu0 %v771
        %790 = vmatprep.subr.bf16.mxu0 0
        %791 = vmatpush1.bf16.xpose.msra.mxu0 %v768
        %792 = vmatprep.subr.bf16.mxu0 0
        %793 = vmatpush2.bf16.xpose.msra.mxu0 0
        %794 = vmatprep.subr.bf16.mxu0 0
        %795 = vmatpush2.bf16.xpose.msra.mxu0 0
        %796 = vmatprep.subr.bf16.mxu0 0
        %797 = vmatpush2.bf16.xpose.msra.mxu0 0
        %798 = vmatprep.subr.bf16.mxu0 0
        %799 = vmatpush2.bf16.xpose.msra.mxu0 0
        %800 = vmatprep.subr.bf16.mxu0 0
        %801 = vmatpush2.bf16.xpose.msra.mxu0 0
        %802 = vmatprep.subr.bf16.mxu0 0
        %803 = vmatpush2.bf16.xpose.msra.mxu0 0
        %804 = vmatprep.subr.bf16.mxu0 0
        %805 = vmatpush2.bf16.xpose.msra.mxu0 0
        %806 = vmatprep.subr.bf16.mxu0 0
        %807 = vmatpush2.bf16.xpose.msra.mxu0 0
        %808 = vmatprep.mubr.bf16.mxu0 0
        %809 = vmatmul.mubr.bf16.gmra.mxu0 %v759
        %v810 = vpop.f32.mrf.mxu0
        %v811 = vadd.f32 0.0, %v810
        %v812 = vpop.f32.mrf.mxu0
        %v813 = vpop.f32.mrf.mxu0
        %v814 = vadd.f32 0.0, %v813
        %v815 = vpop.f32.mrf.mxu0
        %816 = vmatprep.mubr.bf16.mxu0 0
        %817 = vmatmul.mubr.bf16.gmra.mxu0 %v762
        %v818 = vpop.f32.mrf.mxu0
        %v819 = vadd.f32 0.0, %v818
        %v820 = vpop.f32.mrf.mxu0
        %v821 = vpop.f32.mrf.mxu0
        %v822 = vadd.f32 0.0, %v821
        %v823 = vpop.f32.mrf.mxu0
        %824 = vmatprep.mubr.bf16.mxu0 0
        %825 = vmatmul.mubr.bf16.gmra.mxu0 %v765
        %v826 = vpop.f32.mrf.mxu0
        %v827 = vadd.f32 0.0, %v826
        %v828 = vpop.f32.mrf.mxu0
        %v829 = vpop.f32.mrf.mxu0
        %v830 = vpop.f32.mrf.mxu0
        %831 = vdwg.mxu0
        %v832 = vsel %vm554, %v811, -1e+30
        %v833 = vsel %vm554, %v814, -1e+30
        %v834 = vsel %vm554, %v819, -1e+30
        %v835 = vsel %vm554, %v822, -1e+30
        %v836 = vsel %vm554, %v827, -1e+30
        %vm837 = vcmask 326656
        %v838 = vsel %vm837, %v832, -inf
        %839 = vmax.xlane.f32.xlu0 %v838
        %v840 = vpop.xlane.xlu0 %839
        %v841 = vsel %vm837, %v833, -inf
        %842 = vmax.xlane.f32.xlu0 %v841
        %v843 = vpop.xlane.xlu0 %842
        %v844 = vsel %vm837, %v834, -inf
        %845 = vmax.xlane.f32.xlu0 %v844
        %v846 = vpop.xlane.xlu0 %845
        %v847 = vsel %vm837, %v835, -inf
        %848 = vmax.xlane.f32.xlu0 %v847
        %v849 = vpop.xlane.xlu0 %848
        %v850 = vsel %vm837, %v836, -inf
        %851 = vmax.xlane.f32.xlu0 %v850
        %v852 = vpop.xlane.xlu0 %851
        %v853 = vsub.f32 %v832, %v840
        %v854 = vsub.f32 %v833, %v843
        %v855 = vsub.f32 %v834, %v846
        %v856 = vsub.f32 %v835, %v849
        %v857 = vsub.f32 %v836, %v852
        %v858 = vmul.f32 %v853, 1.442695
        %v859 = vpow.pop %v858
        %v860 = vmul.f32 %v854, 1.442695
        %v861 = vpow.pop %v860
        %v862 = vmul.f32 %v855, 1.442695
        %v863 = vpow.pop %v862
        %v864 = vmul.f32 %v856, 1.442695
        %v865 = vpow.pop %v864
        %v866 = vmul.f32 %v857, 1.442695
        %v867 = vpow.pop %v866
        %v868 = vsel %vm837, %v859, 0.0
        %869 = vadd.xlane.f32.xlu0 %v868
        %v870 = vpop.xlane.xlu0 %869
        %v871 = vsel %vm837, %v861, 0.0
        %872 = vadd.xlane.f32.xlu0 %v871
        %v873 = vpop.xlane.xlu0 %872
        %v874 = vsel %vm837, %v863, 0.0
        %875 = vadd.xlane.f32.xlu0 %v874
        %v876 = vpop.xlane.xlu0 %875
        %v877 = vsel %vm837, %v865, 0.0
        %878 = vadd.xlane.f32.xlu0 %v877
        %v879 = vpop.xlane.xlu0 %878
        %v880 = vsel %vm837, %v867, 0.0
        %881 = vadd.xlane.f32.xlu0 %v880
        %v882 = vpop.xlane.xlu0 %881
        %v883 = vrcp.pop %v870
        %v884 = vrcp.pop %v873
        %v885 = vrcp.pop %v876
        %v886 = vrcp.pop %v879
        %v887 = vrcp.pop %v882
        %v888 = vmul.f32 %v859, %v883
        %v889 = vmul.f32 %v861, %v884
        %v890 = vmul.f32 %v863, %v885
        %v891 = vmul.f32 %v865, %v886
        %v892 = vmul.f32 %v867, %v887
        %v893 = vpack.c.bf16 %v889, %v888
        %v894 = vpack.c.bf16 %v891, %v890
        %v895 = vpack.c.bf16 %v892, %v892
        %896 = vrot.lane.b32.xlu0 %v745, 64
        %v897 = vpop.permute.xlu0 %896
        %898 = vrot.lane.b32.xlu0 %v746, 64
        %v899 = vpop.permute.xlu0 %898
        %900 = vrot.lane.b32.xlu0 %v747, 64
        %v901 = vpop.permute.xlu0 %900
        %v905 = vsel %vm837, %v893, 0
        %v908 = vsel %vm837, %v894, 0
        %v911 = vsel %vm837, %v895, 0
        %vm913 = vcmask 1043456
        %v915 = vsel %vm913, %v901, 0
        %917 = vmatprep.subr.bf16.mxu0 0
        %918 = vmatpush1.bf16.msra.mxu0 0
        %919 = vmatprep.subr.bf16.mxu0 0
        %920 = vmatpush1.bf16.msra.mxu0 0
        %921 = vmatprep.subr.bf16.mxu0 0
        %922 = vmatpush1.bf16.msra.mxu0 0
        %923 = vmatprep.subr.bf16.mxu0 0
        %924 = vmatpush1.bf16.msra.mxu0 0
        %925 = vmatprep.subr.bf16.mxu0 0
        %926 = vmatpush1.bf16.msra.mxu0 0
        %927 = vmatprep.subr.bf16.mxu0 0
        %928 = vmatpush1.bf16.msra.mxu0 %v915
        %929 = vmatprep.subr.bf16.mxu0 0
        %930 = vmatpush1.bf16.msra.mxu0 %v899
        %931 = vmatprep.subr.bf16.mxu0 0
        %932 = vmatpush1.bf16.msra.mxu0 %v897
        %933 = vmatprep.subr.bf16.mxu0 0
        %934 = vmatpush2.bf16.msra.mxu0 0
        %935 = vmatprep.subr.bf16.mxu0 0
        %936 = vmatpush2.bf16.msra.mxu0 0
        %937 = vmatprep.subr.bf16.mxu0 0
        %938 = vmatpush2.bf16.msra.mxu0 0
        %939 = vmatprep.subr.bf16.mxu0 0
        %940 = vmatpush2.bf16.msra.mxu0 0
        %941 = vmatprep.subr.bf16.mxu0 0
        %942 = vmatpush2.bf16.msra.mxu0 0
        %943 = vmatprep.subr.bf16.mxu0 0
        %944 = vmatpush2.bf16.msra.mxu0 0
        %945 = vmatprep.subr.bf16.mxu0 0
        %946 = vmatpush2.bf16.msra.mxu0 0
        %947 = vmatprep.subr.bf16.mxu0 0
        %948 = vmatpush2.bf16.msra.mxu0 0
        %949 = vmatprep.mubr.bf16.mxu0 0
        %950 = vmatmul.mubr.bf16.gmra.mxu0 %v905
        %v951 = vpop.f32.mrf.mxu0
        %v952 = vadd.f32 0.0, %v951
        %v953 = vpop.f32.mrf.mxu0
        %v954 = vpop.f32.mrf.mxu0
        %v955 = vadd.f32 0.0, %v954
        %v956 = vpop.f32.mrf.mxu0
        %957 = vmatprep.mubr.bf16.mxu0 0
        %958 = vmatmul.mubr.bf16.gmra.mxu0 %v908
        %v959 = vpop.f32.mrf.mxu0
        %v960 = vadd.f32 0.0, %v959
        %v961 = vpop.f32.mrf.mxu0
        %v962 = vpop.f32.mrf.mxu0
        %v963 = vadd.f32 0.0, %v962
        %v964 = vpop.f32.mrf.mxu0
        %965 = vmatprep.mubr.bf16.mxu0 0
        %966 = vmatmul.mubr.bf16.gmra.mxu0 %v911
        %v967 = vpop.f32.mrf.mxu0
        %v968 = vadd.f32 0.0, %v967
        %v969 = vpop.f32.mrf.mxu0
        %v970 = vpop.f32.mrf.mxu0
        %v971 = vpop.f32.mrf.mxu0
        %972 = vdwg.mxu0
        %976 = vrot.lane.b32.xlu0 %v742, 120
        %v977 = vpop.permute.xlu0 %976
        %978 = vrot.lane.b32.xlu0 %v743, 120
        %v979 = vpop.permute.xlu0 %978
        %980 = vrot.lane.b32.xlu0 %v744, 120
        %v981 = vpop.permute.xlu0 %980
        %982 = vrot.lane.b32.xlu0 %v745, 88
        %v983 = vpop.permute.xlu0 %982
        %984 = vrot.lane.b32.xlu0 %v746, 88
        %v985 = vpop.permute.xlu0 %984
        %986 = vrot.lane.b32.xlu0 %v747, 88
        %v987 = vpop.permute.xlu0 %986
        %v989 = vsel %vm757, %v977, 0
        %v992 = vsel %vm757, %v979, 0
        %v995 = vsel %vm757, %v981, 0
        %v998 = vsel %vm757, %v983, 0
        %v1001 = vsel %vm757, %v985, 0
        %v1004 = vsel %vm757, %v987, 0
        %1006 = vmatprep.subr.bf16.mxu0 0
        %1007 = vmatpush1.bf16.xpose.msra.mxu0 0
        %1008 = vmatprep.subr.bf16.mxu0 0
        %1009 = vmatpush1.bf16.xpose.msra.mxu0 0
        %1010 = vmatprep.subr.bf16.mxu0 0
        %1011 = vmatpush1.bf16.xpose.msra.mxu0 0
        %1012 = vmatprep.subr.bf16.mxu0 0
        %1013 = vmatpush1.bf16.xpose.msra.mxu0 0
        %1014 = vmatprep.subr.bf16.mxu0 0
        %1015 = vmatpush1.bf16.xpose.msra.mxu0 0
        %1016 = vmatprep.subr.bf16.mxu0 0
        %1017 = vmatpush1.bf16.xpose.msra.mxu0 %v1004
        %1018 = vmatprep.subr.bf16.mxu0 0
        %1019 = vmatpush1.bf16.xpose.msra.mxu0 %v1001
        %1020 = vmatprep.subr.bf16.mxu0 0
        %1021 = vmatpush1.bf16.xpose.msra.mxu0 %v998
        %1022 = vmatprep.subr.bf16.mxu0 0
        %1023 = vmatpush2.bf16.xpose.msra.mxu0 0
        %1024 = vmatprep.subr.bf16.mxu0 0
        %1025 = vmatpush2.bf16.xpose.msra.mxu0 0
        %1026 = vmatprep.subr.bf16.mxu0 0
        %1027 = vmatpush2.bf16.xpose.msra.mxu0 0
        %1028 = vmatprep.subr.bf16.mxu0 0
        %1029 = vmatpush2.bf16.xpose.msra.mxu0 0
        %1030 = vmatprep.subr.bf16.mxu0 0
        %1031 = vmatpush2.bf16.xpose.msra.mxu0 0
        %1032 = vmatprep.subr.bf16.mxu0 0
        %1033 = vmatpush2.bf16.xpose.msra.mxu0 0
        %1034 = vmatprep.subr.bf16.mxu0 0
        %1035 = vmatpush2.bf16.xpose.msra.mxu0 0
        %1036 = vmatprep.subr.bf16.mxu0 0
        %1037 = vmatpush2.bf16.xpose.msra.mxu0 0
        %1038 = vmatprep.mubr.bf16.mxu0 0
        %1039 = vmatmul.mubr.bf16.gmra.mxu0 %v989
        %v1040 = vpop.f32.mrf.mxu0
        %v1041 = vadd.f32 0.0, %v1040
        %v1042 = vpop.f32.mrf.mxu0
        %v1043 = vpop.f32.mrf.mxu0
        %v1044 = vadd.f32 0.0, %v1043
        %v1045 = vpop.f32.mrf.mxu0
        %1046 = vmatprep.mubr.bf16.mxu0 0
        %1047 = vmatmul.mubr.bf16.gmra.mxu0 %v992
        %v1048 = vpop.f32.mrf.mxu0
        %v1049 = vadd.f32 0.0, %v1048
        %v1050 = vpop.f32.mrf.mxu0
        %v1051 = vpop.f32.mrf.mxu0
        %v1052 = vadd.f32 0.0, %v1051
        %v1053 = vpop.f32.mrf.mxu0
        %1054 = vmatprep.mubr.bf16.mxu0 0
        %1055 = vmatmul.mubr.bf16.gmra.mxu0 %v995
        %v1056 = vpop.f32.mrf.mxu0
        %v1057 = vadd.f32 0.0, %v1056
        %v1058 = vpop.f32.mrf.mxu0
        %v1059 = vpop.f32.mrf.mxu0
        %v1060 = vpop.f32.mrf.mxu0
        %1061 = vdwg.mxu0
        %v1062 = vsel %vm554, %v1041, -1e+30
        %v1063 = vsel %vm554, %v1044, -1e+30
        %v1064 = vsel %vm554, %v1049, -1e+30
        %v1065 = vsel %vm554, %v1052, -1e+30
        %v1066 = vsel %vm554, %v1057, -1e+30
        %v1067 = vsel %vm837, %v1062, -inf
        %1068 = vmax.xlane.f32.xlu0 %v1067
        %v1069 = vpop.xlane.xlu0 %1068
        %v1070 = vsel %vm837, %v1063, -inf
        %1071 = vmax.xlane.f32.xlu0 %v1070
        %v1072 = vpop.xlane.xlu0 %1071
        %v1073 = vsel %vm837, %v1064, -inf
        %1074 = vmax.xlane.f32.xlu0 %v1073
        %v1075 = vpop.xlane.xlu0 %1074
        %v1076 = vsel %vm837, %v1065, -inf
        %1077 = vmax.xlane.f32.xlu0 %v1076
        %v1078 = vpop.xlane.xlu0 %1077
        %v1079 = vsel %vm837, %v1066, -inf
        %1080 = vmax.xlane.f32.xlu0 %v1079
        %v1081 = vpop.xlane.xlu0 %1080
        %v1082 = vsub.f32 %v1062, %v1069
        %v1083 = vsub.f32 %v1063, %v1072
        %v1084 = vsub.f32 %v1064, %v1075
        %v1085 = vsub.f32 %v1065, %v1078
        %v1086 = vsub.f32 %v1066, %v1081
        %v1087 = vmul.f32 %v1082, 1.442695
        %v1088 = vpow.pop %v1087
        %v1089 = vmul.f32 %v1083, 1.442695
        %v1090 = vpow.pop %v1089
        %v1091 = vmul.f32 %v1084, 1.442695
        %v1092 = vpow.pop %v1091
        %v1093 = vmul.f32 %v1085, 1.442695
        %v1094 = vpow.pop %v1093
        %v1095 = vmul.f32 %v1086, 1.442695
        %v1096 = vpow.pop %v1095
        %v1097 = vsel %vm837, %v1088, 0.0
        %1098 = vadd.xlane.f32.xlu0 %v1097
        %v1099 = vpop.xlane.xlu0 %1098
        %v1100 = vsel %vm837, %v1090, 0.0
        %1101 = vadd.xlane.f32.xlu0 %v1100
        %v1102 = vpop.xlane.xlu0 %1101
        %v1103 = vsel %vm837, %v1092, 0.0
        %1104 = vadd.xlane.f32.xlu0 %v1103
        %v1105 = vpop.xlane.xlu0 %1104
        %v1106 = vsel %vm837, %v1094, 0.0
        %1107 = vadd.xlane.f32.xlu0 %v1106
        %v1108 = vpop.xlane.xlu0 %1107
        %v1109 = vsel %vm837, %v1096, 0.0
        %1110 = vadd.xlane.f32.xlu0 %v1109
        %v1111 = vpop.xlane.xlu0 %1110
        %v1112 = vrcp.pop %v1099
        %v1113 = vrcp.pop %v1102
        %v1114 = vrcp.pop %v1105
        %v1115 = vrcp.pop %v1108
        %v1116 = vrcp.pop %v1111
        %v1117 = vmul.f32 %v1088, %v1112
        %v1118 = vmul.f32 %v1090, %v1113
        %v1119 = vmul.f32 %v1092, %v1114
        %v1120 = vmul.f32 %v1094, %v1115
        %v1121 = vmul.f32 %v1096, %v1116
        %v1122 = vpack.c.bf16 %v1118, %v1117
        %v1123 = vpack.c.bf16 %v1120, %v1119
        %v1124 = vpack.c.bf16 %v1121, %v1121
        %1125 = vrot.lane.b32.xlu0 %v745, 56
        %v1126 = vpop.permute.xlu0 %1125
        %1127 = vrot.lane.b32.xlu0 %v746, 56
        %v1128 = vpop.permute.xlu0 %1127
        %1129 = vrot.lane.b32.xlu0 %v747, 56
        %v1130 = vpop.permute.xlu0 %1129
        %v1134 = vsel %vm837, %v1122, 0
        %v1137 = vsel %vm837, %v1123, 0
        %v1140 = vsel %vm837, %v1124, 0
        %v1143 = vsel %vm913, %v1130, 0
        %1145 = vmatprep.subr.bf16.mxu0 0
        %1146 = vmatpush1.bf16.msra.mxu0 0
        %1147 = vmatprep.subr.bf16.mxu0 0
        %1148 = vmatpush1.bf16.msra.mxu0 0
        %1149 = vmatprep.subr.bf16.mxu0 0
        %1150 = vmatpush1.bf16.msra.mxu0 0
        %1151 = vmatprep.subr.bf16.mxu0 0
        %1152 = vmatpush1.bf16.msra.mxu0 0
        %1153 = vmatprep.subr.bf16.mxu0 0
        %1154 = vmatpush1.bf16.msra.mxu0 0
        %1155 = vmatprep.subr.bf16.mxu0 0
        %1156 = vmatpush1.bf16.msra.mxu0 %v1143
        %1157 = vmatprep.subr.bf16.mxu0 0
        %1158 = vmatpush1.bf16.msra.mxu0 %v1128
        %1159 = vmatprep.subr.bf16.mxu0 0
        %1160 = vmatpush1.bf16.msra.mxu0 %v1126
        %1161 = vmatprep.subr.bf16.mxu0 0
        %1162 = vmatpush2.bf16.msra.mxu0 0
        %1163 = vmatprep.subr.bf16.mxu0 0
        %1164 = vmatpush2.bf16.msra.mxu0 0
        %1165 = vmatprep.subr.bf16.mxu0 0
        %1166 = vmatpush2.bf16.msra.mxu0 0
        %1167 = vmatprep.subr.bf16.mxu0 0
        %1168 = vmatpush2.bf16.msra.mxu0 0
        %1169 = vmatprep.subr.bf16.mxu0 0
        %1170 = vmatpush2.bf16.msra.mxu0 0
        %1171 = vmatprep.subr.bf16.mxu0 0
        %1172 = vmatpush2.bf16.msra.mxu0 0
        %1173 = vmatprep.subr.bf16.mxu0 0
        %1174 = vmatpush2.bf16.msra.mxu0 0
        %1175 = vmatprep.subr.bf16.mxu0 0
        %1176 = vmatpush2.bf16.msra.mxu0 0
        %1177 = vmatprep.mubr.bf16.mxu0 0
        %1178 = vmatmul.mubr.bf16.gmra.mxu0 %v1134
        %v1179 = vpop.f32.mrf.mxu0
        %v1180 = vadd.f32 0.0, %v1179
        %v1181 = vpop.f32.mrf.mxu0
        %v1182 = vpop.f32.mrf.mxu0
        %v1183 = vadd.f32 0.0, %v1182
        %v1184 = vpop.f32.mrf.mxu0
        %1185 = vmatprep.mubr.bf16.mxu0 0
        %1186 = vmatmul.mubr.bf16.gmra.mxu0 %v1137
        %v1187 = vpop.f32.mrf.mxu0
        %v1188 = vadd.f32 0.0, %v1187
        %v1189 = vpop.f32.mrf.mxu0
        %v1190 = vpop.f32.mrf.mxu0
        %v1191 = vadd.f32 0.0, %v1190
        %v1192 = vpop.f32.mrf.mxu0
        %1193 = vmatprep.mubr.bf16.mxu0 0
        %1194 = vmatmul.mubr.bf16.gmra.mxu0 %v1140
        %v1195 = vpop.f32.mrf.mxu0
        %v1196 = vadd.f32 0.0, %v1195
        %v1197 = vpop.f32.mrf.mxu0
        %v1198 = vpop.f32.mrf.mxu0
        %v1199 = vpop.f32.mrf.mxu0
        %1200 = vdwg.mxu0
        %1201 = vrot.lane.b32.xlu0 %v742, 112
        %v1202 = vpop.permute.xlu0 %1201
        %1203 = vrot.lane.b32.xlu0 %v743, 112
        %v1204 = vpop.permute.xlu0 %1203
        %1205 = vrot.lane.b32.xlu0 %v744, 112
        %v1206 = vpop.permute.xlu0 %1205
        %1207 = vrot.lane.b32.xlu0 %v745, 80
        %v1208 = vpop.permute.xlu0 %1207
        %1209 = vrot.lane.b32.xlu0 %v746, 80
        %v1210 = vpop.permute.xlu0 %1209
        %1211 = vrot.lane.b32.xlu0 %v747, 80
        %v1212 = vpop.permute.xlu0 %1211
        %v1214 = vsel %vm757, %v1202, 0
        %v1217 = vsel %vm757, %v1204, 0
        %v1220 = vsel %vm757, %v1206, 0
        %v1223 = vsel %vm757, %v1208, 0
        %v1226 = vsel %vm757, %v1210, 0
        %v1229 = vsel %vm757, %v1212, 0
        %1231 = vmatprep.subr.bf16.mxu0 0
        %1232 = vmatpush1.bf16.xpose.msra.mxu0 0
        %1233 = vmatprep.subr.bf16.mxu0 0
        %1234 = vmatpush1.bf16.xpose.msra.mxu0 0
        %1235 = vmatprep.subr.bf16.mxu0 0
        %1236 = vmatpush1.bf16.xpose.msra.mxu0 0
        %1237 = vmatprep.subr.bf16.mxu0 0
        %1238 = vmatpush1.bf16.xpose.msra.mxu0 0
        %1239 = vmatprep.subr.bf16.mxu0 0
        %1240 = vmatpush1.bf16.xpose.msra.mxu0 0
        %1241 = vmatprep.subr.bf16.mxu0 0
        %1242 = vmatpush1.bf16.xpose.msra.mxu0 %v1229
        %1243 = vmatprep.subr.bf16.mxu0 0
        %1244 = vmatpush1.bf16.xpose.msra.mxu0 %v1226
        %1245 = vmatprep.subr.bf16.mxu0 0
        %1246 = vmatpush1.bf16.xpose.msra.mxu0 %v1223
        %1247 = vmatprep.subr.bf16.mxu0 0
        %1248 = vmatpush2.bf16.xpose.msra.mxu0 0
        %1249 = vmatprep.subr.bf16.mxu0 0
        %1250 = vmatpush2.bf16.xpose.msra.mxu0 0
        %1251 = vmatprep.subr.bf16.mxu0 0
        %1252 = vmatpush2.bf16.xpose.msra.mxu0 0
        %1253 = vmatprep.subr.bf16.mxu0 0
        %1254 = vmatpush2.bf16.xpose.msra.mxu0 0
        %1255 = vmatprep.subr.bf16.mxu0 0
        %1256 = vmatpush2.bf16.xpose.msra.mxu0 0
        %1257 = vmatprep.subr.bf16.mxu0 0
        %1258 = vmatpush2.bf16.xpose.msra.mxu0 0
        %1259 = vmatprep.subr.bf16.mxu0 0
        %1260 = vmatpush2.bf16.xpose.msra.mxu0 0
        %1261 = vmatprep.subr.bf16.mxu0 0
        %1262 = vmatpush2.bf16.xpose.msra.mxu0 0
        %1263 = vmatprep.mubr.bf16.mxu0 0
        %1264 = vmatmul.mubr.bf16.gmra.mxu0 %v1214
        %v1265 = vpop.f32.mrf.mxu0
        %v1266 = vadd.f32 0.0, %v1265
        %v1267 = vpop.f32.mrf.mxu0
        %v1268 = vpop.f32.mrf.mxu0
        %v1269 = vadd.f32 0.0, %v1268
        %v1270 = vpop.f32.mrf.mxu0
        %1271 = vmatprep.mubr.bf16.mxu0 0
        %1272 = vmatmul.mubr.bf16.gmra.mxu0 %v1217
        %v1273 = vpop.f32.mrf.mxu0
        %v1274 = vadd.f32 0.0, %v1273
        %v1275 = vpop.f32.mrf.mxu0
        %v1276 = vpop.f32.mrf.mxu0
        %v1277 = vadd.f32 0.0, %v1276
        %v1278 = vpop.f32.mrf.mxu0
        %1279 = vmatprep.mubr.bf16.mxu0 0
        %1280 = vmatmul.mubr.bf16.gmra.mxu0 %v1220
        %v1281 = vpop.f32.mrf.mxu0
        %v1282 = vadd.f32 0.0, %v1281
        %v1283 = vpop.f32.mrf.mxu0
        %v1284 = vpop.f32.mrf.mxu0
        %v1285 = vpop.f32.mrf.mxu0
        %1286 = vdwg.mxu0
        %v1287 = vsel %vm554, %v1266, -1e+30
        %v1288 = vsel %vm554, %v1269, -1e+30
        %v1289 = vsel %vm554, %v1274, -1e+30
        %v1290 = vsel %vm554, %v1277, -1e+30
        %v1291 = vsel %vm554, %v1282, -1e+30
        %v1292 = vsel %vm837, %v1287, -inf
        %1293 = vmax.xlane.f32.xlu0 %v1292
        %v1294 = vpop.xlane.xlu0 %1293
        %v1295 = vsel %vm837, %v1288, -inf
        %1296 = vmax.xlane.f32.xlu0 %v1295
        %v1297 = vpop.xlane.xlu0 %1296
        %v1298 = vsel %vm837, %v1289, -inf
        %1299 = vmax.xlane.f32.xlu0 %v1298
        %v1300 = vpop.xlane.xlu0 %1299
        %v1301 = vsel %vm837, %v1290, -inf
        %1302 = vmax.xlane.f32.xlu0 %v1301
        %v1303 = vpop.xlane.xlu0 %1302
        %v1304 = vsel %vm837, %v1291, -inf
        %1305 = vmax.xlane.f32.xlu0 %v1304
        %v1306 = vpop.xlane.xlu0 %1305
        %v1307 = vsub.f32 %v1287, %v1294
        %v1308 = vsub.f32 %v1288, %v1297
        %v1309 = vsub.f32 %v1289, %v1300
        %v1310 = vsub.f32 %v1290, %v1303
        %v1311 = vsub.f32 %v1291, %v1306
        %v1312 = vmul.f32 %v1307, 1.442695
        %v1313 = vpow.pop %v1312
        %v1314 = vmul.f32 %v1308, 1.442695
        %v1315 = vpow.pop %v1314
        %v1316 = vmul.f32 %v1309, 1.442695
        %v1317 = vpow.pop %v1316
        %v1318 = vmul.f32 %v1310, 1.442695
        %v1319 = vpow.pop %v1318
        %v1320 = vmul.f32 %v1311, 1.442695
        %v1321 = vpow.pop %v1320
        %v1322 = vsel %vm837, %v1313, 0.0
        %1323 = vadd.xlane.f32.xlu0 %v1322
        %v1324 = vpop.xlane.xlu0 %1323
        %v1325 = vsel %vm837, %v1315, 0.0
        %1326 = vadd.xlane.f32.xlu0 %v1325
        %v1327 = vpop.xlane.xlu0 %1326
        %v1328 = vsel %vm837, %v1317, 0.0
        %1329 = vadd.xlane.f32.xlu0 %v1328
        %v1330 = vpop.xlane.xlu0 %1329
        %v1331 = vsel %vm837, %v1319, 0.0
        %1332 = vadd.xlane.f32.xlu0 %v1331
        %v1333 = vpop.xlane.xlu0 %1332
        %v1334 = vsel %vm837, %v1321, 0.0
        %1335 = vadd.xlane.f32.xlu0 %v1334
        %v1336 = vpop.xlane.xlu0 %1335
        %v1337 = vrcp.pop %v1324
        %v1338 = vrcp.pop %v1327
        %v1339 = vrcp.pop %v1330
        %v1340 = vrcp.pop %v1333
        %v1341 = vrcp.pop %v1336
        %v1342 = vmul.f32 %v1313, %v1337
        %v1343 = vmul.f32 %v1315, %v1338
        %v1344 = vmul.f32 %v1317, %v1339
        %v1345 = vmul.f32 %v1319, %v1340
        %v1346 = vmul.f32 %v1321, %v1341
        %v1347 = vpack.c.bf16 %v1343, %v1342
        %v1348 = vpack.c.bf16 %v1345, %v1344
        %v1349 = vpack.c.bf16 %v1346, %v1346
        %1350 = vrot.lane.b32.xlu0 %v745, 48
        %v1351 = vpop.permute.xlu0 %1350
        %1352 = vrot.lane.b32.xlu0 %v746, 48
        %v1353 = vpop.permute.xlu0 %1352
        %1354 = vrot.lane.b32.xlu0 %v747, 48
        %v1355 = vpop.permute.xlu0 %1354
        %v1359 = vsel %vm837, %v1347, 0
        %v1362 = vsel %vm837, %v1348, 0
        %v1365 = vsel %vm837, %v1349, 0
        %v1368 = vsel %vm913, %v1355, 0
        %1370 = vmatprep.subr.bf16.mxu0 0
        %1371 = vmatpush1.bf16.msra.mxu0 0
        %1372 = vmatprep.subr.bf16.mxu0 0
        %1373 = vmatpush1.bf16.msra.mxu0 0
        %1374 = vmatprep.subr.bf16.mxu0 0
        %1375 = vmatpush1.bf16.msra.mxu0 0
        %1376 = vmatprep.subr.bf16.mxu0 0
        %1377 = vmatpush1.bf16.msra.mxu0 0
        %1378 = vmatprep.subr.bf16.mxu0 0
        %1379 = vmatpush1.bf16.msra.mxu0 0
        %1380 = vmatprep.subr.bf16.mxu0 0
        %1381 = vmatpush1.bf16.msra.mxu0 %v1368
        %1382 = vmatprep.subr.bf16.mxu0 0
        %1383 = vmatpush1.bf16.msra.mxu0 %v1353
        %1384 = vmatprep.subr.bf16.mxu0 0
        %1385 = vmatpush1.bf16.msra.mxu0 %v1351
        %1386 = vmatprep.subr.bf16.mxu0 0
        %1387 = vmatpush2.bf16.msra.mxu0 0
        %1388 = vmatprep.subr.bf16.mxu0 0
        %1389 = vmatpush2.bf16.msra.mxu0 0
        %1390 = vmatprep.subr.bf16.mxu0 0
        %1391 = vmatpush2.bf16.msra.mxu0 0
        %1392 = vmatprep.subr.bf16.mxu0 0
        %1393 = vmatpush2.bf16.msra.mxu0 0
        %1394 = vmatprep.subr.bf16.mxu0 0
        %1395 = vmatpush2.bf16.msra.mxu0 0
        %1396 = vmatprep.subr.bf16.mxu0 0
        %1397 = vmatpush2.bf16.msra.mxu0 0
        %1398 = vmatprep.subr.bf16.mxu0 0
        %1399 = vmatpush2.bf16.msra.mxu0 0
        %1400 = vmatprep.subr.bf16.mxu0 0
        %1401 = vmatpush2.bf16.msra.mxu0 0
        %1402 = vmatprep.mubr.bf16.mxu0 0
        %1403 = vmatmul.mubr.bf16.gmra.mxu0 %v1359
        %v1404 = vpop.f32.mrf.mxu0
        %v1405 = vadd.f32 0.0, %v1404
        %v1406 = vpop.f32.mrf.mxu0
        %v1407 = vpop.f32.mrf.mxu0
        %v1408 = vadd.f32 0.0, %v1407
        %v1409 = vpop.f32.mrf.mxu0
        %1410 = vmatprep.mubr.bf16.mxu0 0
        %1411 = vmatmul.mubr.bf16.gmra.mxu0 %v1362
        %v1412 = vpop.f32.mrf.mxu0
        %v1413 = vadd.f32 0.0, %v1412
        %v1414 = vpop.f32.mrf.mxu0
        %v1415 = vpop.f32.mrf.mxu0
        %v1416 = vadd.f32 0.0, %v1415
        %v1417 = vpop.f32.mrf.mxu0
        %1418 = vmatprep.mubr.bf16.mxu0 0
        %1419 = vmatmul.mubr.bf16.gmra.mxu0 %v1365
        %v1420 = vpop.f32.mrf.mxu0
        %v1421 = vadd.f32 0.0, %v1420
        %v1422 = vpop.f32.mrf.mxu0
        %v1423 = vpop.f32.mrf.mxu0
        %v1424 = vpop.f32.mrf.mxu0
        %1425 = vdwg.mxu0
        %1426 = vrot.lane.b32.xlu0 %v742, 104
        %v1427 = vpop.permute.xlu0 %1426
        %1428 = vrot.lane.b32.xlu0 %v743, 104
        %v1429 = vpop.permute.xlu0 %1428
        %1430 = vrot.lane.b32.xlu0 %v744, 104
        %v1431 = vpop.permute.xlu0 %1430
        %1432 = vrot.lane.b32.xlu0 %v745, 72
        %v1433 = vpop.permute.xlu0 %1432
        %1434 = vrot.lane.b32.xlu0 %v746, 72
        %v1435 = vpop.permute.xlu0 %1434
        %1436 = vrot.lane.b32.xlu0 %v747, 72
        %v1437 = vpop.permute.xlu0 %1436
        %v1439 = vsel %vm757, %v1427, 0
        %v1442 = vsel %vm757, %v1429, 0
        %v1445 = vsel %vm757, %v1431, 0
        %v1448 = vsel %vm757, %v1433, 0
        %v1451 = vsel %vm757, %v1435, 0
        %v1454 = vsel %vm757, %v1437, 0
        %1456 = vmatprep.subr.bf16.mxu0 0
        %1457 = vmatpush1.bf16.xpose.msra.mxu0 0
        %1458 = vmatprep.subr.bf16.mxu0 0
        %1459 = vmatpush1.bf16.xpose.msra.mxu0 0
        %1460 = vmatprep.subr.bf16.mxu0 0
        %1461 = vmatpush1.bf16.xpose.msra.mxu0 0
        %1462 = vmatprep.subr.bf16.mxu0 0
        %1463 = vmatpush1.bf16.xpose.msra.mxu0 0
        %1464 = vmatprep.subr.bf16.mxu0 0
        %1465 = vmatpush1.bf16.xpose.msra.mxu0 0
        %1466 = vmatprep.subr.bf16.mxu0 0
        %1467 = vmatpush1.bf16.xpose.msra.mxu0 %v1454
        %1468 = vmatprep.subr.bf16.mxu0 0
        %1469 = vmatpush1.bf16.xpose.msra.mxu0 %v1451
        %1470 = vmatprep.subr.bf16.mxu0 0
        %1471 = vmatpush1.bf16.xpose.msra.mxu0 %v1448
        %1472 = vmatprep.subr.bf16.mxu0 0
        %1473 = vmatpush2.bf16.xpose.msra.mxu0 0
        %1474 = vmatprep.subr.bf16.mxu0 0
        %1475 = vmatpush2.bf16.xpose.msra.mxu0 0
        %1476 = vmatprep.subr.bf16.mxu0 0
        %1477 = vmatpush2.bf16.xpose.msra.mxu0 0
        %1478 = vmatprep.subr.bf16.mxu0 0
        %1479 = vmatpush2.bf16.xpose.msra.mxu0 0
        %1480 = vmatprep.subr.bf16.mxu0 0
        %1481 = vmatpush2.bf16.xpose.msra.mxu0 0
        %1482 = vmatprep.subr.bf16.mxu0 0
        %1483 = vmatpush2.bf16.xpose.msra.mxu0 0
        %1484 = vmatprep.subr.bf16.mxu0 0
        %1485 = vmatpush2.bf16.xpose.msra.mxu0 0
        %1486 = vmatprep.subr.bf16.mxu0 0
        %1487 = vmatpush2.bf16.xpose.msra.mxu0 0
        %1488 = vmatprep.mubr.bf16.mxu0 0
        %1489 = vmatmul.mubr.bf16.gmra.mxu0 %v1439
        %v1490 = vpop.f32.mrf.mxu0
        %v1491 = vadd.f32 0.0, %v1490
        %v1492 = vpop.f32.mrf.mxu0
        %v1493 = vpop.f32.mrf.mxu0
        %v1494 = vadd.f32 0.0, %v1493
        %v1495 = vpop.f32.mrf.mxu0
        %1496 = vmatprep.mubr.bf16.mxu0 0
        %1497 = vmatmul.mubr.bf16.gmra.mxu0 %v1442
        %v1498 = vpop.f32.mrf.mxu0
        %v1499 = vadd.f32 0.0, %v1498
        %v1500 = vpop.f32.mrf.mxu0
        %v1501 = vpop.f32.mrf.mxu0
        %v1502 = vadd.f32 0.0, %v1501
        %v1503 = vpop.f32.mrf.mxu0
        %1504 = vmatprep.mubr.bf16.mxu0 0
        %1505 = vmatmul.mubr.bf16.gmra.mxu0 %v1445
        %v1506 = vpop.f32.mrf.mxu0
        %v1507 = vadd.f32 0.0, %v1506
        %v1508 = vpop.f32.mrf.mxu0
        %v1509 = vpop.f32.mrf.mxu0
        %v1510 = vpop.f32.mrf.mxu0
        %1511 = vdwg.mxu0
        %v1512 = vsel %vm554, %v1491, -1e+30
        %v1513 = vsel %vm554, %v1494, -1e+30
        %v1514 = vsel %vm554, %v1499, -1e+30
        %v1515 = vsel %vm554, %v1502, -1e+30
        %v1516 = vsel %vm554, %v1507, -1e+30
        %v1517 = vsel %vm837, %v1512, -inf
        %1518 = vmax.xlane.f32.xlu0 %v1517
        %v1519 = vpop.xlane.xlu0 %1518
        %v1520 = vsel %vm837, %v1513, -inf
        %1521 = vmax.xlane.f32.xlu0 %v1520
        %v1522 = vpop.xlane.xlu0 %1521
        %v1523 = vsel %vm837, %v1514, -inf
        %1524 = vmax.xlane.f32.xlu0 %v1523
        %v1525 = vpop.xlane.xlu0 %1524
        %v1526 = vsel %vm837, %v1515, -inf
        %1527 = vmax.xlane.f32.xlu0 %v1526
        %v1528 = vpop.xlane.xlu0 %1527
        %v1529 = vsel %vm837, %v1516, -inf
        %1530 = vmax.xlane.f32.xlu0 %v1529
        %v1531 = vpop.xlane.xlu0 %1530
        %v1532 = vsub.f32 %v1512, %v1519
        %v1533 = vsub.f32 %v1513, %v1522
        %v1534 = vsub.f32 %v1514, %v1525
        %v1535 = vsub.f32 %v1515, %v1528
        %v1536 = vsub.f32 %v1516, %v1531
        %v1537 = vmul.f32 %v1532, 1.442695
        %v1538 = vpow.pop %v1537
        %v1539 = vmul.f32 %v1533, 1.442695
        %v1540 = vpow.pop %v1539
        %v1541 = vmul.f32 %v1534, 1.442695
        %v1542 = vpow.pop %v1541
        %v1543 = vmul.f32 %v1535, 1.442695
        %v1544 = vpow.pop %v1543
        %v1545 = vmul.f32 %v1536, 1.442695
        %v1546 = vpow.pop %v1545
        %v1547 = vsel %vm837, %v1538, 0.0
        %1548 = vadd.xlane.f32.xlu0 %v1547
        %v1549 = vpop.xlane.xlu0 %1548
        %v1550 = vsel %vm837, %v1540, 0.0
        %1551 = vadd.xlane.f32.xlu0 %v1550
        %v1552 = vpop.xlane.xlu0 %1551
        %v1553 = vsel %vm837, %v1542, 0.0
        %1554 = vadd.xlane.f32.xlu0 %v1553
        %v1555 = vpop.xlane.xlu0 %1554
        %v1556 = vsel %vm837, %v1544, 0.0
        %1557 = vadd.xlane.f32.xlu0 %v1556
        %v1558 = vpop.xlane.xlu0 %1557
        %v1559 = vsel %vm837, %v1546, 0.0
        %1560 = vadd.xlane.f32.xlu0 %v1559
        %v1561 = vpop.xlane.xlu0 %1560
        %v1562 = vrcp.pop %v1549
        %v1563 = vrcp.pop %v1552
        %v1564 = vrcp.pop %v1555
        %v1565 = vrcp.pop %v1558
        %v1566 = vrcp.pop %v1561
        %v1567 = vmul.f32 %v1538, %v1562
        %v1568 = vmul.f32 %v1540, %v1563
        %v1569 = vmul.f32 %v1542, %v1564
        %v1570 = vmul.f32 %v1544, %v1565
        %v1571 = vmul.f32 %v1546, %v1566
        %v1572 = vpack.c.bf16 %v1568, %v1567
        %v1573 = vpack.c.bf16 %v1570, %v1569
        %v1574 = vpack.c.bf16 %v1571, %v1571
        %1575 = vrot.lane.b32.xlu0 %v745, 40
        %v1576 = vpop.permute.xlu0 %1575
        %1577 = vrot.lane.b32.xlu0 %v746, 40
        %v1578 = vpop.permute.xlu0 %1577
        %1579 = vrot.lane.b32.xlu0 %v747, 40
        %v1580 = vpop.permute.xlu0 %1579
        %v1584 = vsel %vm837, %v1572, 0
        %v1587 = vsel %vm837, %v1573, 0
        %v1590 = vsel %vm837, %v1574, 0
        %v1593 = vsel %vm913, %v1580, 0
        %1595 = vmatprep.subr.bf16.mxu0 0
        %1596 = vmatpush1.bf16.msra.mxu0 0
        %1597 = vmatprep.subr.bf16.mxu0 0
        %1598 = vmatpush1.bf16.msra.mxu0 0
        %1599 = vmatprep.subr.bf16.mxu0 0
        %1600 = vmatpush1.bf16.msra.mxu0 0
        %1601 = vmatprep.subr.bf16.mxu0 0
        %1602 = vmatpush1.bf16.msra.mxu0 0
        %1603 = vmatprep.subr.bf16.mxu0 0
        %1604 = vmatpush1.bf16.msra.mxu0 0
        %1605 = vmatprep.subr.bf16.mxu0 0
        %1606 = vmatpush1.bf16.msra.mxu0 %v1593
        %1607 = vmatprep.subr.bf16.mxu0 0
        %1608 = vmatpush1.bf16.msra.mxu0 %v1578
        %1609 = vmatprep.subr.bf16.mxu0 0
        %1610 = vmatpush1.bf16.msra.mxu0 %v1576
        %1611 = vmatprep.subr.bf16.mxu0 0
        %1612 = vmatpush2.bf16.msra.mxu0 0
        %1613 = vmatprep.subr.bf16.mxu0 0
        %1614 = vmatpush2.bf16.msra.mxu0 0
        %1615 = vmatprep.subr.bf16.mxu0 0
        %1616 = vmatpush2.bf16.msra.mxu0 0
        %1617 = vmatprep.subr.bf16.mxu0 0
        %1618 = vmatpush2.bf16.msra.mxu0 0
        %1619 = vmatprep.subr.bf16.mxu0 0
        %1620 = vmatpush2.bf16.msra.mxu0 0
        %1621 = vmatprep.subr.bf16.mxu0 0
        %1622 = vmatpush2.bf16.msra.mxu0 0
        %1623 = vmatprep.subr.bf16.mxu0 0
        %1624 = vmatpush2.bf16.msra.mxu0 0
        %1625 = vmatprep.subr.bf16.mxu0 0
        %1626 = vmatpush2.bf16.msra.mxu0 0
        %1627 = vmatprep.mubr.bf16.mxu0 0
        %1628 = vmatmul.mubr.bf16.gmra.mxu0 %v1584
        %v1629 = vpop.f32.mrf.mxu0
        %v1630 = vadd.f32 0.0, %v1629
        %v1631 = vpop.f32.mrf.mxu0
        %v1632 = vpop.f32.mrf.mxu0
        %v1633 = vadd.f32 0.0, %v1632
        %v1634 = vpop.f32.mrf.mxu0
        %1635 = vmatprep.mubr.bf16.mxu0 0
        %1636 = vmatmul.mubr.bf16.gmra.mxu0 %v1587
        %v1637 = vpop.f32.mrf.mxu0
        %v1638 = vadd.f32 0.0, %v1637
        %v1639 = vpop.f32.mrf.mxu0
        %v1640 = vpop.f32.mrf.mxu0
        %v1641 = vadd.f32 0.0, %v1640
        %v1642 = vpop.f32.mrf.mxu0
        %1643 = vmatprep.mubr.bf16.mxu0 0
        %1644 = vmatmul.mubr.bf16.gmra.mxu0 %v1590
        %v1645 = vpop.f32.mrf.mxu0
        %v1646 = vadd.f32 0.0, %v1645
        %v1647 = vpop.f32.mrf.mxu0
        %v1648 = vpop.f32.mrf.mxu0
        %v1649 = vpop.f32.mrf.mxu0
        %1650 = vdwg.mxu0
        %1656 = vrot.lane.b32.xlu0 %v1180, 8
        %v1657 = vpop.permute.xlu0 %1656
        %1658 = vrot.lane.b32.xlu0 %v1183, 8
        %v1659 = vpop.permute.xlu0 %1658
        %1660 = vrot.lane.b32.xlu0 %v1188, 8
        %v1661 = vpop.permute.xlu0 %1660
        %1662 = vrot.lane.b32.xlu0 %v1191, 8
        %v1663 = vpop.permute.xlu0 %1662
        %1664 = vrot.lane.b32.xlu0 %v1196, 8
        %v1665 = vpop.permute.xlu0 %1664
        %1676 = vrot.lane.b32.xlu0 %v1405, 16
        %v1677 = vpop.permute.xlu0 %1676
        %1678 = vrot.lane.b32.xlu0 %v1408, 16
        %v1679 = vpop.permute.xlu0 %1678
        %1680 = vrot.lane.b32.xlu0 %v1413, 16
        %v1681 = vpop.permute.xlu0 %1680
        %1682 = vrot.lane.b32.xlu0 %v1416, 16
        %v1683 = vpop.permute.xlu0 %1682
        %1684 = vrot.lane.b32.xlu0 %v1421, 16
        %v1685 = vpop.permute.xlu0 %1684
        %1696 = vrot.lane.b32.xlu0 %v1630, 24
        %v1697 = vpop.permute.xlu0 %1696
        %1698 = vrot.lane.b32.xlu0 %v1633, 24
        %v1699 = vpop.permute.xlu0 %1698
        %1700 = vrot.lane.b32.xlu0 %v1638, 24
        %v1701 = vpop.permute.xlu0 %1700
        %1702 = vrot.lane.b32.xlu0 %v1641, 24
        %v1703 = vpop.permute.xlu0 %1702
        %1704 = vrot.lane.b32.xlu0 %v1646, 24
        %v1705 = vpop.permute.xlu0 %1704
        %v1711 = vsel %vm757, %v952, %v1657
        %v1712 = vsel %vm757, %v955, %v1659
        %v1713 = vsel %vm757, %v960, %v1661
        %v1714 = vsel %vm757, %v963, %v1663
        %v1715 = vsel %vm757, %v968, %v1665
        %vm1716 = vcmask 130048
        %v1717 = vsel %vm1716, %v1711, %v1677
        %v1718 = vsel %vm1716, %v1712, %v1679
        %v1719 = vsel %vm1716, %v1713, %v1681
        %v1720 = vsel %vm1716, %v1714, %v1683
        %v1721 = vsel %vm1716, %v1715, %v1685
        %vm1722 = vcmask 195584
        %v1723 = vsel %vm1722, %v1717, %v1697
        %v1724 = vsel %vm1722, %v1718, %v1699
        %v1725 = vsel %vm1722, %v1719, %v1701
        %v1726 = vsel %vm1722, %v1720, %v1703
        %v1727 = vsel %vm1722, %v1721, %v1705
        %v1728 = vpack.c.bf16 %v1724, %v1723
        %v1729 = vpack.c.bf16 %v1726, %v1725
        %v1730 = vpack.c.bf16 %v1727, %v1727
        %v1731 = vld [vmem:[%s5] sm:$0xf]
        %v1732 = vld [vmem:[%s5 + $0x4] sm:$0xf]
        %v1733 = vld [vmem:[%s5 + $0x8] sm:$0xf]
        %v1734 = vld [vmem:[%s5 + $0xc] sm:$0xf]
        %v1735 = vld [vmem:[%s6] sm:$0x1]
        %v1737 = vlaneseq
        %v1738 = vshrl.u32 %v1737, 7
        %v1739 = vsub.s32 0, %v1738
        %v1740 = vrot.slane %v1735, %v1739
        %v1746 = vunpack.c.l.b16 %v1731
        %v1747 = vunpack.c.l.b16 %v1732
        %v1748 = vunpack.c.l.b16 %v1733
        %v1749 = vunpack.c.l.b16 %v1734
        %v1750 = vpack.c.b16 %v1747, %v1746
        %v1751 = vpack.c.b16 %v1749, %v1748
        %v1755 = vsel %vm557, %v1728, 0
        %v1758 = vsel %vm557, %v1729, 0
        %v1761 = vsel %vm557, %v1730, 0
        %1763 = vmatprep.subr.bf16.mxu0 0
        %1764 = vmatpush1.bf16.msra.mxu0 0
        %1765 = vmatprep.subr.bf16.mxu0 0
        %1766 = vmatpush1.bf16.msra.mxu0 0
        %1767 = vmatprep.subr.bf16.mxu0 0
        %1768 = vmatpush1.bf16.msra.mxu0 0
        %1769 = vmatprep.subr.bf16.mxu0 0
        %1770 = vmatpush1.bf16.msra.mxu0 0
        %1771 = vmatprep.subr.bf16.mxu0 0
        %1772 = vmatpush1.bf16.msra.mxu0 0
        %1773 = vmatprep.subr.bf16.mxu0 0
        %1774 = vmatpush1.bf16.msra.mxu0 0
        %1775 = vmatprep.subr.bf16.mxu0 0
        %1776 = vmatpush1.bf16.msra.mxu0 %v1751
        %1777 = vmatprep.subr.bf16.mxu0 0
        %1778 = vmatpush1.bf16.msra.mxu0 %v1750
        %1779 = vmatprep.subr.bf16.mxu0 0
        %1780 = vmatpush2.bf16.msra.mxu0 0
        %1781 = vmatprep.subr.bf16.mxu0 0
        %1782 = vmatpush2.bf16.msra.mxu0 0
        %1783 = vmatprep.subr.bf16.mxu0 0
        %1784 = vmatpush2.bf16.msra.mxu0 0
        %1785 = vmatprep.subr.bf16.mxu0 0
        %1786 = vmatpush2.bf16.msra.mxu0 0
        %1787 = vmatprep.subr.bf16.mxu0 0
        %1788 = vmatpush2.bf16.msra.mxu0 0
        %1789 = vmatprep.subr.bf16.mxu0 0
        %1790 = vmatpush2.bf16.msra.mxu0 0
        %1791 = vmatprep.subr.bf16.mxu0 0
        %1792 = vmatpush2.bf16.msra.mxu0 0
        %1793 = vmatprep.subr.bf16.mxu0 0
        %1794 = vmatpush2.bf16.msra.mxu0 0
        %1795 = vmatprep.mubr.bf16.mxu0 0
        %1796 = vmatmul.mubr.bf16.gmra.mxu0 %v1755
        %v1797 = vpop.f32.mrf.mxu0
        %v1798 = vadd.f32 %v1740, %v1797
        %v1799 = vpop.f32.mrf.mxu0
        %v1800 = vpop.f32.mrf.mxu0
        %v1801 = vadd.f32 %v1740, %v1800
        %v1802 = vpop.f32.mrf.mxu0
        %1803 = vmatprep.mubr.bf16.mxu0 0
        %1804 = vmatmul.mubr.bf16.gmra.mxu0 %v1758
        %v1805 = vpop.f32.mrf.mxu0
        %v1806 = vadd.f32 %v1740, %v1805
        %v1807 = vpop.f32.mrf.mxu0
        %v1808 = vpop.f32.mrf.mxu0
        %v1809 = vadd.f32 %v1740, %v1808
        %v1810 = vpop.f32.mrf.mxu0
        %1811 = vmatprep.mubr.bf16.mxu0 0
        %1812 = vmatmul.mubr.bf16.gmra.mxu0 %v1761
        %v1813 = vpop.f32.mrf.mxu0
        %v1814 = vadd.f32 %v1740, %v1813
        %v1815 = vpop.f32.mrf.mxu0
        %v1816 = vpop.f32.mrf.mxu0
        %v1817 = vpop.f32.mrf.mxu0
        %1818 = vdwg.mxu0
        %v1819 = vadd.f32 %v547, %v1798
        %v1820 = vadd.f32 %v548, %v1801
        %v1821 = vadd.f32 %v549, %v1806
        %v1822 = vadd.f32 %v550, %v1809
        %v1823 = vadd.f32 %v551, %v1814
        %v1824 = vld [vmem:[%s7] sm:$0x1]
        %v1825 = vld [vmem:[%s8] sm:$0x1]
        %v1826 = vsel %vm557, %v1819, 0.0
        %1827 = vadd.xlane.f32.xlu0 %v1826
        %v1828 = vpop.xlane.xlu0 %1827
        %v1829 = vsel %vm557, %v1820, 0.0
        %1830 = vadd.xlane.f32.xlu0 %v1829
        %v1831 = vpop.xlane.xlu0 %1830
        %v1832 = vsel %vm557, %v1821, 0.0
        %1833 = vadd.xlane.f32.xlu0 %v1832
        %v1834 = vpop.xlane.xlu0 %1833
        %v1835 = vsel %vm557, %v1822, 0.0
        %1836 = vadd.xlane.f32.xlu0 %v1835
        %v1837 = vpop.xlane.xlu0 %1836
        %v1838 = vsel %vm557, %v1823, 0.0
        %1839 = vadd.xlane.f32.xlu0 %v1838
        %v1840 = vpop.xlane.xlu0 %1839
        %v1841 = vmul.f32 %v1828, %v573
        %v1842 = vmul.f32 %v1831, %v573
        %v1843 = vmul.f32 %v1834, %v573
        %v1844 = vmul.f32 %v1837, %v573
        %v1845 = vmul.f32 %v1840, %v573
        %v1846 = vsub.f32 %v1819, %v1841
        %v1847 = vsub.f32 %v1820, %v1842
        %v1848 = vsub.f32 %v1821, %v1843
        %v1849 = vsub.f32 %v1822, %v1844
        %v1850 = vsub.f32 %v1823, %v1845
        %v1851 = vmul.f32 %v1846, %v1846
        %v1852 = vmul.f32 %v1847, %v1847
        %v1853 = vmul.f32 %v1848, %v1848
        %v1854 = vmul.f32 %v1849, %v1849
        %v1855 = vmul.f32 %v1850, %v1850
        %v1856 = vsel %vm557, %v1851, 0.0
        %1857 = vadd.xlane.f32.xlu0 %v1856
        %v1858 = vpop.xlane.xlu0 %1857
        %v1859 = vsel %vm557, %v1852, 0.0
        %1860 = vadd.xlane.f32.xlu0 %v1859
        %v1861 = vpop.xlane.xlu0 %1860
        %v1862 = vsel %vm557, %v1853, 0.0
        %1863 = vadd.xlane.f32.xlu0 %v1862
        %v1864 = vpop.xlane.xlu0 %1863
        %v1865 = vsel %vm557, %v1854, 0.0
        %1866 = vadd.xlane.f32.xlu0 %v1865
        %v1867 = vpop.xlane.xlu0 %1866
        %v1868 = vsel %vm557, %v1855, 0.0
        %1869 = vadd.xlane.f32.xlu0 %v1868
        %v1870 = vpop.xlane.xlu0 %1869
        %v1871 = vmul.f32 %v1858, %v573
        %v1872 = vmul.f32 %v1861, %v573
        %v1873 = vmul.f32 %v1864, %v573
        %v1874 = vmul.f32 %v1867, %v573
        %v1875 = vmul.f32 %v1870, %v573
        %v1876 = vadd.f32 %v1871, 1e-06
        %v1877 = vadd.f32 %v1872, 1e-06
        %v1878 = vadd.f32 %v1873, 1e-06
        %v1879 = vadd.f32 %v1874, 1e-06
        %v1880 = vadd.f32 %v1875, 1e-06
        %v1881 = vrsqrt.pop %v1876
        %v1882 = vrsqrt.pop %v1877
        %v1883 = vrsqrt.pop %v1878
        %v1884 = vrsqrt.pop %v1879
        %v1885 = vrsqrt.pop %v1880
        %v1886 = vmul.f32 %v1846, %v1881
        %v1887 = vmul.f32 %v1847, %v1882
        %v1888 = vmul.f32 %v1848, %v1883
        %v1889 = vmul.f32 %v1849, %v1884
        %v1890 = vmul.f32 %v1850, %v1885
        %v1892 = vlaneseq
        %v1893 = vshrl.u32 %v1892, 7
        %v1894 = vsub.s32 0, %v1893
        %v1895 = vrot.slane %v1824, %v1894
        %v1897 = vmul.f32 %v1886, %v1895
        %v1898 = vmul.f32 %v1887, %v1895
        %v1899 = vmul.f32 %v1888, %v1895
        %v1900 = vmul.f32 %v1889, %v1895
        %v1901 = vmul.f32 %v1890, %v1895
        %v1903 = vlaneseq
        %v1904 = vshrl.u32 %v1903, 7
        %v1905 = vsub.s32 0, %v1904
        %v1906 = vrot.slane %v1825, %v1905
        %v1908 = vadd.f32 %v1897, %v1906
        %v1909 = vadd.f32 %v1898, %v1906
        %v1910 = vadd.f32 %v1899, %v1906
        %v1911 = vadd.f32 %v1900, %v1906
        %v1912 = vadd.f32 %v1901, %v1906
        %v1913 = vpack.c.bf16 %v1909, %v1908
        %v1914 = vpack.c.bf16 %v1911, %v1910
        %v1915 = vpack.c.bf16 %v1912, %v1912
        %v1916 = vld [vmem:[%s9] sm:$0xf]
        %v1917 = vld [vmem:[%s9 + $0x4] sm:$0xf]
        %v1918 = vld [vmem:[%s9 + $0x8] sm:$0xf]
        %v1919 = vld [vmem:[%s9 + $0xc] sm:$0xf]
        %v1920 = vld [vmem:[%s10] sm:$0x1]
        %v1922 = vlaneseq
        %v1923 = vshrl.u32 %v1922, 7
        %v1924 = vsub.s32 0, %v1923
        %v1925 = vrot.slane %v1920, %v1924
        %v1931 = vunpack.c.l.b16 %v1916
        %v1932 = vunpack.c.l.b16 %v1917
        %v1933 = vunpack.c.l.b16 %v1918
        %v1934 = vunpack.c.l.b16 %v1919
        %v1935 = vpack.c.b16 %v1932, %v1931
        %v1936 = vpack.c.b16 %v1934, %v1933
        %v1940 = vsel %vm557, %v1913, 0
        %v1943 = vsel %vm557, %v1914, 0
        %v1946 = vsel %vm557, %v1915, 0
        %1948 = vmatprep.subr.bf16.mxu0 0
        %1949 = vmatpush1.bf16.msra.mxu0 0
        %1950 = vmatprep.subr.bf16.mxu0 0
        %1951 = vmatpush1.bf16.msra.mxu0 0
        %1952 = vmatprep.subr.bf16.mxu0 0
        %1953 = vmatpush1.bf16.msra.mxu0 0
        %1954 = vmatprep.subr.bf16.mxu0 0
        %1955 = vmatpush1.bf16.msra.mxu0 0
        %1956 = vmatprep.subr.bf16.mxu0 0
        %1957 = vmatpush1.bf16.msra.mxu0 0
        %1958 = vmatprep.subr.bf16.mxu0 0
        %1959 = vmatpush1.bf16.msra.mxu0 0
        %1960 = vmatprep.subr.bf16.mxu0 0
        %1961 = vmatpush1.bf16.msra.mxu0 %v1936
        %1962 = vmatprep.subr.bf16.mxu0 0
        %1963 = vmatpush1.bf16.msra.mxu0 %v1935
        %1964 = vmatprep.subr.bf16.mxu0 0
        %1965 = vmatpush2.bf16.msra.mxu0 0
        %1966 = vmatprep.subr.bf16.mxu0 0
        %1967 = vmatpush2.bf16.msra.mxu0 0
        %1968 = vmatprep.subr.bf16.mxu0 0
        %1969 = vmatpush2.bf16.msra.mxu0 0
        %1970 = vmatprep.subr.bf16.mxu0 0
        %1971 = vmatpush2.bf16.msra.mxu0 0
        %1972 = vmatprep.subr.bf16.mxu0 0
        %1973 = vmatpush2.bf16.msra.mxu0 0
        %1974 = vmatprep.subr.bf16.mxu0 0
        %1975 = vmatpush2.bf16.msra.mxu0 0
        %1976 = vmatprep.subr.bf16.mxu0 0
        %1977 = vmatpush2.bf16.msra.mxu0 0
        %1978 = vmatprep.subr.bf16.mxu0 0
        %1979 = vmatpush2.bf16.msra.mxu0 0
        %1980 = vmatprep.mubr.bf16.mxu0 0
        %1981 = vmatmul.mubr.bf16.gmra.mxu0 %v1940
        %v1982 = vpop.f32.mrf.mxu0
        %v1983 = vadd.f32 %v1925, %v1982
        %v1984 = vpop.f32.mrf.mxu0
        %v1985 = vpop.f32.mrf.mxu0
        %v1986 = vadd.f32 %v1925, %v1985
        %v1987 = vpop.f32.mrf.mxu0
        %1988 = vmatprep.mubr.bf16.mxu0 0
        %1989 = vmatmul.mubr.bf16.gmra.mxu0 %v1943
        %v1990 = vpop.f32.mrf.mxu0
        %v1991 = vadd.f32 %v1925, %v1990
        %v1992 = vpop.f32.mrf.mxu0
        %v1993 = vpop.f32.mrf.mxu0
        %v1994 = vadd.f32 %v1925, %v1993
        %v1995 = vpop.f32.mrf.mxu0
        %1996 = vmatprep.mubr.bf16.mxu0 0
        %1997 = vmatmul.mubr.bf16.gmra.mxu0 %v1946
        %v1998 = vpop.f32.mrf.mxu0
        %v1999 = vadd.f32 %v1925, %v1998
        %v2000 = vpop.f32.mrf.mxu0
        %v2001 = vpop.f32.mrf.mxu0
        %v2002 = vpop.f32.mrf.mxu0
        %2003 = vdwg.mxu0
        %v2004 = vmul.f32 %v1983, 0.5
        %v2005 = vmul.f32 %v1986, 0.5
        %v2006 = vmul.f32 %v1991, 0.5
        %v2007 = vmul.f32 %v1994, 0.5
        %v2008 = vmul.f32 %v1999, 0.5
        %v2009 = vmul.f32 %v1983, %v1983
        %v2010 = vmul.f32 %v1986, %v1986
        %v2011 = vmul.f32 %v1991, %v1991
        %v2012 = vmul.f32 %v1994, %v1994
        %v2013 = vmul.f32 %v1999, %v1999
        %v2014 = vmul.f32 %v2009, %v1983
        %v2015 = vmul.f32 %v2010, %v1986
        %v2016 = vmul.f32 %v2011, %v1991
        %v2017 = vmul.f32 %v2012, %v1994
        %v2018 = vmul.f32 %v2013, %v1999
        %v2019 = vmul.f32 %v2014, 0.044715
        %v2020 = vmul.f32 %v2015, 0.044715
        %v2021 = vmul.f32 %v2016, 0.044715
        %v2022 = vmul.f32 %v2017, 0.044715
        %v2023 = vmul.f32 %v2018, 0.044715
        %v2024 = vadd.f32 %v1983, %v2019
        %v2025 = vadd.f32 %v1986, %v2020
        %v2026 = vadd.f32 %v1991, %v2021
        %v2027 = vadd.f32 %v1994, %v2022
        %v2028 = vadd.f32 %v1999, %v2023
        %v2029 = vmul.f32 %v2024, 0.7978846
        %v2030 = vmul.f32 %v2025, 0.7978846
        %v2031 = vmul.f32 %v2026, 0.7978846
        %v2032 = vmul.f32 %v2027, 0.7978846
        %v2033 = vmul.f32 %v2028, 0.7978846
        %v2034 = vtanh.pop %v2029
        %v2035 = vtanh.pop %v2030
        %v2036 = vtanh.pop %v2031
        %v2037 = vtanh.pop %v2032
        %v2038 = vtanh.pop %v2033
        %v2039 = vadd.f32 %v2034, 1.0
        %v2040 = vadd.f32 %v2035, 1.0
        %v2041 = vadd.f32 %v2036, 1.0
        %v2042 = vadd.f32 %v2037, 1.0
        %v2043 = vadd.f32 %v2038, 1.0
        %v2044 = vmul.f32 %v2004, %v2039
        %v2045 = vmul.f32 %v2005, %v2040
        %v2046 = vmul.f32 %v2006, %v2041
        %v2047 = vmul.f32 %v2007, %v2042
        %v2048 = vmul.f32 %v2008, %v2043
        %v2049 = vpack.c.bf16 %v2045, %v2044
        %v2050 = vpack.c.bf16 %v2047, %v2046
        %v2051 = vpack.c.bf16 %v2048, %v2048
        %v2052 = vld [vmem:[%s11] sm:$0xf]
        %v2053 = vld [vmem:[%s11 + $0x4] sm:$0xf]
        %v2054 = vld [vmem:[%s11 + $0x8] sm:$0xf]
        %v2055 = vld [vmem:[%s11 + $0xc] sm:$0xf]
        %v2056 = vld [vmem:[%s11 + $0x10] sm:$0xf]
        %v2057 = vld [vmem:[%s11 + $0x14] sm:$0xf]
        %v2058 = vld [vmem:[%s11 + $0x18] sm:$0xf]
        %v2059 = vld [vmem:[%s11 + $0x1c] sm:$0xf]
        %v2060 = vld [vmem:[%s11 + $0x20] sm:$0xf]
        %v2061 = vld [vmem:[%s11 + $0x24] sm:$0xf]
        %v2062 = vld [vmem:[%s11 + $0x28] sm:$0xf]
        %v2063 = vld [vmem:[%s11 + $0x2c] sm:$0xf]
        %v2064 = vld [vmem:[%s11 + $0x30] sm:$0xf]
        %v2065 = vld [vmem:[%s11 + $0x34] sm:$0xf]
        %v2066 = vld [vmem:[%s11 + $0x38] sm:$0xf]
        %v2067 = vld [vmem:[%s11 + $0x3c] sm:$0xf]
        %v2068 = vld [vmem:[%s12] sm:$0x1]
        %v2070 = vlaneseq
        %v2071 = vshrl.u32 %v2070, 7
        %v2072 = vsub.s32 0, %v2071
        %v2073 = vrot.slane %v2068, %v2072
        %v2091 = vunpack.c.l.b16 %v2052
        %v2092 = vunpack.c.l.b16 %v2053
        %v2093 = vunpack.c.l.b16 %v2054
        %v2094 = vunpack.c.l.b16 %v2055
        %v2095 = vunpack.c.l.b16 %v2056
        %v2096 = vunpack.c.l.b16 %v2057
        %v2097 = vunpack.c.l.b16 %v2058
        %v2098 = vunpack.c.l.b16 %v2059
        %v2099 = vunpack.c.l.b16 %v2060
        %v2100 = vunpack.c.l.b16 %v2061
        %v2101 = vunpack.c.l.b16 %v2062
        %v2102 = vunpack.c.l.b16 %v2063
        %v2103 = vunpack.c.l.b16 %v2064
        %v2104 = vunpack.c.l.b16 %v2065
        %v2105 = vunpack.c.l.b16 %v2066
        %v2106 = vunpack.c.l.b16 %v2067
        %v2107 = vpack.c.b16 %v2092, %v2091
        %v2108 = vpack.c.b16 %v2094, %v2093
        %v2109 = vpack.c.b16 %v2096, %v2095
        %v2110 = vpack.c.b16 %v2098, %v2097
        %v2111 = vpack.c.b16 %v2100, %v2099
        %v2112 = vpack.c.b16 %v2102, %v2101
        %v2113 = vpack.c.b16 %v2104, %v2103
        %v2114 = vpack.c.b16 %v2106, %v2105
        %2123 = vmatprep.subr.bf16.mxu0 0
        %2124 = vmatpush1.bf16.msra.mxu0 %v2114
        %2125 = vmatprep.subr.bf16.mxu0 0
        %2126 = vmatpush1.bf16.msra.mxu0 %v2113
        %2127 = vmatprep.subr.bf16.mxu0 0
        %2128 = vmatpush1.bf16.msra.mxu0 %v2112
        %2129 = vmatprep.subr.bf16.mxu0 0
        %2130 = vmatpush1.bf16.msra.mxu0 %v2111
        %2131 = vmatprep.subr.bf16.mxu0 0
        %2132 = vmatpush1.bf16.msra.mxu0 %v2110
        %2133 = vmatprep.subr.bf16.mxu0 0
        %2134 = vmatpush1.bf16.msra.mxu0 %v2109
        %2135 = vmatprep.subr.bf16.mxu0 0
        %2136 = vmatpush1.bf16.msra.mxu0 %v2108
        %2137 = vmatprep.subr.bf16.mxu0 0
        %2138 = vmatpush1.bf16.msra.mxu0 %v2107
        %2139 = vmatprep.subr.bf16.mxu0 0
        %2140 = vmatpush2.bf16.msra.mxu0 0
        %2141 = vmatprep.subr.bf16.mxu0 0
        %2142 = vmatpush2.bf16.msra.mxu0 0
        %2143 = vmatprep.subr.bf16.mxu0 0
        %2144 = vmatpush2.bf16.msra.mxu0 0
        %2145 = vmatprep.subr.bf16.mxu0 0
        %2146 = vmatpush2.bf16.msra.mxu0 0
        %2147 = vmatprep.subr.bf16.mxu0 0
        %2148 = vmatpush2.bf16.msra.mxu0 0
        %2149 = vmatprep.subr.bf16.mxu0 0
        %2150 = vmatpush2.bf16.msra.mxu0 0
        %2151 = vmatprep.subr.bf16.mxu0 0
        %2152 = vmatpush2.bf16.msra.mxu0 0
        %2153 = vmatprep.subr.bf16.mxu0 0
        %2154 = vmatpush2.bf16.msra.mxu0 0
        %2155 = vmatprep.mubr.bf16.mxu0 0
        %2156 = vmatmul.mubr.bf16.gmra.mxu0 %v2049
        %v2157 = vpop.f32.mrf.mxu0
        %v2158 = vadd.f32 %v2073, %v2157
        %v2159 = vpop.f32.mrf.mxu0
        %v2160 = vpop.f32.mrf.mxu0
        %v2161 = vadd.f32 %v2073, %v2160
        %v2162 = vpop.f32.mrf.mxu0
        %2163 = vmatprep.mubr.bf16.mxu0 0
        %2164 = vmatmul.mubr.bf16.gmra.mxu0 %v2050
        %v2165 = vpop.f32.mrf.mxu0
        %v2166 = vadd.f32 %v2073, %v2165
        %v2167 = vpop.f32.mrf.mxu0
        %v2168 = vpop.f32.mrf.mxu0
        %v2169 = vadd.f32 %v2073, %v2168
        %v2170 = vpop.f32.mrf.mxu0
        %2171 = vmatprep.mubr.bf16.mxu0 0
        %2172 = vmatmul.mubr.bf16.gmra.mxu0 %v2051
        %v2173 = vpop.f32.mrf.mxu0
        %v2174 = vadd.f32 %v2073, %v2173
        %v2175 = vpop.f32.mrf.mxu0
        %v2176 = vpop.f32.mrf.mxu0
        %v2177 = vpop.f32.mrf.mxu0
        %2178 = vdwg.mxu0
        %v2179 = vadd.f32 %v1819, %v2158
        %v2180 = vadd.f32 %v1820, %v2161
        %v2181 = vadd.f32 %v1821, %v2166
        %v2182 = vadd.f32 %v1822, %v2169
        %v2183 = vadd.f32 %v1823, %v2174
        %s2184 = scalar_lea.vmem %s1, 1
        %v2185 = vld [vmem:[%s2184] sm:$0x1]
        %s2186 = scalar_lea.vmem %s2, 1
        %v2187 = vld [vmem:[%s2186] sm:$0x1]
        %v2188 = vsel %vm557, %v2179, 0.0
        %2189 = vadd.xlane.f32.xlu0 %v2188
        %v2190 = vpop.xlane.xlu0 %2189
        %v2191 = vsel %vm557, %v2180, 0.0
        %2192 = vadd.xlane.f32.xlu0 %v2191
        %v2193 = vpop.xlane.xlu0 %2192
        %v2194 = vsel %vm557, %v2181, 0.0
        %2195 = vadd.xlane.f32.xlu0 %v2194
        %v2196 = vpop.xlane.xlu0 %2195
        %v2197 = vsel %vm557, %v2182, 0.0
        %2198 = vadd.xlane.f32.xlu0 %v2197
        %v2199 = vpop.xlane.xlu0 %2198
        %v2200 = vsel %vm557, %v2183, 0.0
        %2201 = vadd.xlane.f32.xlu0 %v2200
        %v2202 = vpop.xlane.xlu0 %2201
        %v2203 = vmul.f32 %v2190, %v573
        %v2204 = vmul.f32 %v2193, %v573
        %v2205 = vmul.f32 %v2196, %v573
        %v2206 = vmul.f32 %v2199, %v573
        %v2207 = vmul.f32 %v2202, %v573
        %v2208 = vsub.f32 %v2179, %v2203
        %v2209 = vsub.f32 %v2180, %v2204
        %v2210 = vsub.f32 %v2181, %v2205
        %v2211 = vsub.f32 %v2182, %v2206
        %v2212 = vsub.f32 %v2183, %v2207
        %v2213 = vmul.f32 %v2208, %v2208
        %v2214 = vmul.f32 %v2209, %v2209
        %v2215 = vmul.f32 %v2210, %v2210
        %v2216 = vmul.f32 %v2211, %v2211
        %v2217 = vmul.f32 %v2212, %v2212
        %v2218 = vsel %vm557, %v2213, 0.0
        %2219 = vadd.xlane.f32.xlu0 %v2218
        %v2220 = vpop.xlane.xlu0 %2219
        %v2221 = vsel %vm557, %v2214, 0.0
        %2222 = vadd.xlane.f32.xlu0 %v2221
        %v2223 = vpop.xlane.xlu0 %2222
        %v2224 = vsel %vm557, %v2215, 0.0
        %2225 = vadd.xlane.f32.xlu0 %v2224
        %v2226 = vpop.xlane.xlu0 %2225
        %v2227 = vsel %vm557, %v2216, 0.0
        %2228 = vadd.xlane.f32.xlu0 %v2227
        %v2229 = vpop.xlane.xlu0 %2228
        %v2230 = vsel %vm557, %v2217, 0.0
        %2231 = vadd.xlane.f32.xlu0 %v2230
        %v2232 = vpop.xlane.xlu0 %2231
        %v2233 = vmul.f32 %v2220, %v573
        %v2234 = vmul.f32 %v2223, %v573
        %v2235 = vmul.f32 %v2226, %v573
        %v2236 = vmul.f32 %v2229, %v573
        %v2237 = vmul.f32 %v2232, %v573
        %v2238 = vadd.f32 %v2233, 1e-06
        %v2239 = vadd.f32 %v2234, 1e-06
        %v2240 = vadd.f32 %v2235, 1e-06
        %v2241 = vadd.f32 %v2236, 1e-06
        %v2242 = vadd.f32 %v2237, 1e-06
        %v2243 = vrsqrt.pop %v2238
        %v2244 = vrsqrt.pop %v2239
        %v2245 = vrsqrt.pop %v2240
        %v2246 = vrsqrt.pop %v2241
        %v2247 = vrsqrt.pop %v2242
        %v2248 = vmul.f32 %v2208, %v2243
        %v2249 = vmul.f32 %v2209, %v2244
        %v2250 = vmul.f32 %v2210, %v2245
        %v2251 = vmul.f32 %v2211, %v2246
        %v2252 = vmul.f32 %v2212, %v2247
        %v2254 = vlaneseq
        %v2255 = vshrl.u32 %v2254, 7
        %v2256 = vsub.s32 0, %v2255
        %v2257 = vrot.slane %v2185, %v2256
        %v2259 = vmul.f32 %v2248, %v2257
        %v2260 = vmul.f32 %v2249, %v2257
        %v2261 = vmul.f32 %v2250, %v2257
        %v2262 = vmul.f32 %v2251, %v2257
        %v2263 = vmul.f32 %v2252, %v2257
        %v2265 = vlaneseq
        %v2266 = vshrl.u32 %v2265, 7
        %v2267 = vsub.s32 0, %v2266
        %v2268 = vrot.slane %v2187, %v2267
        %v2270 = vadd.f32 %v2259, %v2268
        %v2271 = vadd.f32 %v2260, %v2268
        %v2272 = vadd.f32 %v2261, %v2268
        %v2273 = vadd.f32 %v2262, %v2268
        %v2274 = vadd.f32 %v2263, %v2268
        %v2275 = vpack.c.bf16 %v2271, %v2270
        %v2276 = vpack.c.bf16 %v2273, %v2272
        %v2277 = vpack.c.bf16 %v2274, %v2274
        %s2278 = scalar_lea.vmem %s3, 16
        %v2279 = vld [vmem:[%s2278] sm:$0xf]
        %v2280 = vld [vmem:[%s2278 + $0x4] sm:$0xf]
        %v2281 = vld [vmem:[%s2278 + $0x8] sm:$0xf]
        %v2282 = vld [vmem:[%s2278 + $0xc] sm:$0xf]
        %s2283 = scalar_lea.vmem %s4, 1
        %v2284 = vld [vmem:[%s2283] sm:$0x1]
        %v2286 = vlaneseq
        %v2287 = vshrl.u32 %v2286, 7
        %v2288 = vsub.s32 0, %v2287
        %v2289 = vrot.slane %v2284, %v2288
        %v2295 = vunpack.c.l.b16 %v2279
        %v2296 = vunpack.c.l.b16 %v2280
        %v2297 = vunpack.c.l.b16 %v2281
        %v2298 = vunpack.c.l.b16 %v2282
        %v2299 = vpack.c.b16 %v2296, %v2295
        %v2300 = vpack.c.b16 %v2298, %v2297
        %v2304 = vsel %vm557, %v2275, 0
        %v2307 = vsel %vm557, %v2276, 0
        %v2310 = vsel %vm557, %v2277, 0
        %2312 = vmatprep.subr.bf16.mxu0 0
        %2313 = vmatpush1.bf16.msra.mxu0 0
        %2314 = vmatprep.subr.bf16.mxu0 0
        %2315 = vmatpush1.bf16.msra.mxu0 0
        %2316 = vmatprep.subr.bf16.mxu0 0
        %2317 = vmatpush1.bf16.msra.mxu0 0
        %2318 = vmatprep.subr.bf16.mxu0 0
        %2319 = vmatpush1.bf16.msra.mxu0 0
        %2320 = vmatprep.subr.bf16.mxu0 0
        %2321 = vmatpush1.bf16.msra.mxu0 0
        %2322 = vmatprep.subr.bf16.mxu0 0
        %2323 = vmatpush1.bf16.msra.mxu0 0
        %2324 = vmatprep.subr.bf16.mxu0 0
        %2325 = vmatpush1.bf16.msra.mxu0 %v2300
        %2326 = vmatprep.subr.bf16.mxu0 0
        %2327 = vmatpush1.bf16.msra.mxu0 %v2299
        %2328 = vmatprep.subr.bf16.mxu0 0
        %2329 = vmatpush2.bf16.msra.mxu0 0
        %2330 = vmatprep.subr.bf16.mxu0 0
        %2331 = vmatpush2.bf16.msra.mxu0 0
        %2332 = vmatprep.subr.bf16.mxu0 0
        %2333 = vmatpush2.bf16.msra.mxu0 0
        %2334 = vmatprep.subr.bf16.mxu0 0
        %2335 = vmatpush2.bf16.msra.mxu0 0
        %2336 = vmatprep.subr.bf16.mxu0 0
        %2337 = vmatpush2.bf16.msra.mxu0 0
        %2338 = vmatprep.subr.bf16.mxu0 0
        %2339 = vmatpush2.bf16.msra.mxu0 0
        %2340 = vmatprep.subr.bf16.mxu0 0
        %2341 = vmatpush2.bf16.msra.mxu0 0
        %2342 = vmatprep.subr.bf16.mxu0 0
        %2343 = vmatpush2.bf16.msra.mxu0 0
        %2344 = vmatprep.mubr.bf16.mxu0 0
        %2345 = vmatmul.mubr.bf16.gmra.mxu0 %v2304
        %v2346 = vpop.f32.mrf.mxu0
        %v2347 = vadd.f32 %v2289, %v2346
        %v2348 = vpop.f32.mrf.mxu0
        %v2349 = vpop.f32.mrf.mxu0
        %v2350 = vadd.f32 %v2289, %v2349
        %v2351 = vpop.f32.mrf.mxu0
        %2352 = vmatprep.mubr.bf16.mxu0 0
        %2353 = vmatmul.mubr.bf16.gmra.mxu0 %v2307
        %v2354 = vpop.f32.mrf.mxu0
        %v2355 = vadd.f32 %v2289, %v2354
        %v2356 = vpop.f32.mrf.mxu0
        %v2357 = vpop.f32.mrf.mxu0
        %v2358 = vadd.f32 %v2289, %v2357
        %v2359 = vpop.f32.mrf.mxu0
        %2360 = vmatprep.mubr.bf16.mxu0 0
        %2361 = vmatmul.mubr.bf16.gmra.mxu0 %v2310
        %v2362 = vpop.f32.mrf.mxu0
        %v2363 = vadd.f32 %v2289, %v2362
        %v2364 = vpop.f32.mrf.mxu0
        %v2365 = vpop.f32.mrf.mxu0
        %v2366 = vpop.f32.mrf.mxu0
        %2367 = vdwg.mxu0
        %v2368 = vmul.f32 %v2347, 0.35355338
        %v2369 = vmul.f32 %v2350, 0.35355338
        %v2370 = vmul.f32 %v2355, 0.35355338
        %v2371 = vmul.f32 %v2358, 0.35355338
        %v2372 = vmul.f32 %v2363, 0.35355338
        %v2373 = vpack.c.bf16 %v2369, %v2368
        %v2374 = vpack.c.bf16 %v2371, %v2370
        %v2375 = vpack.c.bf16 %v2372, %v2372
        %v2376 = vpack.c.bf16 %v2350, %v2347
        %v2377 = vpack.c.bf16 %v2358, %v2355
        %v2378 = vpack.c.bf16 %v2363, %v2363
        %2382 = vrot.lane.b32.xlu0 %v2376, 96
        %v2383 = vpop.permute.xlu0 %2382
        %2384 = vrot.lane.b32.xlu0 %v2377, 96
        %v2385 = vpop.permute.xlu0 %2384
        %2386 = vrot.lane.b32.xlu0 %v2378, 96
        %v2387 = vpop.permute.xlu0 %2386
        %v2389 = vsel %vm757, %v2373, 0
        %v2392 = vsel %vm757, %v2374, 0
        %v2395 = vsel %vm757, %v2375, 0
        %v2398 = vsel %vm757, %v2383, 0
        %v2401 = vsel %vm757, %v2385, 0
        %v2404 = vsel %vm757, %v2387, 0
        %2406 = vmatprep.subr.bf16.mxu0 0
        %2407 = vmatpush1.bf16.xpose.msra.mxu0 0
        %2408 = vmatprep.subr.bf16.mxu0 0
        %2409 = vmatpush1.bf16.xpose.msra.mxu0 0
        %2410 = vmatprep.subr.bf16.mxu0 0
        %2411 = vmatpush1.bf16.xpose.msra.mxu0 0
        %2412 = vmatprep.subr.bf16.mxu0 0
        %2413 = vmatpush1.bf16.xpose.msra.mxu0 0
        %2414 = vmatprep.subr.bf16.mxu0 0
        %2415 = vmatpush1.bf16.xpose.msra.mxu0 0
        %2416 = vmatprep.subr.bf16.mxu0 0
        %2417 = vmatpush1.bf16.xpose.msra.mxu0 %v2404
        %2418 = vmatprep.subr.bf16.mxu0 0
        %2419 = vmatpush1.bf16.xpose.msra.mxu0 %v2401
        %2420 = vmatprep.subr.bf16.mxu0 0
        %2421 = vmatpush1.bf16.xpose.msra.mxu0 %v2398
        %2422 = vmatprep.subr.bf16.mxu0 0
        %2423 = vmatpush2.bf16.xpose.msra.mxu0 0
        %2424 = vmatprep.subr.bf16.mxu0 0
        %2425 = vmatpush2.bf16.xpose.msra.mxu0 0
        %2426 = vmatprep.subr.bf16.mxu0 0
        %2427 = vmatpush2.bf16.xpose.msra.mxu0 0
        %2428 = vmatprep.subr.bf16.mxu0 0
        %2429 = vmatpush2.bf16.xpose.msra.mxu0 0
        %2430 = vmatprep.subr.bf16.mxu0 0
        %2431 = vmatpush2.bf16.xpose.msra.mxu0 0
        %2432 = vmatprep.subr.bf16.mxu0 0
        %2433 = vmatpush2.bf16.xpose.msra.mxu0 0
        %2434 = vmatprep.subr.bf16.mxu0 0
        %2435 = vmatpush2.bf16.xpose.msra.mxu0 0
        %2436 = vmatprep.subr.bf16.mxu0 0
        %2437 = vmatpush2.bf16.xpose.msra.mxu0 0
        %2438 = vmatprep.mubr.bf16.mxu0 0
        %2439 = vmatmul.mubr.bf16.gmra.mxu0 %v2389
        %v2440 = vpop.f32.mrf.mxu0
        %v2441 = vadd.f32 0.0, %v2440
        %v2442 = vpop.f32.mrf.mxu0
        %v2443 = vpop.f32.mrf.mxu0
        %v2444 = vadd.f32 0.0, %v2443
        %v2445 = vpop.f32.mrf.mxu0
        %2446 = vmatprep.mubr.bf16.mxu0 0
        %2447 = vmatmul.mubr.bf16.gmra.mxu0 %v2392
        %v2448 = vpop.f32.mrf.mxu0
        %v2449 = vadd.f32 0.0, %v2448
        %v2450 = vpop.f32.mrf.mxu0
        %v2451 = vpop.f32.mrf.mxu0
        %v2452 = vadd.f32 0.0, %v2451
        %v2453 = vpop.f32.mrf.mxu0
        %2454 = vmatprep.mubr.bf16.mxu0 0
        %2455 = vmatmul.mubr.bf16.gmra.mxu0 %v2395
        %v2456 = vpop.f32.mrf.mxu0
        %v2457 = vadd.f32 0.0, %v2456
        %v2458 = vpop.f32.mrf.mxu0
        %v2459 = vpop.f32.mrf.mxu0
        %v2460 = vpop.f32.mrf.mxu0
        %2461 = vdwg.mxu0
        %v2462 = vsel %vm554, %v2441, -1e+30
        %v2463 = vsel %vm554, %v2444, -1e+30
        %v2464 = vsel %vm554, %v2449, -1e+30
        %v2465 = vsel %vm554, %v2452, -1e+30
        %v2466 = vsel %vm554, %v2457, -1e+30
        %v2467 = vsel %vm837, %v2462, -inf
        %2468 = vmax.xlane.f32.xlu0 %v2467
        %v2469 = vpop.xlane.xlu0 %2468
        %v2470 = vsel %vm837, %v2463, -inf
        %2471 = vmax.xlane.f32.xlu0 %v2470
        %v2472 = vpop.xlane.xlu0 %2471
        %v2473 = vsel %vm837, %v2464, -inf
        %2474 = vmax.xlane.f32.xlu0 %v2473
        %v2475 = vpop.xlane.xlu0 %2474
        %v2476 = vsel %vm837, %v2465, -inf
        %2477 = vmax.xlane.f32.xlu0 %v2476
        %v2478 = vpop.xlane.xlu0 %2477
        %v2479 = vsel %vm837, %v2466, -inf
        %2480 = vmax.xlane.f32.xlu0 %v2479
        %v2481 = vpop.xlane.xlu0 %2480
        %v2482 = vsub.f32 %v2462, %v2469
        %v2483 = vsub.f32 %v2463, %v2472
        %v2484 = vsub.f32 %v2464, %v2475
        %v2485 = vsub.f32 %v2465, %v2478
        %v2486 = vsub.f32 %v2466, %v2481
        %v2487 = vmul.f32 %v2482, 1.442695
        %v2488 = vpow.pop %v2487
        %v2489 = vmul.f32 %v2483, 1.442695
        %v2490 = vpow.pop %v2489
        %v2491 = vmul.f32 %v2484, 1.442695
        %v2492 = vpow.pop %v2491
        %v2493 = vmul.f32 %v2485, 1.442695
        %v2494 = vpow.pop %v2493
        %v2495 = vmul.f32 %v2486, 1.442695
        %v2496 = vpow.pop %v2495
        %v2497 = vsel %vm837, %v2488, 0.0
        %2498 = vadd.xlane.f32.xlu0 %v2497
        %v2499 = vpop.xlane.xlu0 %2498
        %v2500 = vsel %vm837, %v2490, 0.0
        %2501 = vadd.xlane.f32.xlu0 %v2500
        %v2502 = vpop.xlane.xlu0 %2501
        %v2503 = vsel %vm837, %v2492, 0.0
        %2504 = vadd.xlane.f32.xlu0 %v2503
        %v2505 = vpop.xlane.xlu0 %2504
        %v2506 = vsel %vm837, %v2494, 0.0
        %2507 = vadd.xlane.f32.xlu0 %v2506
        %v2508 = vpop.xlane.xlu0 %2507
        %v2509 = vsel %vm837, %v2496, 0.0
        %2510 = vadd.xlane.f32.xlu0 %v2509
        %v2511 = vpop.xlane.xlu0 %2510
        %v2512 = vrcp.pop %v2499
        %v2513 = vrcp.pop %v2502
        %v2514 = vrcp.pop %v2505
        %v2515 = vrcp.pop %v2508
        %v2516 = vrcp.pop %v2511
        %v2517 = vmul.f32 %v2488, %v2512
        %v2518 = vmul.f32 %v2490, %v2513
        %v2519 = vmul.f32 %v2492, %v2514
        %v2520 = vmul.f32 %v2494, %v2515
        %v2521 = vmul.f32 %v2496, %v2516
        %v2522 = vpack.c.bf16 %v2518, %v2517
        %v2523 = vpack.c.bf16 %v2520, %v2519
        %v2524 = vpack.c.bf16 %v2521, %v2521
        %2525 = vrot.lane.b32.xlu0 %v2376, 64
        %v2526 = vpop.permute.xlu0 %2525
        %2527 = vrot.lane.b32.xlu0 %v2377, 64
        %v2528 = vpop.permute.xlu0 %2527
        %2529 = vrot.lane.b32.xlu0 %v2378, 64
        %v2530 = vpop.permute.xlu0 %2529
        %v2534 = vsel %vm837, %v2522, 0
        %v2537 = vsel %vm837, %v2523, 0
        %v2540 = vsel %vm837, %v2524, 0
        %v2543 = vsel %vm913, %v2530, 0
        %2545 = vmatprep.subr.bf16.mxu0 0
        %2546 = vmatpush1.bf16.msra.mxu0 0
        %2547 = vmatprep.subr.bf16.mxu0 0
        %2548 = vmatpush1.bf16.msra.mxu0 0
        %2549 = vmatprep.subr.bf16.mxu0 0
        %2550 = vmatpush1.bf16.msra.mxu0 0
        %2551 = vmatprep.subr.bf16.mxu0 0
        %2552 = vmatpush1.bf16.msra.mxu0 0
        %2553 = vmatprep.subr.bf16.mxu0 0
        %2554 = vmatpush1.bf16.msra.mxu0 0
        %2555 = vmatprep.subr.bf16.mxu0 0
        %2556 = vmatpush1.bf16.msra.mxu0 %v2543
        %2557 = vmatprep.subr.bf16.mxu0 0
        %2558 = vmatpush1.bf16.msra.mxu0 %v2528
        %2559 = vmatprep.subr.bf16.mxu0 0
        %2560 = vmatpush1.bf16.msra.mxu0 %v2526
        %2561 = vmatprep.subr.bf16.mxu0 0
        %2562 = vmatpush2.bf16.msra.mxu0 0
        %2563 = vmatprep.subr.bf16.mxu0 0
        %2564 = vmatpush2.bf16.msra.mxu0 0
        %2565 = vmatprep.subr.bf16.mxu0 0
        %2566 = vmatpush2.bf16.msra.mxu0 0
        %2567 = vmatprep.subr.bf16.mxu0 0
        %2568 = vmatpush2.bf16.msra.mxu0 0
        %2569 = vmatprep.subr.bf16.mxu0 0
        %2570 = vmatpush2.bf16.msra.mxu0 0
        %2571 = vmatprep.subr.bf16.mxu0 0
        %2572 = vmatpush2.bf16.msra.mxu0 0
        %2573 = vmatprep.subr.bf16.mxu0 0
        %2574 = vmatpush2.bf16.msra.mxu0 0
        %2575 = vmatprep.subr.bf16.mxu0 0
        %2576 = vmatpush2.bf16.msra.mxu0 0
        %2577 = vmatprep.mubr.bf16.mxu0 0
        %2578 = vmatmul.mubr.bf16.gmra.mxu0 %v2534
        %v2579 = vpop.f32.mrf.mxu0
        %v2580 = vadd.f32 0.0, %v2579
        %v2581 = vpop.f32.mrf.mxu0
        %v2582 = vpop.f32.mrf.mxu0
        %v2583 = vadd.f32 0.0, %v2582
        %v2584 = vpop.f32.mrf.mxu0
        %2585 = vmatprep.mubr.bf16.mxu0 0
        %2586 = vmatmul.mubr.bf16.gmra.mxu0 %v2537
        %v2587 = vpop.f32.mrf.mxu0
        %v2588 = vadd.f32 0.0, %v2587
        %v2589 = vpop.f32.mrf.mxu0
        %v2590 = vpop.f32.mrf.mxu0
        %v2591 = vadd.f32 0.0, %v2590
        %v2592 = vpop.f32.mrf.mxu0
        %2593 = vmatprep.mubr.bf16.mxu0 0
        %2594 = vmatmul.mubr.bf16.gmra.mxu0 %v2540
        %v2595 = vpop.f32.mrf.mxu0
        %v2596 = vadd.f32 0.0, %v2595
        %v2597 = vpop.f32.mrf.mxu0
        %v2598 = vpop.f32.mrf.mxu0
        %v2599 = vpop.f32.mrf.mxu0
        %2600 = vdwg.mxu0
        %2604 = vrot.lane.b32.xlu0 %v2373, 120
        %v2605 = vpop.permute.xlu0 %2604
        %2606 = vrot.lane.b32.xlu0 %v2374, 120
        %v2607 = vpop.permute.xlu0 %2606
        %2608 = vrot.lane.b32.xlu0 %v2375, 120
        %v2609 = vpop.permute.xlu0 %2608
        %2610 = vrot.lane.b32.xlu0 %v2376, 88
        %v2611 = vpop.permute.xlu0 %2610
        %2612 = vrot.lane.b32.xlu0 %v2377, 88
        %v2613 = vpop.permute.xlu0 %2612
        %2614 = vrot.lane.b32.xlu0 %v2378, 88
        %v2615 = vpop.permute.xlu0 %2614
        %v2617 = vsel %vm757, %v2605, 0
        %v2620 = vsel %vm757, %v2607, 0
        %v2623 = vsel %vm757, %v2609, 0
        %v2626 = vsel %vm757, %v2611, 0
        %v2629 = vsel %vm757, %v2613, 0
        %v2632 = vsel %vm757, %v2615, 0
        %2634 = vmatprep.subr.bf16.mxu0 0
        %2635 = vmatpush1.bf16.xpose.msra.mxu0 0
        %2636 = vmatprep.subr.bf16.mxu0 0
        %2637 = vmatpush1.bf16.xpose.msra.mxu0 0
        %2638 = vmatprep.subr.bf16.mxu0 0
        %2639 = vmatpush1.bf16.xpose.msra.mxu0 0
        %2640 = vmatprep.subr.bf16.mxu0 0
        %2641 = vmatpush1.bf16.xpose.msra.mxu0 0
        %2642 = vmatprep.subr.bf16.mxu0 0
        %2643 = vmatpush1.bf16.xpose.msra.mxu0 0
        %2644 = vmatprep.subr.bf16.mxu0 0
        %2645 = vmatpush1.bf16.xpose.msra.mxu0 %v2632
        %2646 = vmatprep.subr.bf16.mxu0 0
        %2647 = vmatpush1.bf16.xpose.msra.mxu0 %v2629
        %2648 = vmatprep.subr.bf16.mxu0 0
        %2649 = vmatpush1.bf16.xpose.msra.mxu0 %v2626
        %2650 = vmatprep.subr.bf16.mxu0 0
        %2651 = vmatpush2.bf16.xpose.msra.mxu0 0
        %2652 = vmatprep.subr.bf16.mxu0 0
        %2653 = vmatpush2.bf16.xpose.msra.mxu0 0
        %2654 = vmatprep.subr.bf16.mxu0 0
        %2655 = vmatpush2.bf16.xpose.msra.mxu0 0
        %2656 = vmatprep.subr.bf16.mxu0 0
        %2657 = vmatpush2.bf16.xpose.msra.mxu0 0
        %2658 = vmatprep.subr.bf16.mxu0 0
        %2659 = vmatpush2.bf16.xpose.msra.mxu0 0
        %2660 = vmatprep.subr.bf16.mxu0 0
        %2661 = vmatpush2.bf16.xpose.msra.mxu0 0
        %2662 = vmatprep.subr.bf16.mxu0 0
        %2663 = vmatpush2.bf16.xpose.msra.mxu0 0
        %2664 = vmatprep.subr.bf16.mxu0 0
        %2665 = vmatpush2.bf16.xpose.msra.mxu0 0
        %2666 = vmatprep.mubr.bf16.mxu0 0
        %2667 = vmatmul.mubr.bf16.gmra.mxu0 %v2617
        %v2668 = vpop.f32.mrf.mxu0
        %v2669 = vadd.f32 0.0, %v2668
        %v2670 = vpop.f32.mrf.mxu0
        %v2671 = vpop.f32.mrf.mxu0
        %v2672 = vadd.f32 0.0, %v2671
        %v2673 = vpop.f32.mrf.mxu0
        %2674 = vmatprep.mubr.bf16.mxu0 0
        %2675 = vmatmul.mubr.bf16.gmra.mxu0 %v2620
        %v2676 = vpop.f32.mrf.mxu0
        %v2677 = vadd.f32 0.0, %v2676
        %v2678 = vpop.f32.mrf.mxu0
        %v2679 = vpop.f32.mrf.mxu0
        %v2680 = vadd.f32 0.0, %v2679
        %v2681 = vpop.f32.mrf.mxu0
        %2682 = vmatprep.mubr.bf16.mxu0 0
        %2683 = vmatmul.mubr.bf16.gmra.mxu0 %v2623
        %v2684 = vpop.f32.mrf.mxu0
        %v2685 = vadd.f32 0.0, %v2684
        %v2686 = vpop.f32.mrf.mxu0
        %v2687 = vpop.f32.mrf.mxu0
        %v2688 = vpop.f32.mrf.mxu0
        %2689 = vdwg.mxu0
        %v2690 = vsel %vm554, %v2669, -1e+30
        %v2691 = vsel %vm554, %v2672, -1e+30
        %v2692 = vsel %vm554, %v2677, -1e+30
        %v2693 = vsel %vm554, %v2680, -1e+30
        %v2694 = vsel %vm554, %v2685, -1e+30
        %v2695 = vsel %vm837, %v2690, -inf
        %2696 = vmax.xlane.f32.xlu0 %v2695
        %v2697 = vpop.xlane.xlu0 %2696
        %v2698 = vsel %vm837, %v2691, -inf
        %2699 = vmax.xlane.f32.xlu0 %v2698
        %v2700 = vpop.xlane.xlu0 %2699
        %v2701 = vsel %vm837, %v2692, -inf
        %2702 = vmax.xlane.f32.xlu0 %v2701
        %v2703 = vpop.xlane.xlu0 %2702
        %v2704 = vsel %vm837, %v2693, -inf
        %2705 = vmax.xlane.f32.xlu0 %v2704
        %v2706 = vpop.xlane.xlu0 %2705
        %v2707 = vsel %vm837, %v2694, -inf
        %2708 = vmax.xlane.f32.xlu0 %v2707
        %v2709 = vpop.xlane.xlu0 %2708
        %v2710 = vsub.f32 %v2690, %v2697
        %v2711 = vsub.f32 %v2691, %v2700
        %v2712 = vsub.f32 %v2692, %v2703
        %v2713 = vsub.f32 %v2693, %v2706
        %v2714 = vsub.f32 %v2694, %v2709
        %v2715 = vmul.f32 %v2710, 1.442695
        %v2716 = vpow.pop %v2715
        %v2717 = vmul.f32 %v2711, 1.442695
        %v2718 = vpow.pop %v2717
        %v2719 = vmul.f32 %v2712, 1.442695
        %v2720 = vpow.pop %v2719
        %v2721 = vmul.f32 %v2713, 1.442695
        %v2722 = vpow.pop %v2721
        %v2723 = vmul.f32 %v2714, 1.442695
        %v2724 = vpow.pop %v2723
        %v2725 = vsel %vm837, %v2716, 0.0
        %2726 = vadd.xlane.f32.xlu0 %v2725
        %v2727 = vpop.xlane.xlu0 %2726
        %v2728 = vsel %vm837, %v2718, 0.0
        %2729 = vadd.xlane.f32.xlu0 %v2728
        %v2730 = vpop.xlane.xlu0 %2729
        %v2731 = vsel %vm837, %v2720, 0.0
        %2732 = vadd.xlane.f32.xlu0 %v2731
        %v2733 = vpop.xlane.xlu0 %2732
        %v2734 = vsel %vm837, %v2722, 0.0
        %2735 = vadd.xlane.f32.xlu0 %v2734
        %v2736 = vpop.xlane.xlu0 %2735
        %v2737 = vsel %vm837, %v2724, 0.0
        %2738 = vadd.xlane.f32.xlu0 %v2737
        %v2739 = vpop.xlane.xlu0 %2738
        %v2740 = vrcp.pop %v2727
        %v2741 = vrcp.pop %v2730
        %v2742 = vrcp.pop %v2733
        %v2743 = vrcp.pop %v2736
        %v2744 = vrcp.pop %v2739
        %v2745 = vmul.f32 %v2716, %v2740
        %v2746 = vmul.f32 %v2718, %v2741
        %v2747 = vmul.f32 %v2720, %v2742
        %v2748 = vmul.f32 %v2722, %v2743
        %v2749 = vmul.f32 %v2724, %v2744
        %v2750 = vpack.c.bf16 %v2746, %v2745
        %v2751 = vpack.c.bf16 %v2748, %v2747
        %v2752 = vpack.c.bf16 %v2749, %v2749
        %2753 = vrot.lane.b32.xlu0 %v2376, 56
        %v2754 = vpop.permute.xlu0 %2753
        %2755 = vrot.lane.b32.xlu0 %v2377, 56
        %v2756 = vpop.permute.xlu0 %2755
        %2757 = vrot.lane.b32.xlu0 %v2378, 56
        %v2758 = vpop.permute.xlu0 %2757
        %v2762 = vsel %vm837, %v2750, 0
        %v2765 = vsel %vm837, %v2751, 0
        %v2768 = vsel %vm837, %v2752, 0
        %v2771 = vsel %vm913, %v2758, 0
        %2773 = vmatprep.subr.bf16.mxu0 0
        %2774 = vmatpush1.bf16.msra.mxu0 0
        %2775 = vmatprep.subr.bf16.mxu0 0
        %2776 = vmatpush1.bf16.msra.mxu0 0
        %2777 = vmatprep.subr.bf16.mxu0 0
        %2778 = vmatpush1.bf16.msra.mxu0 0
        %2779 = vmatprep.subr.bf16.mxu0 0
        %2780 = vmatpush1.bf16.msra.mxu0 0
        %2781 = vmatprep.subr.bf16.mxu0 0
        %2782 = vmatpush1.bf16.msra.mxu0 0
        %2783 = vmatprep.subr.bf16.mxu0 0
        %2784 = vmatpush1.bf16.msra.mxu0 %v2771
        %2785 = vmatprep.subr.bf16.mxu0 0
        %2786 = vmatpush1.bf16.msra.mxu0 %v2756
        %2787 = vmatprep.subr.bf16.mxu0 0
        %2788 = vmatpush1.bf16.msra.mxu0 %v2754
        %2789 = vmatprep.subr.bf16.mxu0 0
        %2790 = vmatpush2.bf16.msra.mxu0 0
        %2791 = vmatprep.subr.bf16.mxu0 0
        %2792 = vmatpush2.bf16.msra.mxu0 0
        %2793 = vmatprep.subr.bf16.mxu0 0
        %2794 = vmatpush2.bf16.msra.mxu0 0
        %2795 = vmatprep.subr.bf16.mxu0 0
        %2796 = vmatpush2.bf16.msra.mxu0 0
        %2797 = vmatprep.subr.bf16.mxu0 0
        %2798 = vmatpush2.bf16.msra.mxu0 0
        %2799 = vmatprep.subr.bf16.mxu0 0
        %2800 = vmatpush2.bf16.msra.mxu0 0
        %2801 = vmatprep.subr.bf16.mxu0 0
        %2802 = vmatpush2.bf16.msra.mxu0 0
        %2803 = vmatprep.subr.bf16.mxu0 0
        %2804 = vmatpush2.bf16.msra.mxu0 0
        %2805 = vmatprep.mubr.bf16.mxu0 0
        %2806 = vmatmul.mubr.bf16.gmra.mxu0 %v2762
        %v2807 = vpop.f32.mrf.mxu0
        %v2808 = vadd.f32 0.0, %v2807
        %v2809 = vpop.f32.mrf.mxu0
        %v2810 = vpop.f32.mrf.mxu0
        %v2811 = vadd.f32 0.0, %v2810
        %v2812 = vpop.f32.mrf.mxu0
        %2813 = vmatprep.mubr.bf16.mxu0 0
        %2814 = vmatmul.mubr.bf16.gmra.mxu0 %v2765
        %v2815 = vpop.f32.mrf.mxu0
        %v2816 = vadd.f32 0.0, %v2815
        %v2817 = vpop.f32.mrf.mxu0
        %v2818 = vpop.f32.mrf.mxu0
        %v2819 = vadd.f32 0.0, %v2818
        %v2820 = vpop.f32.mrf.mxu0
        %2821 = vmatprep.mubr.bf16.mxu0 0
        %2822 = vmatmul.mubr.bf16.gmra.mxu0 %v2768
        %v2823 = vpop.f32.mrf.mxu0
        %v2824 = vadd.f32 0.0, %v2823
        %v2825 = vpop.f32.mrf.mxu0
        %v2826 = vpop.f32.mrf.mxu0
        %v2827 = vpop.f32.mrf.mxu0
        %2828 = vdwg.mxu0
        %2829 = vrot.lane.b32.xlu0 %v2373, 112
        %v2830 = vpop.permute.xlu0 %2829
        %2831 = vrot.lane.b32.xlu0 %v2374, 112
        %v2832 = vpop.permute.xlu0 %2831
        %2833 = vrot.lane.b32.xlu0 %v2375, 112
        %v2834 = vpop.permute.xlu0 %2833
        %2835 = vrot.lane.b32.xlu0 %v2376, 80
        %v2836 = vpop.permute.xlu0 %2835
        %2837 = vrot.lane.b32.xlu0 %v2377, 80
        %v2838 = vpop.permute.xlu0 %2837
        %2839 = vrot.lane.b32.xlu0 %v2378, 80
        %v2840 = vpop.permute.xlu0 %2839
        %v2842 = vsel %vm757, %v2830, 0
        %v2845 = vsel %vm757, %v2832, 0
        %v2848 = vsel %vm757, %v2834, 0
        %v2851 = vsel %vm757, %v2836, 0
        %v2854 = vsel %vm757, %v2838, 0
        %v2857 = vsel %vm757, %v2840, 0
        %2859 = vmatprep.subr.bf16.mxu0 0
        %2860 = vmatpush1.bf16.xpose.msra.mxu0 0
        %2861 = vmatprep.subr.bf16.mxu0 0
        %2862 = vmatpush1.bf16.xpose.msra.mxu0 0
        %2863 = vmatprep.subr.bf16.mxu0 0
        %2864 = vmatpush1.bf16.xpose.msra.mxu0 0
        %2865 = vmatprep.subr.bf16.mxu0 0
        %2866 = vmatpush1.bf16.xpose.msra.mxu0 0
        %2867 = vmatprep.subr.bf16.mxu0 0
        %2868 = vmatpush1.bf16.xpose.msra.mxu0 0
        %2869 = vmatprep.subr.bf16.mxu0 0
        %2870 = vmatpush1.bf16.xpose.msra.mxu0 %v2857
        %2871 = vmatprep.subr.bf16.mxu0 0
        %2872 = vmatpush1.bf16.xpose.msra.mxu0 %v2854
        %2873 = vmatprep.subr.bf16.mxu0 0
        %2874 = vmatpush1.bf16.xpose.msra.mxu0 %v2851
        %2875 = vmatprep.subr.bf16.mxu0 0
        %2876 = vmatpush2.bf16.xpose.msra.mxu0 0
        %2877 = vmatprep.subr.bf16.mxu0 0
        %2878 = vmatpush2.bf16.xpose.msra.mxu0 0
        %2879 = vmatprep.subr.bf16.mxu0 0
        %2880 = vmatpush2.bf16.xpose.msra.mxu0 0
        %2881 = vmatprep.subr.bf16.mxu0 0
        %2882 = vmatpush2.bf16.xpose.msra.mxu0 0
        %2883 = vmatprep.subr.bf16.mxu0 0
        %2884 = vmatpush2.bf16.xpose.msra.mxu0 0
        %2885 = vmatprep.subr.bf16.mxu0 0
        %2886 = vmatpush2.bf16.xpose.msra.mxu0 0
        %2887 = vmatprep.subr.bf16.mxu0 0
        %2888 = vmatpush2.bf16.xpose.msra.mxu0 0
        %2889 = vmatprep.subr.bf16.mxu0 0
        %2890 = vmatpush2.bf16.xpose.msra.mxu0 0
        %2891 = vmatprep.mubr.bf16.mxu0 0
        %2892 = vmatmul.mubr.bf16.gmra.mxu0 %v2842
        %v2893 = vpop.f32.mrf.mxu0
        %v2894 = vadd.f32 0.0, %v2893
        %v2895 = vpop.f32.mrf.mxu0
        %v2896 = vpop.f32.mrf.mxu0
        %v2897 = vadd.f32 0.0, %v2896
        %v2898 = vpop.f32.mrf.mxu0
        %2899 = vmatprep.mubr.bf16.mxu0 0
        %2900 = vmatmul.mubr.bf16.gmra.mxu0 %v2845
        %v2901 = vpop.f32.mrf.mxu0
        %v2902 = vadd.f32 0.0, %v2901
        %v2903 = vpop.f32.mrf.mxu0
        %v2904 = vpop.f32.mrf.mxu0
        %v2905 = vadd.f32 0.0, %v2904
        %v2906 = vpop.f32.mrf.mxu0
        %2907 = vmatprep.mubr.bf16.mxu0 0
        %2908 = vmatmul.mubr.bf16.gmra.mxu0 %v2848
        %v2909 = vpop.f32.mrf.mxu0
        %v2910 = vadd.f32 0.0, %v2909
        %v2911 = vpop.f32.mrf.mxu0
        %v2912 = vpop.f32.mrf.mxu0
        %v2913 = vpop.f32.mrf.mxu0
        %2914 = vdwg.mxu0
        %v2915 = vsel %vm554, %v2894, -1e+30
        %v2916 = vsel %vm554, %v2897, -1e+30
        %v2917 = vsel %vm554, %v2902, -1e+30
        %v2918 = vsel %vm554, %v2905, -1e+30
        %v2919 = vsel %vm554, %v2910, -1e+30
        %v2920 = vsel %vm837, %v2915, -inf
        %2921 = vmax.xlane.f32.xlu0 %v2920
        %v2922 = vpop.xlane.xlu0 %2921
        %v2923 = vsel %vm837, %v2916, -inf
        %2924 = vmax.xlane.f32.xlu0 %v2923
        %v2925 = vpop.xlane.xlu0 %2924
        %v2926 = vsel %vm837, %v2917, -inf
        %2927 = vmax.xlane.f32.xlu0 %v2926
        %v2928 = vpop.xlane.xlu0 %2927
        %v2929 = vsel %vm837, %v2918, -inf
        %2930 = vmax.xlane.f32.xlu0 %v2929
        %v2931 = vpop.xlane.xlu0 %2930
        %v2932 = vsel %vm837, %v2919, -inf
        %2933 = vmax.xlane.f32.xlu0 %v2932
        %v2934 = vpop.xlane.xlu0 %2933
        %v2935 = vsub.f32 %v2915, %v2922
        %v2936 = vsub.f32 %v2916, %v2925
        %v2937 = vsub.f32 %v2917, %v2928
        %v2938 = vsub.f32 %v2918, %v2931
        %v2939 = vsub.f32 %v2919, %v2934
        %v2940 = vmul.f32 %v2935, 1.442695
        %v2941 = vpow.pop %v2940
        %v2942 = vmul.f32 %v2936, 1.442695
        %v2943 = vpow.pop %v2942
        %v2944 = vmul.f32 %v2937, 1.442695
        %v2945 = vpow.pop %v2944
        %v2946 = vmul.f32 %v2938, 1.442695
        %v2947 = vpow.pop %v2946
        %v2948 = vmul.f32 %v2939, 1.442695
        %v2949 = vpow.pop %v2948
        %v2950 = vsel %vm837, %v2941, 0.0
        %2951 = vadd.xlane.f32.xlu0 %v2950
        %v2952 = vpop.xlane.xlu0 %2951
        %v2953 = vsel %vm837, %v2943, 0.0
        %2954 = vadd.xlane.f32.xlu0 %v2953
        %v2955 = vpop.xlane.xlu0 %2954
        %v2956 = vsel %vm837, %v2945, 0.0
        %2957 = vadd.xlane.f32.xlu0 %v2956
        %v2958 = vpop.xlane.xlu0 %2957
        %v2959 = vsel %vm837, %v2947, 0.0
        %2960 = vadd.xlane.f32.xlu0 %v2959
        %v2961 = vpop.xlane.xlu0 %2960
        %v2962 = vsel %vm837, %v2949, 0.0
        %2963 = vadd.xlane.f32.xlu0 %v2962
        %v2964 = vpop.xlane.xlu0 %2963
        %v2965 = vrcp.pop %v2952
        %v2966 = vrcp.pop %v2955
        %v2967 = vrcp.pop %v2958
        %v2968 = vrcp.pop %v2961
        %v2969 = vrcp.pop %v2964
        %v2970 = vmul.f32 %v2941, %v2965
        %v2971 = vmul.f32 %v2943, %v2966
        %v2972 = vmul.f32 %v2945, %v2967
        %v2973 = vmul.f32 %v2947, %v2968
        %v2974 = vmul.f32 %v2949, %v2969
        %v2975 = vpack.c.bf16 %v2971, %v2970
        %v2976 = vpack.c.bf16 %v2973, %v2972
        %v2977 = vpack.c.bf16 %v2974, %v2974
        %2978 = vrot.lane.b32.xlu0 %v2376, 48
        %v2979 = vpop.permute.xlu0 %2978
        %2980 = vrot.lane.b32.xlu0 %v2377, 48
        %v2981 = vpop.permute.xlu0 %2980
        %2982 = vrot.lane.b32.xlu0 %v2378, 48
        %v2983 = vpop.permute.xlu0 %2982
        %v2987 = vsel %vm837, %v2975, 0
        %v2990 = vsel %vm837, %v2976, 0
        %v2993 = vsel %vm837, %v2977, 0
        %v2996 = vsel %vm913, %v2983, 0
        %2998 = vmatprep.subr.bf16.mxu0 0
        %2999 = vmatpush1.bf16.msra.mxu0 0
        %3000 = vmatprep.subr.bf16.mxu0 0
        %3001 = vmatpush1.bf16.msra.mxu0 0
        %3002 = vmatprep.subr.bf16.mxu0 0
        %3003 = vmatpush1.bf16.msra.mxu0 0
        %3004 = vmatprep.subr.bf16.mxu0 0
        %3005 = vmatpush1.bf16.msra.mxu0 0
        %3006 = vmatprep.subr.bf16.mxu0 0
        %3007 = vmatpush1.bf16.msra.mxu0 0
        %3008 = vmatprep.subr.bf16.mxu0 0
        %3009 = vmatpush1.bf16.msra.mxu0 %v2996
        %3010 = vmatprep.subr.bf16.mxu0 0
        %3011 = vmatpush1.bf16.msra.mxu0 %v2981
        %3012 = vmatprep.subr.bf16.mxu0 0
        %3013 = vmatpush1.bf16.msra.mxu0 %v2979
        %3014 = vmatprep.subr.bf16.mxu0 0
        %3015 = vmatpush2.bf16.msra.mxu0 0
        %3016 = vmatprep.subr.bf16.mxu0 0
        %3017 = vmatpush2.bf16.msra.mxu0 0
        %3018 = vmatprep.subr.bf16.mxu0 0
        %3019 = vmatpush2.bf16.msra.mxu0 0
        %3020 = vmatprep.subr.bf16.mxu0 0
        %3021 = vmatpush2.bf16.msra.mxu0 0
        %3022 = vmatprep.subr.bf16.mxu0 0
        %3023 = vmatpush2.bf16.msra.mxu0 0
        %3024 = vmatprep.subr.bf16.mxu0 0
        %3025 = vmatpush2.bf16.msra.mxu0 0
        %3026 = vmatprep.subr.bf16.mxu0 0
        %3027 = vmatpush2.bf16.msra.mxu0 0
        %3028 = vmatprep.subr.bf16.mxu0 0
        %3029 = vmatpush2.bf16.msra.mxu0 0
        %3030 = vmatprep.mubr.bf16.mxu0 0
        %3031 = vmatmul.mubr.bf16.gmra.mxu0 %v2987
        %v3032 = vpop.f32.mrf.mxu0
        %v3033 = vadd.f32 0.0, %v3032
        %v3034 = vpop.f32.mrf.mxu0
        %v3035 = vpop.f32.mrf.mxu0
        %v3036 = vadd.f32 0.0, %v3035
        %v3037 = vpop.f32.mrf.mxu0
        %3038 = vmatprep.mubr.bf16.mxu0 0
        %3039 = vmatmul.mubr.bf16.gmra.mxu0 %v2990
        %v3040 = vpop.f32.mrf.mxu0
        %v3041 = vadd.f32 0.0, %v3040
        %v3042 = vpop.f32.mrf.mxu0
        %v3043 = vpop.f32.mrf.mxu0
        %v3044 = vadd.f32 0.0, %v3043
        %v3045 = vpop.f32.mrf.mxu0
        %3046 = vmatprep.mubr.bf16.mxu0 0
        %3047 = vmatmul.mubr.bf16.gmra.mxu0 %v2993
        %v3048 = vpop.f32.mrf.mxu0
        %v3049 = vadd.f32 0.0, %v3048
        %v3050 = vpop.f32.mrf.mxu0
        %v3051 = vpop.f32.mrf.mxu0
        %v3052 = vpop.f32.mrf.mxu0
        %3053 = vdwg.mxu0
        %3054 = vrot.lane.b32.xlu0 %v2373, 104
        %v3055 = vpop.permute.xlu0 %3054
        %3056 = vrot.lane.b32.xlu0 %v2374, 104
        %v3057 = vpop.permute.xlu0 %3056
        %3058 = vrot.lane.b32.xlu0 %v2375, 104
        %v3059 = vpop.permute.xlu0 %3058
        %3060 = vrot.lane.b32.xlu0 %v2376, 72
        %v3061 = vpop.permute.xlu0 %3060
        %3062 = vrot.lane.b32.xlu0 %v2377, 72
        %v3063 = vpop.permute.xlu0 %3062
        %3064 = vrot.lane.b32.xlu0 %v2378, 72
        %v3065 = vpop.permute.xlu0 %3064
        %v3067 = vsel %vm757, %v3055, 0
        %v3070 = vsel %vm757, %v3057, 0
        %v3073 = vsel %vm757, %v3059, 0
        %v3076 = vsel %vm757, %v3061, 0
        %v3079 = vsel %vm757, %v3063, 0
        %v3082 = vsel %vm757, %v3065, 0
        %3084 = vmatprep.subr.bf16.mxu0 0
        %3085 = vmatpush1.bf16.xpose.msra.mxu0 0
        %3086 = vmatprep.subr.bf16.mxu0 0
        %3087 = vmatpush1.bf16.xpose.msra.mxu0 0
        %3088 = vmatprep.subr.bf16.mxu0 0
        %3089 = vmatpush1.bf16.xpose.msra.mxu0 0
        %3090 = vmatprep.subr.bf16.mxu0 0
        %3091 = vmatpush1.bf16.xpose.msra.mxu0 0
        %3092 = vmatprep.subr.bf16.mxu0 0
        %3093 = vmatpush1.bf16.xpose.msra.mxu0 0
        %3094 = vmatprep.subr.bf16.mxu0 0
        %3095 = vmatpush1.bf16.xpose.msra.mxu0 %v3082
        %3096 = vmatprep.subr.bf16.mxu0 0
        %3097 = vmatpush1.bf16.xpose.msra.mxu0 %v3079
        %3098 = vmatprep.subr.bf16.mxu0 0
        %3099 = vmatpush1.bf16.xpose.msra.mxu0 %v3076
        %3100 = vmatprep.subr.bf16.mxu0 0
        %3101 = vmatpush2.bf16.xpose.msra.mxu0 0
        %3102 = vmatprep.subr.bf16.mxu0 0
        %3103 = vmatpush2.bf16.xpose.msra.mxu0 0
        %3104 = vmatprep.subr.bf16.mxu0 0
        %3105 = vmatpush2.bf16.xpose.msra.mxu0 0
        %3106 = vmatprep.subr.bf16.mxu0 0
        %3107 = vmatpush2.bf16.xpose.msra.mxu0 0
        %3108 = vmatprep.subr.bf16.mxu0 0
        %3109 = vmatpush2.bf16.xpose.msra.mxu0 0
        %3110 = vmatprep.subr.bf16.mxu0 0
        %3111 = vmatpush2.bf16.xpose.msra.mxu0 0
        %3112 = vmatprep.subr.bf16.mxu0 0
        %3113 = vmatpush2.bf16.xpose.msra.mxu0 0
        %3114 = vmatprep.subr.bf16.mxu0 0
        %3115 = vmatpush2.bf16.xpose.msra.mxu0 0
        %3116 = vmatprep.mubr.bf16.mxu0 0
        %3117 = vmatmul.mubr.bf16.gmra.mxu0 %v3067
        %v3118 = vpop.f32.mrf.mxu0
        %v3119 = vadd.f32 0.0, %v3118
        %v3120 = vpop.f32.mrf.mxu0
        %v3121 = vpop.f32.mrf.mxu0
        %v3122 = vadd.f32 0.0, %v3121
        %v3123 = vpop.f32.mrf.mxu0
        %3124 = vmatprep.mubr.bf16.mxu0 0
        %3125 = vmatmul.mubr.bf16.gmra.mxu0 %v3070
        %v3126 = vpop.f32.mrf.mxu0
        %v3127 = vadd.f32 0.0, %v3126
        %v3128 = vpop.f32.mrf.mxu0
        %v3129 = vpop.f32.mrf.mxu0
        %v3130 = vadd.f32 0.0, %v3129
        %v3131 = vpop.f32.mrf.mxu0
        %3132 = vmatprep.mubr.bf16.mxu0 0
        %3133 = vmatmul.mubr.bf16.gmra.mxu0 %v3073
        %v3134 = vpop.f32.mrf.mxu0
        %v3135 = vadd.f32 0.0, %v3134
        %v3136 = vpop.f32.mrf.mxu0
        %v3137 = vpop.f32.mrf.mxu0
        %v3138 = vpop.f32.mrf.mxu0
        %3139 = vdwg.mxu0
        %v3140 = vsel %vm554, %v3119, -1e+30
        %v3141 = vsel %vm554, %v3122, -1e+30
        %v3142 = vsel %vm554, %v3127, -1e+30
        %v3143 = vsel %vm554, %v3130, -1e+30
        %v3144 = vsel %vm554, %v3135, -1e+30
        %v3145 = vsel %vm837, %v3140, -inf
        %3146 = vmax.xlane.f32.xlu0 %v3145
        %v3147 = vpop.xlane.xlu0 %3146
        %v3148 = vsel %vm837, %v3141, -inf
        %3149 = vmax.xlane.f32.xlu0 %v3148
        %v3150 = vpop.xlane.xlu0 %3149
        %v3151 = vsel %vm837, %v3142, -inf
        %3152 = vmax.xlane.f32.xlu0 %v3151
        %v3153 = vpop.xlane.xlu0 %3152
        %v3154 = vsel %vm837, %v3143, -inf
        %3155 = vmax.xlane.f32.xlu0 %v3154
        %v3156 = vpop.xlane.xlu0 %3155
        %v3157 = vsel %vm837, %v3144, -inf
        %3158 = vmax.xlane.f32.xlu0 %v3157
        %v3159 = vpop.xlane.xlu0 %3158
        %v3160 = vsub.f32 %v3140, %v3147
        %v3161 = vsub.f32 %v3141, %v3150
        %v3162 = vsub.f32 %v3142, %v3153
        %v3163 = vsub.f32 %v3143, %v3156
        %v3164 = vsub.f32 %v3144, %v3159
        %v3165 = vmul.f32 %v3160, 1.442695
        %v3166 = vpow.pop %v3165
        %v3167 = vmul.f32 %v3161, 1.442695
        %v3168 = vpow.pop %v3167
        %v3169 = vmul.f32 %v3162, 1.442695
        %v3170 = vpow.pop %v3169
        %v3171 = vmul.f32 %v3163, 1.442695
        %v3172 = vpow.pop %v3171
        %v3173 = vmul.f32 %v3164, 1.442695
        %v3174 = vpow.pop %v3173
        %v3175 = vsel %vm837, %v3166, 0.0
        %3176 = vadd.xlane.f32.xlu0 %v3175
        %v3177 = vpop.xlane.xlu0 %3176
        %v3178 = vsel %vm837, %v3168, 0.0
        %3179 = vadd.xlane.f32.xlu0 %v3178
        %v3180 = vpop.xlane.xlu0 %3179
        %v3181 = vsel %vm837, %v3170, 0.0
        %3182 = vadd.xlane.f32.xlu0 %v3181
        %v3183 = vpop.xlane.xlu0 %3182
        %v3184 = vsel %vm837, %v3172, 0.0
        %3185 = vadd.xlane.f32.xlu0 %v3184
        %v3186 = vpop.xlane.xlu0 %3185
        %v3187 = vsel %vm837, %v3174, 0.0
        %3188 = vadd.xlane.f32.xlu0 %v3187
        %v3189 = vpop.xlane.xlu0 %3188
        %v3190 = vrcp.pop %v3177
        %v3191 = vrcp.pop %v3180
        %v3192 = vrcp.pop %v3183
        %v3193 = vrcp.pop %v3186
        %v3194 = vrcp.pop %v3189
        %v3195 = vmul.f32 %v3166, %v3190
        %v3196 = vmul.f32 %v3168, %v3191
        %v3197 = vmul.f32 %v3170, %v3192
        %v3198 = vmul.f32 %v3172, %v3193
        %v3199 = vmul.f32 %v3174, %v3194
        %v3200 = vpack.c.bf16 %v3196, %v3195
        %v3201 = vpack.c.bf16 %v3198, %v3197
        %v3202 = vpack.c.bf16 %v3199, %v3199
        %3203 = vrot.lane.b32.xlu0 %v2376, 40
        %v3204 = vpop.permute.xlu0 %3203
        %3205 = vrot.lane.b32.xlu0 %v2377, 40
        %v3206 = vpop.permute.xlu0 %3205
        %3207 = vrot.lane.b32.xlu0 %v2378, 40
        %v3208 = vpop.permute.xlu0 %3207
        %v3212 = vsel %vm837, %v3200, 0
        %v3215 = vsel %vm837, %v3201, 0
        %v3218 = vsel %vm837, %v3202, 0
        %v3221 = vsel %vm913, %v3208, 0
        %3223 = vmatprep.subr.bf16.mxu0 0
        %3224 = vmatpush1.bf16.msra.mxu0 0
        %3225 = vmatprep.subr.bf16.mxu0 0
        %3226 = vmatpush1.bf16.msra.mxu0 0
        %3227 = vmatprep.subr.bf16.mxu0 0
        %3228 = vmatpush1.bf16.msra.mxu0 0
        %3229 = vmatprep.subr.bf16.mxu0 0
        %3230 = vmatpush1.bf16.msra.mxu0 0
        %3231 = vmatprep.subr.bf16.mxu0 0
        %3232 = vmatpush1.bf16.msra.mxu0 0
        %3233 = vmatprep.subr.bf16.mxu0 0
        %3234 = vmatpush1.bf16.msra.mxu0 %v3221
        %3235 = vmatprep.subr.bf16.mxu0 0
        %3236 = vmatpush1.bf16.msra.mxu0 %v3206
        %3237 = vmatprep.subr.bf16.mxu0 0
        %3238 = vmatpush1.bf16.msra.mxu0 %v3204
        %3239 = vmatprep.subr.bf16.mxu0 0
        %3240 = vmatpush2.bf16.msra.mxu0 0
        %3241 = vmatprep.subr.bf16.mxu0 0
        %3242 = vmatpush2.bf16.msra.mxu0 0
        %3243 = vmatprep.subr.bf16.mxu0 0
        %3244 = vmatpush2.bf16.msra.mxu0 0
        %3245 = vmatprep.subr.bf16.mxu0 0
        %3246 = vmatpush2.bf16.msra.mxu0 0
        %3247 = vmatprep.subr.bf16.mxu0 0
        %3248 = vmatpush2.bf16.msra.mxu0 0
        %3249 = vmatprep.subr.bf16.mxu0 0
        %3250 = vmatpush2.bf16.msra.mxu0 0
        %3251 = vmatprep.subr.bf16.mxu0 0
        %3252 = vmatpush2.bf16.msra.mxu0 0
        %3253 = vmatprep.subr.bf16.mxu0 0
        %3254 = vmatpush2.bf16.msra.mxu0 0
        %3255 = vmatprep.mubr.bf16.mxu0 0
        %3256 = vmatmul.mubr.bf16.gmra.mxu0 %v3212
        %v3257 = vpop.f32.mrf.mxu0
        %v3258 = vadd.f32 0.0, %v3257
        %v3259 = vpop.f32.mrf.mxu0
        %v3260 = vpop.f32.mrf.mxu0
        %v3261 = vadd.f32 0.0, %v3260
        %v3262 = vpop.f32.mrf.mxu0
        %3263 = vmatprep.mubr.bf16.mxu0 0
        %3264 = vmatmul.mubr.bf16.gmra.mxu0 %v3215
        %v3265 = vpop.f32.mrf.mxu0
        %v3266 = vadd.f32 0.0, %v3265
        %v3267 = vpop.f32.mrf.mxu0
        %v3268 = vpop.f32.mrf.mxu0
        %v3269 = vadd.f32 0.0, %v3268
        %v3270 = vpop.f32.mrf.mxu0
        %3271 = vmatprep.mubr.bf16.mxu0 0
        %3272 = vmatmul.mubr.bf16.gmra.mxu0 %v3218
        %v3273 = vpop.f32.mrf.mxu0
        %v3274 = vadd.f32 0.0, %v3273
        %v3275 = vpop.f32.mrf.mxu0
        %v3276 = vpop.f32.mrf.mxu0
        %v3277 = vpop.f32.mrf.mxu0
        %3278 = vdwg.mxu0
        %3284 = vrot.lane.b32.xlu0 %v2808, 8
        %v3285 = vpop.permute.xlu0 %3284
        %3286 = vrot.lane.b32.xlu0 %v2811, 8
        %v3287 = vpop.permute.xlu0 %3286
        %3288 = vrot.lane.b32.xlu0 %v2816, 8
        %v3289 = vpop.permute.xlu0 %3288
        %3290 = vrot.lane.b32.xlu0 %v2819, 8
        %v3291 = vpop.permute.xlu0 %3290
        %3292 = vrot.lane.b32.xlu0 %v2824, 8
        %v3293 = vpop.permute.xlu0 %3292
        %3304 = vrot.lane.b32.xlu0 %v3033, 16
        %v3305 = vpop.permute.xlu0 %3304
        %3306 = vrot.lane.b32.xlu0 %v3036, 16
        %v3307 = vpop.permute.xlu0 %3306
        %3308 = vrot.lane.b32.xlu0 %v3041, 16
        %v3309 = vpop.permute.xlu0 %3308
        %3310 = vrot.lane.b32.xlu0 %v3044, 16
        %v3311 = vpop.permute.xlu0 %3310
        %3312 = vrot.lane.b32.xlu0 %v3049, 16
        %v3313 = vpop.permute.xlu0 %3312
        %3324 = vrot.lane.b32.xlu0 %v3258, 24
        %v3325 = vpop.permute.xlu0 %3324
        %3326 = vrot.lane.b32.xlu0 %v3261, 24
        %v3327 = vpop.permute.xlu0 %3326
        %3328 = vrot.lane.b32.xlu0 %v3266, 24
        %v3329 = vpop.permute.xlu0 %3328
        %3330 = vrot.lane.b32.xlu0 %v3269, 24
        %v3331 = vpop.permute.xlu0 %3330
        %3332 = vrot.lane.b32.xlu0 %v3274, 24
        %v3333 = vpop.permute.xlu0 %3332
        %v3339 = vsel %vm757, %v2580, %v3285
        %v3340 = vsel %vm757, %v2583, %v3287
        %v3341 = vsel %vm757, %v2588, %v3289
        %v3342 = vsel %vm757, %v2591, %v3291
        %v3343 = vsel %vm757, %v2596, %v3293
        %v3344 = vsel %vm1716, %v3339, %v3305
        %v3345 = vsel %vm1716, %v3340, %v3307
        %v3346 = vsel %vm1716, %v3341, %v3309
        %v3347 = vsel %vm1716, %v3342, %v3311
        %v3348 = vsel %vm1716, %v3343, %v3313
        %v3349 = vsel %vm1722, %v3344, %v3325
        %v3350 = vsel %vm1722, %v3345, %v3327
        %v3351 = vsel %vm1722, %v3346, %v3329
        %v3352 = vsel %vm1722, %v3347, %v3331
        %v3353 = vsel %vm1722, %v3348, %v3333
        %v3354 = vpack.c.bf16 %v3350, %v3349
        %v3355 = vpack.c.bf16 %v3352, %v3351
        %v3356 = vpack.c.bf16 %v3353, %v3353
        %s3357 = scalar_lea.vmem %s5, 16
        %v3358 = vld [vmem:[%s3357] sm:$0xf]
        %v3359 = vld [vmem:[%s3357 + $0x4] sm:$0xf]
        %v3360 = vld [vmem:[%s3357 + $0x8] sm:$0xf]
        %v3361 = vld [vmem:[%s3357 + $0xc] sm:$0xf]
        %s3362 = scalar_lea.vmem %s6, 1
        %v3363 = vld [vmem:[%s3362] sm:$0x1]
        %v3365 = vlaneseq
        %v3366 = vshrl.u32 %v3365, 7
        %v3367 = vsub.s32 0, %v3366
        %v3368 = vrot.slane %v3363, %v3367
        %v3374 = vunpack.c.l.b16 %v3358
        %v3375 = vunpack.c.l.b16 %v3359
        %v3376 = vunpack.c.l.b16 %v3360
        %v3377 = vunpack.c.l.b16 %v3361
        %v3378 = vpack.c.b16 %v3375, %v3374
        %v3379 = vpack.c.b16 %v3377, %v3376
        %v3383 = vsel %vm557, %v3354, 0
        %v3386 = vsel %vm557, %v3355, 0
        %v3389 = vsel %vm557, %v3356, 0
        %3391 = vmatprep.subr.bf16.mxu0 0
        %3392 = vmatpush1.bf16.msra.mxu0 0
        %3393 = vmatprep.subr.bf16.mxu0 0
        %3394 = vmatpush1.bf16.msra.mxu0 0
        %3395 = vmatprep.subr.bf16.mxu0 0
        %3396 = vmatpush1.bf16.msra.mxu0 0
        %3397 = vmatprep.subr.bf16.mxu0 0
        %3398 = vmatpush1.bf16.msra.mxu0 0
        %3399 = vmatprep.subr.bf16.mxu0 0
        %3400 = vmatpush1.bf16.msra.mxu0 0
        %3401 = vmatprep.subr.bf16.mxu0 0
        %3402 = vmatpush1.bf16.msra.mxu0 0
        %3403 = vmatprep.subr.bf16.mxu0 0
        %3404 = vmatpush1.bf16.msra.mxu0 %v3379
        %3405 = vmatprep.subr.bf16.mxu0 0
        %3406 = vmatpush1.bf16.msra.mxu0 %v3378
        %3407 = vmatprep.subr.bf16.mxu0 0
        %3408 = vmatpush2.bf16.msra.mxu0 0
        %3409 = vmatprep.subr.bf16.mxu0 0
        %3410 = vmatpush2.bf16.msra.mxu0 0
        %3411 = vmatprep.subr.bf16.mxu0 0
        %3412 = vmatpush2.bf16.msra.mxu0 0
        %3413 = vmatprep.subr.bf16.mxu0 0
        %3414 = vmatpush2.bf16.msra.mxu0 0
        %3415 = vmatprep.subr.bf16.mxu0 0
        %3416 = vmatpush2.bf16.msra.mxu0 0
        %3417 = vmatprep.subr.bf16.mxu0 0
        %3418 = vmatpush2.bf16.msra.mxu0 0
        %3419 = vmatprep.subr.bf16.mxu0 0
        %3420 = vmatpush2.bf16.msra.mxu0 0
        %3421 = vmatprep.subr.bf16.mxu0 0
        %3422 = vmatpush2.bf16.msra.mxu0 0
        %3423 = vmatprep.mubr.bf16.mxu0 0
        %3424 = vmatmul.mubr.bf16.gmra.mxu0 %v3383
        %v3425 = vpop.f32.mrf.mxu0
        %v3426 = vadd.f32 %v3368, %v3425
        %v3427 = vpop.f32.mrf.mxu0
        %v3428 = vpop.f32.mrf.mxu0
        %v3429 = vadd.f32 %v3368, %v3428
        %v3430 = vpop.f32.mrf.mxu0
        %3431 = vmatprep.mubr.bf16.mxu0 0
        %3432 = vmatmul.mubr.bf16.gmra.mxu0 %v3386
        %v3433 = vpop.f32.mrf.mxu0
        %v3434 = vadd.f32 %v3368, %v3433
        %v3435 = vpop.f32.mrf.mxu0
        %v3436 = vpop.f32.mrf.mxu0
        %v3437 = vadd.f32 %v3368, %v3436
        %v3438 = vpop.f32.mrf.mxu0
        %3439 = vmatprep.mubr.bf16.mxu0 0
        %3440 = vmatmul.mubr.bf16.gmra.mxu0 %v3389
        %v3441 = vpop.f32.mrf.mxu0
        %v3442 = vadd.f32 %v3368, %v3441
        %v3443 = vpop.f32.mrf.mxu0
        %v3444 = vpop.f32.mrf.mxu0
        %v3445 = vpop.f32.mrf.mxu0
        %3446 = vdwg.mxu0
        %v3447 = vadd.f32 %v2179, %v3426
        %v3448 = vadd.f32 %v2180, %v3429
        %v3449 = vadd.f32 %v2181, %v3434
        %v3450 = vadd.f32 %v2182, %v3437
        %v3451 = vadd.f32 %v2183, %v3442
        %s3452 = scalar_lea.vmem %s7, 1
        %v3453 = vld [vmem:[%s3452] sm:$0x1]
        %s3454 = scalar_lea.vmem %s8, 1
        %v3455 = vld [vmem:[%s3454] sm:$0x1]
        %v3456 = vsel %vm557, %v3447, 0.0
        %3457 = vadd.xlane.f32.xlu0 %v3456
        %v3458 = vpop.xlane.xlu0 %3457
        %v3459 = vsel %vm557, %v3448, 0.0
        %3460 = vadd.xlane.f32.xlu0 %v3459
        %v3461 = vpop.xlane.xlu0 %3460
        %v3462 = vsel %vm557, %v3449, 0.0
        %3463 = vadd.xlane.f32.xlu0 %v3462
        %v3464 = vpop.xlane.xlu0 %3463
        %v3465 = vsel %vm557, %v3450, 0.0
        %3466 = vadd.xlane.f32.xlu0 %v3465
        %v3467 = vpop.xlane.xlu0 %3466
        %v3468 = vsel %vm557, %v3451, 0.0
        %3469 = vadd.xlane.f32.xlu0 %v3468
        %v3470 = vpop.xlane.xlu0 %3469
        %v3471 = vmul.f32 %v3458, %v573
        %v3472 = vmul.f32 %v3461, %v573
        %v3473 = vmul.f32 %v3464, %v573
        %v3474 = vmul.f32 %v3467, %v573
        %v3475 = vmul.f32 %v3470, %v573
        %v3476 = vsub.f32 %v3447, %v3471
        %v3477 = vsub.f32 %v3448, %v3472
        %v3478 = vsub.f32 %v3449, %v3473
        %v3479 = vsub.f32 %v3450, %v3474
        %v3480 = vsub.f32 %v3451, %v3475
        %v3481 = vmul.f32 %v3476, %v3476
        %v3482 = vmul.f32 %v3477, %v3477
        %v3483 = vmul.f32 %v3478, %v3478
        %v3484 = vmul.f32 %v3479, %v3479
        %v3485 = vmul.f32 %v3480, %v3480
        %v3486 = vsel %vm557, %v3481, 0.0
        %3487 = vadd.xlane.f32.xlu0 %v3486
        %v3488 = vpop.xlane.xlu0 %3487
        %v3489 = vsel %vm557, %v3482, 0.0
        %3490 = vadd.xlane.f32.xlu0 %v3489
        %v3491 = vpop.xlane.xlu0 %3490
        %v3492 = vsel %vm557, %v3483, 0.0
        %3493 = vadd.xlane.f32.xlu0 %v3492
        %v3494 = vpop.xlane.xlu0 %3493
        %v3495 = vsel %vm557, %v3484, 0.0
        %3496 = vadd.xlane.f32.xlu0 %v3495
        %v3497 = vpop.xlane.xlu0 %3496
        %v3498 = vsel %vm557, %v3485, 0.0
        %3499 = vadd.xlane.f32.xlu0 %v3498
        %v3500 = vpop.xlane.xlu0 %3499
        %v3501 = vmul.f32 %v3488, %v573
        %v3502 = vmul.f32 %v3491, %v573
        %v3503 = vmul.f32 %v3494, %v573
        %v3504 = vmul.f32 %v3497, %v573
        %v3505 = vmul.f32 %v3500, %v573
        %v3506 = vadd.f32 %v3501, 1e-06
        %v3507 = vadd.f32 %v3502, 1e-06
        %v3508 = vadd.f32 %v3503, 1e-06
        %v3509 = vadd.f32 %v3504, 1e-06
        %v3510 = vadd.f32 %v3505, 1e-06
        %v3511 = vrsqrt.pop %v3506
        %v3512 = vrsqrt.pop %v3507
        %v3513 = vrsqrt.pop %v3508
        %v3514 = vrsqrt.pop %v3509
        %v3515 = vrsqrt.pop %v3510
        %v3516 = vmul.f32 %v3476, %v3511
        %v3517 = vmul.f32 %v3477, %v3512
        %v3518 = vmul.f32 %v3478, %v3513
        %v3519 = vmul.f32 %v3479, %v3514
        %v3520 = vmul.f32 %v3480, %v3515
        %v3522 = vlaneseq
        %v3523 = vshrl.u32 %v3522, 7
        %v3524 = vsub.s32 0, %v3523
        %v3525 = vrot.slane %v3453, %v3524
        %v3527 = vmul.f32 %v3516, %v3525
        %v3528 = vmul.f32 %v3517, %v3525
        %v3529 = vmul.f32 %v3518, %v3525
        %v3530 = vmul.f32 %v3519, %v3525
        %v3531 = vmul.f32 %v3520, %v3525
        %v3533 = vlaneseq
        %v3534 = vshrl.u32 %v3533, 7
        %v3535 = vsub.s32 0, %v3534
        %v3536 = vrot.slane %v3455, %v3535
        %v3538 = vadd.f32 %v3527, %v3536
        %v3539 = vadd.f32 %v3528, %v3536
        %v3540 = vadd.f32 %v3529, %v3536
        %v3541 = vadd.f32 %v3530, %v3536
        %v3542 = vadd.f32 %v3531, %v3536
        %v3543 = vpack.c.bf16 %v3539, %v3538
        %v3544 = vpack.c.bf16 %v3541, %v3540
        %v3545 = vpack.c.bf16 %v3542, %v3542
        %s3546 = scalar_lea.vmem %s9, 16
        %v3547 = vld [vmem:[%s3546] sm:$0xf]
        %v3548 = vld [vmem:[%s3546 + $0x4] sm:$0xf]
        %v3549 = vld [vmem:[%s3546 + $0x8] sm:$0xf]
        %v3550 = vld [vmem:[%s3546 + $0xc] sm:$0xf]
        %s3551 = scalar_lea.vmem %s10, 1
        %v3552 = vld [vmem:[%s3551] sm:$0x1]
        %v3554 = vlaneseq
        %v3555 = vshrl.u32 %v3554, 7
        %v3556 = vsub.s32 0, %v3555
        %v3557 = vrot.slane %v3552, %v3556
        %v3563 = vunpack.c.l.b16 %v3547
        %v3564 = vunpack.c.l.b16 %v3548
        %v3565 = vunpack.c.l.b16 %v3549
        %v3566 = vunpack.c.l.b16 %v3550
        %v3567 = vpack.c.b16 %v3564, %v3563
        %v3568 = vpack.c.b16 %v3566, %v3565
        %v3572 = vsel %vm557, %v3543, 0
        %v3575 = vsel %vm557, %v3544, 0
        %v3578 = vsel %vm557, %v3545, 0
        %3580 = vmatprep.subr.bf16.mxu0 0
        %3581 = vmatpush1.bf16.msra.mxu0 0
        %3582 = vmatprep.subr.bf16.mxu0 0
        %3583 = vmatpush1.bf16.msra.mxu0 0
        %3584 = vmatprep.subr.bf16.mxu0 0
        %3585 = vmatpush1.bf16.msra.mxu0 0
        %3586 = vmatprep.subr.bf16.mxu0 0
        %3587 = vmatpush1.bf16.msra.mxu0 0
        %3588 = vmatprep.subr.bf16.mxu0 0
        %3589 = vmatpush1.bf16.msra.mxu0 0
        %3590 = vmatprep.subr.bf16.mxu0 0
        %3591 = vmatpush1.bf16.msra.mxu0 0
        %3592 = vmatprep.subr.bf16.mxu0 0
        %3593 = vmatpush1.bf16.msra.mxu0 %v3568
        %3594 = vmatprep.subr.bf16.mxu0 0
        %3595 = vmatpush1.bf16.msra.mxu0 %v3567
        %3596 = vmatprep.subr.bf16.mxu0 0
        %3597 = vmatpush2.bf16.msra.mxu0 0
        %3598 = vmatprep.subr.bf16.mxu0 0
        %3599 = vmatpush2.bf16.msra.mxu0 0
        %3600 = vmatprep.subr.bf16.mxu0 0
        %3601 = vmatpush2.bf16.msra.mxu0 0
        %3602 = vmatprep.subr.bf16.mxu0 0
        %3603 = vmatpush2.bf16.msra.mxu0 0
        %3604 = vmatprep.subr.bf16.mxu0 0
        %3605 = vmatpush2.bf16.msra.mxu0 0
        %3606 = vmatprep.subr.bf16.mxu0 0
        %3607 = vmatpush2.bf16.msra.mxu0 0
        %3608 = vmatprep.subr.bf16.mxu0 0
        %3609 = vmatpush2.bf16.msra.mxu0 0
        %3610 = vmatprep.subr.bf16.mxu0 0
        %3611 = vmatpush2.bf16.msra.mxu0 0
        %3612 = vmatprep.mubr.bf16.mxu0 0
        %3613 = vmatmul.mubr.bf16.gmra.mxu0 %v3572
        %v3614 = vpop.f32.mrf.mxu0
        %v3615 = vadd.f32 %v3557, %v3614
        %v3616 = vpop.f32.mrf.mxu0
        %v3617 = vpop.f32.mrf.mxu0
        %v3618 = vadd.f32 %v3557, %v3617
        %v3619 = vpop.f32.mrf.mxu0
        %3620 = vmatprep.mubr.bf16.mxu0 0
        %3621 = vmatmul.mubr.bf16.gmra.mxu0 %v3575
        %v3622 = vpop.f32.mrf.mxu0
        %v3623 = vadd.f32 %v3557, %v3622
        %v3624 = vpop.f32.mrf.mxu0
        %v3625 = vpop.f32.mrf.mxu0
        %v3626 = vadd.f32 %v3557, %v3625
        %v3627 = vpop.f32.mrf.mxu0
        %3628 = vmatprep.mubr.bf16.mxu0 0
        %3629 = vmatmul.mubr.bf16.gmra.mxu0 %v3578
        %v3630 = vpop.f32.mrf.mxu0
        %v3631 = vadd.f32 %v3557, %v3630
        %v3632 = vpop.f32.mrf.mxu0
        %v3633 = vpop.f32.mrf.mxu0
        %v3634 = vpop.f32.mrf.mxu0
        %3635 = vdwg.mxu0
        %v3636 = vmul.f32 %v3615, 0.5
        %v3637 = vmul.f32 %v3618, 0.5
        %v3638 = vmul.f32 %v3623, 0.5
        %v3639 = vmul.f32 %v3626, 0.5
        %v3640 = vmul.f32 %v3631, 0.5
        %v3641 = vmul.f32 %v3615, %v3615
        %v3642 = vmul.f32 %v3618, %v3618
        %v3643 = vmul.f32 %v3623, %v3623
        %v3644 = vmul.f32 %v3626, %v3626
        %v3645 = vmul.f32 %v3631, %v3631
        %v3646 = vmul.f32 %v3641, %v3615
        %v3647 = vmul.f32 %v3642, %v3618
        %v3648 = vmul.f32 %v3643, %v3623
        %v3649 = vmul.f32 %v3644, %v3626
        %v3650 = vmul.f32 %v3645, %v3631
        %v3651 = vmul.f32 %v3646, 0.044715
        %v3652 = vmul.f32 %v3647, 0.044715
        %v3653 = vmul.f32 %v3648, 0.044715
        %v3654 = vmul.f32 %v3649, 0.044715
        %v3655 = vmul.f32 %v3650, 0.044715
        %v3656 = vadd.f32 %v3615, %v3651
        %v3657 = vadd.f32 %v3618, %v3652
        %v3658 = vadd.f32 %v3623, %v3653
        %v3659 = vadd.f32 %v3626, %v3654
        %v3660 = vadd.f32 %v3631, %v3655
        %v3661 = vmul.f32 %v3656, 0.7978846
        %v3662 = vmul.f32 %v3657, 0.7978846
        %v3663 = vmul.f32 %v3658, 0.7978846
        %v3664 = vmul.f32 %v3659, 0.7978846
        %v3665 = vmul.f32 %v3660, 0.7978846
        %v3666 = vtanh.pop %v3661
        %v3667 = vtanh.pop %v3662
        %v3668 = vtanh.pop %v3663
        %v3669 = vtanh.pop %v3664
        %v3670 = vtanh.pop %v3665
        %v3671 = vadd.f32 %v3666, 1.0
        %v3672 = vadd.f32 %v3667, 1.0
        %v3673 = vadd.f32 %v3668, 1.0
        %v3674 = vadd.f32 %v3669, 1.0
        %v3675 = vadd.f32 %v3670, 1.0
        %v3676 = vmul.f32 %v3636, %v3671
        %v3677 = vmul.f32 %v3637, %v3672
        %v3678 = vmul.f32 %v3638, %v3673
        %v3679 = vmul.f32 %v3639, %v3674
        %v3680 = vmul.f32 %v3640, %v3675
        %v3681 = vpack.c.bf16 %v3677, %v3676
        %v3682 = vpack.c.bf16 %v3679, %v3678
        %v3683 = vpack.c.bf16 %v3680, %v3680
        %s3684 = scalar_lea.vmem %s11, 64
        %v3685 = vld [vmem:[%s3684] sm:$0xf]
        %v3686 = vld [vmem:[%s3684 + $0x4] sm:$0xf]
        %v3687 = vld [vmem:[%s3684 + $0x8] sm:$0xf]
        %v3688 = vld [vmem:[%s3684 + $0xc] sm:$0xf]
        %v3689 = vld [vmem:[%s3684 + $0x10] sm:$0xf]
        %v3690 = vld [vmem:[%s3684 + $0x14] sm:$0xf]
        %v3691 = vld [vmem:[%s3684 + $0x18] sm:$0xf]
        %v3692 = vld [vmem:[%s3684 + $0x1c] sm:$0xf]
        %v3693 = vld [vmem:[%s3684 + $0x20] sm:$0xf]
        %v3694 = vld [vmem:[%s3684 + $0x24] sm:$0xf]
        %v3695 = vld [vmem:[%s3684 + $0x28] sm:$0xf]
        %v3696 = vld [vmem:[%s3684 + $0x2c] sm:$0xf]
        %v3697 = vld [vmem:[%s3684 + $0x30] sm:$0xf]
        %v3698 = vld [vmem:[%s3684 + $0x34] sm:$0xf]
        %v3699 = vld [vmem:[%s3684 + $0x38] sm:$0xf]
        %v3700 = vld [vmem:[%s3684 + $0x3c] sm:$0xf]
        %s3701 = scalar_lea.vmem %s12, 1
        %v3702 = vld [vmem:[%s3701] sm:$0x1]
        %v3704 = vlaneseq
        %v3705 = vshrl.u32 %v3704, 7
        %v3706 = vsub.s32 0, %v3705
        %v3707 = vrot.slane %v3702, %v3706
        %v3725 = vunpack.c.l.b16 %v3685
        %v3726 = vunpack.c.l.b16 %v3686
        %v3727 = vunpack.c.l.b16 %v3687
        %v3728 = vunpack.c.l.b16 %v3688
        %v3729 = vunpack.c.l.b16 %v3689
        %v3730 = vunpack.c.l.b16 %v3690
        %v3731 = vunpack.c.l.b16 %v3691
        %v3732 = vunpack.c.l.b16 %v3692
        %v3733 = vunpack.c.l.b16 %v3693
        %v3734 = vunpack.c.l.b16 %v3694
        %v3735 = vunpack.c.l.b16 %v3695
        %v3736 = vunpack.c.l.b16 %v3696
        %v3737 = vunpack.c.l.b16 %v3697
        %v3738 = vunpack.c.l.b16 %v3698
        %v3739 = vunpack.c.l.b16 %v3699
        %v3740 = vunpack.c.l.b16 %v3700
        %v3741 = vpack.c.b16 %v3726, %v3725
        %v3742 = vpack.c.b16 %v3728, %v3727
        %v3743 = vpack.c.b16 %v3730, %v3729
        %v3744 = vpack.c.b16 %v3732, %v3731
        %v3745 = vpack.c.b16 %v3734, %v3733
        %v3746 = vpack.c.b16 %v3736, %v3735
        %v3747 = vpack.c.b16 %v3738, %v3737
        %v3748 = vpack.c.b16 %v3740, %v3739
        %3757 = vmatprep.subr.bf16.mxu0 0
        %3758 = vmatpush1.bf16.msra.mxu0 %v3748
        %3759 = vmatprep.subr.bf16.mxu0 0
        %3760 = vmatpush1.bf16.msra.mxu0 %v3747
        %3761 = vmatprep.subr.bf16.mxu0 0
        %3762 = vmatpush1.bf16.msra.mxu0 %v3746
        %3763 = vmatprep.subr.bf16.mxu0 0
        %3764 = vmatpush1.bf16.msra.mxu0 %v3745
        %3765 = vmatprep.subr.bf16.mxu0 0
        %3766 = vmatpush1.bf16.msra.mxu0 %v3744
        %3767 = vmatprep.subr.bf16.mxu0 0
        %3768 = vmatpush1.bf16.msra.mxu0 %v3743
        %3769 = vmatprep.subr.bf16.mxu0 0
        %3770 = vmatpush1.bf16.msra.mxu0 %v3742
        %3771 = vmatprep.subr.bf16.mxu0 0
        %3772 = vmatpush1.bf16.msra.mxu0 %v3741
        %3773 = vmatprep.subr.bf16.mxu0 0
        %3774 = vmatpush2.bf16.msra.mxu0 0
        %3775 = vmatprep.subr.bf16.mxu0 0
        %3776 = vmatpush2.bf16.msra.mxu0 0
        %3777 = vmatprep.subr.bf16.mxu0 0
        %3778 = vmatpush2.bf16.msra.mxu0 0
        %3779 = vmatprep.subr.bf16.mxu0 0
        %3780 = vmatpush2.bf16.msra.mxu0 0
        %3781 = vmatprep.subr.bf16.mxu0 0
        %3782 = vmatpush2.bf16.msra.mxu0 0
        %3783 = vmatprep.subr.bf16.mxu0 0
        %3784 = vmatpush2.bf16.msra.mxu0 0
        %3785 = vmatprep.subr.bf16.mxu0 0
        %3786 = vmatpush2.bf16.msra.mxu0 0
        %3787 = vmatprep.subr.bf16.mxu0 0
        %3788 = vmatpush2.bf16.msra.mxu0 0
        %3789 = vmatprep.mubr.bf16.mxu0 0
        %3790 = vmatmul.mubr.bf16.gmra.mxu0 %v3681
        %v3791 = vpop.f32.mrf.mxu0
        %v3792 = vadd.f32 %v3707, %v3791
        %v3793 = vpop.f32.mrf.mxu0
        %v3794 = vpop.f32.mrf.mxu0
        %v3795 = vpop.f32.mrf.mxu0
        %3796 = vmatprep.mubr.bf16.mxu0 0
        %3797 = vmatmul.mubr.bf16.gmra.mxu0 %v3682
        %v3798 = vpop.f32.mrf.mxu0
        %v3799 = vpop.f32.mrf.mxu0
        %v3800 = vpop.f32.mrf.mxu0
        %v3801 = vpop.f32.mrf.mxu0
        %3802 = vmatprep.mubr.bf16.mxu0 0
        %3803 = vmatmul.mubr.bf16.gmra.mxu0 %v3683
        %v3804 = vpop.f32.mrf.mxu0
        %v3805 = vpop.f32.mrf.mxu0
        %v3806 = vpop.f32.mrf.mxu0
        %v3807 = vpop.f32.mrf.mxu0
        %3808 = vdwg.mxu0
        %v3809 = vadd.f32 %v3447, %v3792
        %v3810 = vld [vmem:[%s13] sm:$0x1]
        %v3811 = vld [vmem:[%s14] sm:$0x1]
        %vm3812 = vcmask 253952
        %v3813 = vsel %vm3812, %v3809, 0.0
        %3814 = vadd.xlane.f32.xlu0 %v3813
        %v3815 = vpop.xlane.xlu0 %3814
        %v3816 = vmul.f32 %v3815, %v573
        %v3817 = vsub.f32 %v3809, %v3816
        %v3818 = vmul.f32 %v3817, %v3817
        %v3819 = vsel %vm3812, %v3818, 0.0
        %3820 = vadd.xlane.f32.xlu0 %v3819
        %v3821 = vpop.xlane.xlu0 %3820
        %v3822 = vmul.f32 %v3821, %v573
        %v3823 = vadd.f32 %v3822, 1e-06
        %v3824 = vrsqrt.pop %v3823
        %v3825 = vmul.f32 %v3817, %v3824
        %v3826 = vmul.f32 %v3825, %v3810
        %v3827 = vadd.f32 %v3826, %v3811
        %v3828 = vpack.c.bf16 %v3827, %v3827
        %v3829 = vld [vmem:[%s15] sm:$0xf]
        %v3830 = vld [vmem:[%s15 + $0x4] sm:$0xf]
        %v3831 = vld [vmem:[%s15 + $0x8] sm:$0xf]
        %v3832 = vld [vmem:[%s15 + $0xc] sm:$0xf]
        %v3833 = vld [vmem:[%s16] sm:$0x1]
        %v3838 = vunpack.c.l.b16 %v3829
        %v3839 = vunpack.c.l.b16 %v3830
        %v3840 = vunpack.c.l.b16 %v3831
        %v3841 = vunpack.c.l.b16 %v3832
        %v3842 = vpack.c.b16 %v3839, %v3838
        %v3843 = vpack.c.b16 %v3841, %v3840
        %v3847 = vsel %vm557, %v3828, 0
        %3849 = vmatprep.subr.bf16.mxu0 0
        %3850 = vmatpush1.bf16.msra.mxu0 0
        %3851 = vmatprep.subr.bf16.mxu0 0
        %3852 = vmatpush1.bf16.msra.mxu0 0
        %3853 = vmatprep.subr.bf16.mxu0 0
        %3854 = vmatpush1.bf16.msra.mxu0 0
        %3855 = vmatprep.subr.bf16.mxu0 0
        %3856 = vmatpush1.bf16.msra.mxu0 0
        %3857 = vmatprep.subr.bf16.mxu0 0
        %3858 = vmatpush1.bf16.msra.mxu0 0
        %3859 = vmatprep.subr.bf16.mxu0 0
        %3860 = vmatpush1.bf16.msra.mxu0 0
        %3861 = vmatprep.subr.bf16.mxu0 0
        %3862 = vmatpush1.bf16.msra.mxu0 %v3843
        %3863 = vmatprep.subr.bf16.mxu0 0
        %3864 = vmatpush1.bf16.msra.mxu0 %v3842
        %3865 = vmatprep.subr.bf16.mxu0 0
        %3866 = vmatpush2.bf16.msra.mxu0 0
        %3867 = vmatprep.subr.bf16.mxu0 0
        %3868 = vmatpush2.bf16.msra.mxu0 0
        %3869 = vmatprep.subr.bf16.mxu0 0
        %3870 = vmatpush2.bf16.msra.mxu0 0
        %3871 = vmatprep.subr.bf16.mxu0 0
        %3872 = vmatpush2.bf16.msra.mxu0 0
        %3873 = vmatprep.subr.bf16.mxu0 0
        %3874 = vmatpush2.bf16.msra.mxu0 0
        %3875 = vmatprep.subr.bf16.mxu0 0
        %3876 = vmatpush2.bf16.msra.mxu0 0
        %3877 = vmatprep.subr.bf16.mxu0 0
        %3878 = vmatpush2.bf16.msra.mxu0 0
        %3879 = vmatprep.subr.bf16.mxu0 0
        %3880 = vmatpush2.bf16.msra.mxu0 0
        %3881 = vmatprep.mubr.bf16.mxu0 0
        %3882 = vmatmul.mubr.bf16.gmra.mxu0 %v3847
        %v3883 = vpop.f32.mrf.mxu0
        %v3884 = vadd.f32 %v3833, %v3883
        %v3885 = vpop.f32.mrf.mxu0
        %v3886 = vpop.f32.mrf.mxu0
        %v3887 = vpop.f32.mrf.mxu0
        %3888 = vdwg.mxu0
        %vm3889 = vcmask 73728
        %3890 = vst.msk [vmem:[%s540] sm:$0x1] %vm3889, %v3884
        %s3891 = sand.u32 %s401, 1
        %s3892 = scalar_lea.sflag [#allocation3], %s3891
        %s3893 = sand.u32 %s401, 1
        %s3894 = scalar_lea.vmem [#allocation2], %s3893
        // Predicated region
        $region89: #{forward.3} parent=87 // pred_check
          %p3895 = pneg %p411
        $region90: #{forward.3} parent=87 // pred_check_branch
          %3897 = sbr.rel (%p3895) target = $region92
        $region91: #{forward.3} parent=87 // pred_region
          %s3899 = ssub.s32 16, 16
          %3900 = vsyncadd %s3892, %s3899
          %s3901 = smul.addr %s31, 16
          %s3902 = scalar_lea.hbm %s17, %s3901
          %s3904 = sshll.u32 %s3894, 4
          %s3905 = int_to_ptr.vmem [resolvable:$true] %s3904
          %3907 = dma.vmem_to_hbm [thread:$0]  %s3905, 16, %s3902, %s3892
        $region92: #{forward.3} parent=87 // pred_fallthru
          _
      $region88: #{forward.3} parent=5 // pred_fallthru
        _
      %p3908 = scmp.le.s32.totalorder 2, %s26
      // Predicated region
      $region93: #{forward.3} parent=5 // pred_check
        %p3909 = pneg %p3908
      $region94: #{forward.3} parent=5 // pred_check_branch
        %3911 = sbr.rel (%p3909) target = $region96
      $region95: #{forward.3} parent=5 // pred_region
        %s3912 = ssub.s32 %s26, 2
        // Predicated region
        $region97: #{forward.3} parent=95 // pred_check
          %p3913 = pneg %p417
        $region98: #{forward.3} parent=95 // pred_check_branch
          %3915 = sbr.rel (%p3913) target = $region100
        $region99: #{forward.3} parent=95 // pred_region
          %s3916 = sand.u32 %s402, 1
          %s3917 = scalar_lea.sflag [#allocation3], %s3916
          %s3918 = sand.u32 %s402, 1
          %s3919 = scalar_lea.vmem [#allocation2], %s3918
          %3920 = dma.done %s3917, 16
        $region100: #{forward.3} parent=95 // pred_fallthru
          _
      $region96: #{forward.3} parent=5 // pred_fallthru
        _
    $region6: #{forward.3} parent=1 // loop_footer
      %s30 = sadd.s32 1, %s26
    $region7: #{forward.3} parent=1 // loop_footer_branch
      %25 = sbr.rel target = $region3
    $region8: #{forward.3} parent=1 // loop_exit
      _
    %3921 = vsyncpa [#allocation3], 1
    %s3922 = scalar_lea.sflag [#allocation3], 1
    %3923 = vsyncpa %s3922, 1

</llo_original>
